<compile_context>
chip_gen: v7x
topology: tpu7x:2x2x1
jax: 0.10.0
libtpu: 0.0.40
codegen_flags: <defaults>
</compile_context>

<pallas_src>
import jax
import jax.numpy as jnp
from jax.experimental import pallas as pl
from jax.experimental.pallas import tpu as pltpu


def _round_up(x, m):
    return ((x + m - 1) // m) * m


def _num_tensorcores():
    """2 on v7x (megacore split of the hidden axis), else 1."""
    try:
        kind = jax.devices()[0].device_kind.lower()
    except Exception:
        return 1
    return 2 if ("v7" in kind or "7x" in kind) else 1


def _vmem_limit_bytes():
    """Generation-aware scoped-VMEM budget: physical minus ~16 MiB headroom."""
    headroom = 16 * 1024 * 1024
    try:
        cap = int(pltpu.get_tpu_info().vmem_capacity_bytes)
    except Exception:
        cap = 64 * 1024 * 1024            # conservative fallback: v7x per-TC size
    # v7x: 64 MiB -> 48 MiB limit ; v5e/v6e: 128 MiB -> 112 MiB limit.
    return max(32 * 1024 * 1024, min(cap - headroom, 112 * 1024 * 1024))


def _pick_tk(f_in, b_pad, h_tile, nc_pad, vmem_limit, tk_cap=16384):
    """Largest K-tile (multiple of 512, <= tk_cap) whose double-buffered streams fit."""
    fixed = (2 * h_tile * nc_pad * 2      # wlast (bf16), double-buffered
             + 2 * 8 * h_tile * 4         # bpre  (f32, sublane-padded), double-buffered
             + b_pad * h_tile * 4         # f32 accumulator scratch
             + 2 * b_pad * nc_pad * 4)    # output block, double-buffered
    per_tk = 2 * (h_tile + b_pad) * 2     # wpre + x K-tiles (bf16), double-buffered
    budget = int(vmem_limit * 0.85) - fixed
    tk = (max(budget, 0) // per_tk) // 512 * 512
    tk = max(512, min(tk, tk_cap))
    tk = min(tk, _round_up(f_in, 512))    # never larger than the (padded) reduction dim
    return tk


# ----------------------------------------------------------------------------- kernel
def simple_layers_kernel(x_ref, wpre_ref, bpre_ref, wlast_ref, o_ref, acc_ref):
    # Grid: (n_h  [parallel, hidden split],  n_k  [arbitrary, F_in reduction])
    # x_ref:     (B_pad, TK)        bf16   flattened-image K-tile
    # wpre_ref:  (TK, H_tile)       bf16   backbone-projection tile (K x hidden-slice)
    # bpre_ref:  (1, H_tile)        f32    backbone bias slice
    # wlast_ref: (H_tile, NC_pad)   bf16   last_layer.weight (transposed) row-slice
    # o_ref:     (1, B_pad, NC_pad) f32    partial logits for this hidden slice
    # acc_ref:   (B_pad, H_tile)    f32    accumulator, persistent across k
    k = pl.program_id(1)

    @pl.when(k == 0)
    def _():
        acc_ref[...] = jnp.zeros_like(acc_ref)

    # Partial product of this K-tile (bf16 inputs, f32 accumulation on the MXU).
    acc_ref[...] += jnp.dot(x_ref[...], wpre_ref[...],
                            preferred_element_type=jnp.float32)

    @pl.when(k == pl.num_programs(1) - 1)
    def _():
        # x = F.relu(self.pretrained_model(x))        (this hidden slice)
        feats = jnp.maximum(acc_ref[...] + bpre_ref[...], 0.0)
        # partial of self.last_layer(x)  (bias + cross-slice sum done in the wrapper)
        out = jnp.dot(feats.astype(wlast_ref.dtype), wlast_ref[...],
                      preferred_element_type=jnp.float32)
        o_ref[0] = out.astype(o_ref.dtype)


# ------------------------------------------------------------------- one-time weight prep
def prepare_simple_layers_params(w_pre, b_pre, w_last, b_last, *,
                                 max_batch=16, n_h_split=None):
    """Pad + cast the weights ONCE; reuse the returned dict for every forward call."""
    f_in, hidden = w_pre.shape
    nc = w_last.shape[1]

    n_h = _num_tensorcores() if n_h_split is None else n_h_split
    h_pad = _round_up(hidden, 128 * n_h)          # 1000 -> 1024
    h_tile = h_pad // n_h
    nc_pad = _round_up(max(nc, 128), 128)         # lane-dense output
    b_pad_max = _round_up(max(max_batch, 16), 16)

    vmem_limit = _vmem_limit_bytes()
    tk = _pick_tk(f_in, b_pad_max, h_tile, nc_pad, vmem_limit)
    f_in_pad = _round_up(f_in, tk)

    wpre_p = jnp.zeros((f_in_pad, h_pad), jnp.bfloat16).at[:f_in, :hidden].set(
        jnp.asarray(w_pre).astype(jnp.bfloat16))
    bpre_p = jnp.zeros((1, h_pad), jnp.float32).at[:, :hidden].set(
        jnp.asarray(b_pre, jnp.float32).reshape(1, hidden))
    wlast_p = jnp.zeros((h_pad, nc_pad), jnp.bfloat16).at[:hidden, :nc].set(
        jnp.asarray(w_last).astype(jnp.bfloat16))
    blast = jnp.asarray(b_last, jnp.float32).reshape(1, nc)

    return dict(wpre=wpre_p, bpre=bpre_p, wlast=wlast_p, blast=blast,
                f_in=f_in, f_in_pad=f_in_pad, hidden=hidden, nc=nc,
                n_h=n_h, h_pad=h_pad, h_tile=h_tile, nc_pad=nc_pad,
                tk=tk, vmem_limit=vmem_limit)


# ----------------------------------------------------------------------------- forward
def simple_layers_forward(x_nchw, params):
    B = x_nchw.shape[0]
    x_flat = x_nchw.reshape(B, -1)
    f_in = params["f_in"]
    assert x_flat.shape[1] == f_in, "input feature size mismatch"

    tk, f_in_pad = params["tk"], params["f_in_pad"]
    n_h, h_tile = params["n_h"], params["h_tile"]
    nc, nc_pad = params["nc"], params["nc_pad"]
    n_k = f_in_pad // tk
    b_pad = _round_up(max(B, 16), 16)             # bf16 vreg packs (16, 128)

    # Skip the pad/copy of x entirely when it is already aligned.
    if B == b_pad and f_in == f_in_pad:
        x_p = x_flat.astype(jnp.bfloat16)
    else:
        x_p = jnp.zeros((b_pad, f_in_pad), jnp.bfloat16).at[:B, :f_in].set(
            x_flat.astype(jnp.bfloat16))

    cost = pl.CostEstimate(
        flops=2 * b_pad * f_in_pad * params["h_pad"]
              + 2 * b_pad * params["h_pad"] * nc_pad,
        transcendentals=0,
        bytes_accessed=(x_p.size * 2 + params["wpre"].size * 2
                        + params["bpre"].size * 4 + params["wlast"].size * 2
                        + n_h * b_pad * nc_pad * 4),
    )

    # TODO(synk): constant-index inputs (bpre, wlast) could be single-buffered via
    # pipeline_mode=pl.Buffered(1) to reclaim ~0.5 MiB of VMEM; the TK budget above
    # already accounts for their double buffers, so it is left at the safe default.
    out_p = pl.pallas_call(
        simple_layers_kernel,
        out_shape=jax.ShapeDtypeStruct((n_h, b_pad, nc_pad), jnp.float32),
        grid_spec=pltpu.PrefetchScalarGridSpec(
            num_scalar_prefetch=0,
            grid=(n_h, n_k),
            in_specs=[
                pl.BlockSpec((b_pad, tk),       lambda h, k: (0, k)),
                pl.BlockSpec((tk, h_tile),      lambda h, k: (k, h)),
                pl.BlockSpec((1, h_tile),       lambda h, k: (0, h)),
                pl.BlockSpec((h_tile, nc_pad),  lambda h, k: (h, 0)),
            ],
            out_specs=pl.BlockSpec((1, b_pad, nc_pad), lambda h, k: (h, 0, 0)),
            scratch_shapes=[pltpu.VMEM((b_pad, h_tile), jnp.float32)],
        ),
        compiler_params=pltpu.CompilerParams(
            dimension_semantics=("parallel", "arbitrary"),   # hidden split | K reduction
            vmem_limit_bytes=params["vmem_limit"],
        ),
        cost_estimate=cost,
    )(x_p, params["wpre"], params["bpre"], params["wlast"])

    # Sum the hidden-slice partials (tiny: n_h x B x NC) and add the head bias.
    return out_p.sum(axis=0)[:B, :nc] + params["blast"]


# ------------------------------------------------------------------------------- demo
if __name__ == "__main__":
    key = jax.random.PRNGKey(0)
    k_x, k_wp, k_bp, k_wl, k_bl = jax.random.split(key, 5)

    # Small shapes consistent with the module's forward.
    B, C, H, W = 2, 4, 16, 16
    F_IN = C * H * W          # 1024
    HIDDEN = 1000             # pretrained_model output dim (ImageNet-style)
    NUM_LEV1 = 8              # num_lev1_categories

    x = jax.random.normal(k_x, (B, C, H, W), dtype=jnp.float32)

    # Stand-in "pretrained_model": deterministic dense projection to 1000 features.
    # TODO(synk): a real CNN backbone (conv/pool stacks) is not translated here.
    w_pre = jax.random.normal(k_wp, (F_IN, HIDDEN), dtype=jnp.float32) * 0.02
    b_pre = jax.random.normal(k_bp, (1, HIDDEN), dtype=jnp.float32) * 0.02

    # last_layer = nn.Linear(1000, num_lev1_categories, bias=True)
    w_last = jax.random.normal(k_wl, (HIDDEN, NUM_LEV1), dtype=jnp.float32) * 0.02
    b_last = jax.random.normal(k_bl, (1, NUM_LEV1), dtype=jnp.float32) * 0.02

    # One-time weight preparation (hoisted out of the per-call path).
    params = prepare_simple_layers_params(w_pre, b_pre, w_last, b_last, max_batch=B)

    out = simple_layers_forward(x, params)
    out = jax.block_until_ready(out)

    # Pure-JAX reference mirroring the kernel's bf16 rounding of x / w_pre / feats / w_last.
    x_bf = x.reshape(B, -1).astype(jnp.bfloat16).astype(jnp.float32)
    w_pre_bf = w_pre.astype(jnp.bfloat16).astype(jnp.float32)
    feats_ref = jnp.maximum(x_bf @ w_pre_bf + b_pre, 0.0)
    w_last_bf = w_last.astype(jnp.bfloat16).astype(jnp.float32)
    ref = feats_ref.astype(jnp.bfloat16).astype(jnp.float32) @ w_last_bf + b_last

    assert out.shape == (B, NUM_LEV1)
    assert jnp.allclose(out, ref, atol=2e-2, rtol=2e-2), (
        float(jnp.max(jnp.abs(out - ref))))

    print("KERNEL_OK")
</pallas_src>

<mosaic_0001>
module attributes {stable_mosaic.version = 11 : i64} {
  func.func @simple_layers_kernel(%arg0: i32, %arg1: i32, %arg2: memref<16x1024xbf16, #tpu.memory_space<vmem>>, %arg3: memref<1024x1024xbf16, #tpu.memory_space<vmem>>, %arg4: memref<1x1024xf32, #tpu.memory_space<vmem>>, %arg5: memref<1024x128xbf16, #tpu.memory_space<vmem>>, %arg6: memref<1x16x128xf32, #tpu.memory_space<vmem>>, %arg7: memref<16x1024xf32, #tpu.memory_space<vmem>>) attributes {dimension_semantics = [#tpu.dimension_semantics<parallel>, #tpu.dimension_semantics<arbitrary>], iteration_bounds = array<i64: 1, 1>, scalar_prefetch = 0 : i64, scratch_operands = 1 : i64, tpu.core_type = #tpu.core_type<tc>, window_params = [{transform_indices = @transform_0, window_bounds = array<i64: 16, 1024>}, {transform_indices = @transform_1, window_bounds = array<i64: 1024, 1024>}, {transform_indices = @transform_2, window_bounds = array<i64: 1, 1024>}, {transform_indices = @transform_3, window_bounds = array<i64: 1024, 128>}, {transform_indices = @transform_4, window_bounds = array<i64: 1, 16, 128>}]} {
    %c0_i32 = arith.constant 0 : i32
    %0 = arith.cmpi eq, %arg1, %c0_i32 : i32
    %1 = arith.extui %0 : i1 to i32
    %c0_i32_0 = arith.constant 0 : i32
    %2 = arith.cmpi ne, %1, %c0_i32_0 : i32
    scf.if %2 {
      %cst_10 = arith.constant 0.000000e+00 : f32
      %12 = vector.broadcast %cst_10 : f32 to vector<16x1024xf32>
      %c0_11 = arith.constant 0 : index
      %c0_12 = arith.constant 0 : index
      %13 = vector.load %arg7[%c0_11, %c0_12] : memref<16x1024xf32, #tpu.memory_space<vmem>>, vector<16x1024xf32>
      tpu.vector_store %arg7[%c0_11, %c0_12], %12 {strides = array<i32>} : memref<16x1024xf32, #tpu.memory_space<vmem>>, vector<16x1024xf32>,
    } else {
    }
    %c0 = arith.constant 0 : index
    %c0_1 = arith.constant 0 : index
    %3 = vector.load %arg7[%c0, %c0_1] : memref<16x1024xf32, #tpu.memory_space<vmem>>, vector<16x1024xf32>
    %c0_2 = arith.constant 0 : index
    %c0_3 = arith.constant 0 : index
    %4 = vector.load %arg2[%c0_2, %c0_3] : memref<16x1024xbf16, #tpu.memory_space<vmem>>, vector<16x1024xbf16>
    %c0_4 = arith.constant 0 : index
    %c0_5 = arith.constant 0 : index
    %5 = vector.load %arg3[%c0_4, %c0_5] : memref<1024x1024xbf16, #tpu.memory_space<vmem>>, vector<1024x1024xbf16>
    %cst = arith.constant dense<0.000000e+00> : vector<16x1024xf32>
    %6 = tpu.matmul %4, %5, %cst {dimension_numbers = #tpu.dot_dimension_numbers<[1], [0], [0], [1], [0, 0, 1, 1], [], []>} : vector<16x1024xbf16>, vector<1024x1024xbf16>, vector<16x1024xf32> -> vector<16x1024xf32>
    %7 = arith.addf %3, %6 : vector<16x1024xf32>
    %c0_6 = arith.constant 0 : index
    %c0_7 = arith.constant 0 : index
    %8 = vector.load %arg7[%c0_6, %c0_7] : memref<16x1024xf32, #tpu.memory_space<vmem>>, vector<16x1024xf32>
    tpu.vector_store %arg7[%c0_6, %c0_7], %7 {strides = array<i32>} : memref<16x1024xf32, #tpu.memory_space<vmem>>, vector<16x1024xf32>,
    %c0_i32_8 = arith.constant 0 : i32
    %9 = arith.cmpi eq, %arg1, %c0_i32_8 : i32
    %10 = arith.extui %9 : i1 to i32
    %c0_i32_9 = arith.constant 0 : i32
    %11 = arith.cmpi ne, %10, %c0_i32_9 : i32
    scf.if %11 {
      %c0_10 = arith.constant 0 : index
      %c0_11 = arith.constant 0 : index
      %12 = vector.load %arg7[%c0_10, %c0_11] : memref<16x1024xf32, #tpu.memory_space<vmem>>, vector<16x1024xf32>
      %c0_12 = arith.constant 0 : index
      %c0_13 = arith.constant 0 : index
      %13 = vector.load %arg4[%c0_12, %c0_13] : memref<1x1024xf32, #tpu.memory_space<vmem>>, vector<1x1024xf32>
      %14 = vector.broadcast %13 : vector<1x1024xf32> to vector<16x1024xf32>
      %15 = arith.addf %12, %14 : vector<16x1024xf32>
      %cst_14 = arith.constant 0.000000e+00 : f32
      %16 = vector.broadcast %cst_14 : f32 to vector<16x1024xf32>
      %17 = arith.maximumf %15, %16 : vector<16x1024xf32>
      %18 = arith.truncf %17 : vector<16x1024xf32> to vector<16x1024xbf16>
      %c0_15 = arith.constant 0 : index
      %c0_16 = arith.constant 0 : index
      %19 = vector.load %arg5[%c0_15, %c0_16] : memref<1024x128xbf16, #tpu.memory_space<vmem>>, vector<1024x128xbf16>
      %cst_17 = arith.constant dense<0.000000e+00> : vector<16x128xf32>
      %20 = tpu.matmul %18, %19, %cst_17 {dimension_numbers = #tpu.dot_dimension_numbers<[1], [0], [0], [1], [0, 0, 1, 1], [], []>} : vector<16x1024xbf16>, vector<1024x128xbf16>, vector<16x128xf32> -> vector<16x128xf32>
      %c0_18 = arith.constant 0 : index
      %c0_19 = arith.constant 0 : index
      %c0_20 = arith.constant 0 : index
      %21 = vector.load %arg6[%c0_18, %c0_19, %c0_20] : memref<1x16x128xf32, #tpu.memory_space<vmem>>, vector<1x16x128xf32>
      %22 = vector.shape_cast %21 : vector<1x16x128xf32> to vector<16x128xf32>
      %23 = vector.shape_cast %20 : vector<16x128xf32> to vector<1x16x128xf32>
      tpu.vector_store %arg6[%c0_18, %c0_19, %c0_20], %23 {strides = array<i32>} : memref<1x16x128xf32, #tpu.memory_space<vmem>>, vector<1x16x128xf32>,
    } else {
    }
    return
  }
  func.func @transform_0(%arg0: i32, %arg1: i32) -> (i32, i32) {
    %c0_i32 = arith.constant 0 : i32
    %c0_i32_0 = arith.constant 0 : i32
    return %c0_i32, %arg1 : i32, i32
  }
  func.func @transform_1(%arg0: i32, %arg1: i32) -> (i32, i32) {
    %c0_i32 = arith.constant 0 : i32
    return %arg1, %arg0 : i32, i32
  }
  func.func @transform_2(%arg0: i32, %arg1: i32) -> (i32, i32) {
    %c0_i32 = arith.constant 0 : i32
    %c0_i32_0 = arith.constant 0 : i32
    return %c0_i32, %arg0 : i32, i32
  }
  func.func @transform_3(%arg0: i32, %arg1: i32) -> (i32, i32) {
    %c0_i32 = arith.constant 0 : i32
    %c0_i32_0 = arith.constant 0 : i32
    return %arg0, %c0_i32 : i32, i32
  }
  func.func @transform_4(%arg0: i32, %arg1: i32) -> (i32, i32, i32) {
    %c0_i32 = arith.constant 0 : i32
    %c0_i32_0 = arith.constant 0 : i32
    %c0_i32_1 = arith.constant 0 : i32
    return %arg0, %c0_i32, %c0_i32_0 : i32, i32, i32
  }
}

</mosaic_0001>

<llo_original>
// kernel: tpu_custom_call.1
$region0: #{tpu_custom_call.1}
  #allocation0 [shape = 'u32[]', space=smem, size = 0x4, offset = 0x4, fixed_abs, tag = 'smem constant byte address 0x4 - core index']
  #allocation1 [shape = 'u32[144,128]{1,0:T(1,128)}', space=vmem, size = 0x12000, scoped, tag = 'internal scratch']
  #allocation2 [shape = 'f32[16,1024]{1,0:T(8,128)}', space=vmem, size = 0x10000, scoped, tag = 'scratch operand']
  %s0 = inlined_call_operand.hbm [shape: bf16[16,1024], index: 0, kind: input, shape index: {}]
  %s1 = inlined_call_operand.hbm [shape: bf16[1024,1024], index: 1, kind: input, shape index: {}]
  %s2 = inlined_call_operand.hbm [shape: f32[1,1024], index: 2, kind: input, shape index: {}]
  %s3 = inlined_call_operand.hbm [shape: bf16[1024,128], index: 3, kind: input, shape index: {}]
  %s4 = inlined_call_operand.hbm [shape: f32[1,16,128], index: 4, kind: output, shape index: {}]
  %s5 = sld [smem:[#allocation0]]
  $region50: #{tpu_custom_call.1} parent=0
    _
  %s7 = ssub.s32 1, %s5
  %s8 = scalar_select 0, %s7, %s5
  $region1: #{tpu_custom_call.1} parent=0
    #allocation3 [shape = 'u8[32768]{0}', space=vmem, size = 0x8000, scoped, tag = 'input window, operand 0, single buffered']
    #allocation4 [shape = 's32[1]{0}', space=sflag, size = 0x4, scoped, tag = 'scoped memory for tpu_custom_call.1']
    #allocation5 [shape = 's32[1]{0}', space=sflag, size = 0x4, scoped, tag = 'scoped memory for tpu_custom_call.1']
    #allocation6 [shape = 'u8[2097152]{0}', space=vmem, size = 0x200000, scoped, tag = 'input window, operand 1, single buffered']
    #allocation7 [shape = 's32[1]{0}', space=sflag, size = 0x4, scoped, tag = 'scoped memory for tpu_custom_call.1']
    #allocation8 [shape = 'u8[4096]{0}', space=vmem, size = 0x1000, scoped, tag = 'input window, operand 2, single buffered']
    #allocation9 [shape = 'u8[262144]{0}', space=vmem, size = 0x40000, scoped, tag = 'input window, operand 3, single buffered']
    #allocation10 [shape = 's32[1]{0}', space=sflag, size = 0x4, scoped, tag = 'scoped memory for tpu_custom_call.1']
    #allocation11 [shape = 'u8[8192]{0}', space=vmem, size = 0x2000, scoped, tag = 'output window, operand 0, single buffered']
    %9 = vsyncpa [#allocation4], 0
    %10 = vsyncpa [#allocation7], 0
    %11 = vsyncpa [#allocation10], 0
    %12 = vsyncpa [#allocation5], 0
    // Predicated region
    $region2: #{tpu_custom_call.1} parent=1 // pred_check
      _
    $region3: #{tpu_custom_call.1} parent=1 // pred_check_branch
      %14 = sbr.rel (0) target = $region5
    $region4: #{tpu_custom_call.1} parent=1 // pred_region
      %s16 = ssub.s32 1024, 1024
      %17 = vsyncadd [#allocation4], %s16
      %s18 = sshll.u32 [#allocation3], 4
      %s19 = int_to_ptr.vmem [resolvable:$true] %s18
      %24 = dma.hbm_to_vmem [thread:$0]  %s0, 1024, %s19, [#allocation4], 512, 512, 32
    $region5: #{tpu_custom_call.1} parent=1 // pred_fallthru
      _
    // Predicated region
    $region6: #{tpu_custom_call.1} parent=1 // pred_check
      _
    $region7: #{tpu_custom_call.1} parent=1 // pred_check_branch
      %26 = sbr.rel (0) target = $region9
    $region8: #{tpu_custom_call.1} parent=1 // pred_region
      %s28 = ssub.s32 65536, 65536
      %29 = vsyncadd [#allocation7], %s28
      %s30 = sshll.u32 [#allocation6], 4
      %s31 = int_to_ptr.vmem [resolvable:$true] %s30
      %36 = dma.hbm_to_vmem [thread:$0]  %s1, 65536, %s31, [#allocation7], 512, 512, 32
    $region9: #{tpu_custom_call.1} parent=1 // pred_fallthru
      _
    // Predicated region
    $region10: #{tpu_custom_call.1} parent=1 // pred_check
      _
    $region11: #{tpu_custom_call.1} parent=1 // pred_check_branch
      %38 = sbr.rel (0) target = $region13
    $region12: #{tpu_custom_call.1} parent=1 // pred_region
      %s40 = ssub.s32 128, 128
      %41 = vsyncadd [#allocation7], %s40
      %s43 = sshll.u32 [#allocation8], 4
      %s44 = int_to_ptr.vmem [resolvable:$true] %s43
      %46 = dma.hbm_to_vmem [thread:$0]  %s2, 128, %s44, [#allocation7]
    $region13: #{tpu_custom_call.1} parent=1 // pred_fallthru
      _
    // Predicated region
    $region14: #{tpu_custom_call.1} parent=1 // pred_check
      _
    $region15: #{tpu_custom_call.1} parent=1 // pred_check_branch
      %48 = sbr.rel (0) target = $region17
    $region16: #{tpu_custom_call.1} parent=1 // pred_region
      %s50 = ssub.s32 8192, 8192
      %51 = vsyncadd [#allocation10], %s50
      %s52 = sshll.u32 [#allocation9], 4
      %s53 = int_to_ptr.vmem [resolvable:$true] %s52
      %58 = dma.hbm_to_vmem [thread:$0]  %s3, 8192, %s53, [#allocation10], 64, 64, 4
    $region17: #{tpu_custom_call.1} parent=1 // pred_fallthru
      _
    // Predicated region
    $region18: #{tpu_custom_call.1} parent=1 // pred_check
      _
    $region19: #{tpu_custom_call.1} parent=1 // pred_check_branch
      %60 = sbr.rel (0) target = $region21
    $region20: #{tpu_custom_call.1} parent=1 // pred_region
      %61 = dma.done [#allocation4], 1024
    $region21: #{tpu_custom_call.1} parent=1 // pred_fallthru
      _
    // Predicated region
    $region22: #{tpu_custom_call.1} parent=1 // pred_check
      _
    $region23: #{tpu_custom_call.1} parent=1 // pred_check_branch
      %63 = sbr.rel (0) target = $region25
    $region24: #{tpu_custom_call.1} parent=1 // pred_region
      %64 = dma.done [#allocation7], 65536
    $region25: #{tpu_custom_call.1} parent=1 // pred_fallthru
      _
    // Predicated region
    $region26: #{tpu_custom_call.1} parent=1 // pred_check
      _
    $region27: #{tpu_custom_call.1} parent=1 // pred_check_branch
      %66 = sbr.rel (0) target = $region29
    $region28: #{tpu_custom_call.1} parent=1 // pred_region
      %67 = dma.done [#allocation7], 128
    $region29: #{tpu_custom_call.1} parent=1 // pred_fallthru
      _
    // Predicated region
    $region30: #{tpu_custom_call.1} parent=1 // pred_check
      _
    $region31: #{tpu_custom_call.1} parent=1 // pred_check_branch
      %69 = sbr.rel (0) target = $region33
    $region32: #{tpu_custom_call.1} parent=1 // pred_region
      %70 = dma.done [#allocation10], 8192
    $region33: #{tpu_custom_call.1} parent=1 // pred_fallthru
      _
    %p72 = scmp.eq.s32.totalorder 0, 0
    // Predicated region
    $region34: #{tpu_custom_call.1} parent=1 // pred_check
      %p73 = pneg %p72
    $region35: #{tpu_custom_call.1} parent=1 // pred_check_branch
      %75 = sbr.rel (%p73) target = $region37
    $region36: #{tpu_custom_call.1} parent=1 // pred_region
      %76 = vst [vmem:[#allocation2] sm:$0xff] 0.0
      %77 = vst [vmem:[#allocation2 + $0x8] sm:$0xff] 0.0
      %78 = vst [vmem:[#allocation2 + $0x10] sm:$0xff] 0.0
      %79 = vst [vmem:[#allocation2 + $0x18] sm:$0xff] 0.0
      %80 = vst [vmem:[#allocation2 + $0x20] sm:$0xff] 0.0
      %81 = vst [vmem:[#allocation2 + $0x28] sm:$0xff] 0.0
      %82 = vst [vmem:[#allocation2 + $0x30] sm:$0xff] 0.0
      %83 = vst [vmem:[#allocation2 + $0x38] sm:$0xff] 0.0
      %84 = vst [vmem:[#allocation2 + $0x40] sm:$0xff] 0.0
      %85 = vst [vmem:[#allocation2 + $0x48] sm:$0xff] 0.0
      %86 = vst [vmem:[#allocation2 + $0x50] sm:$0xff] 0.0
      %87 = vst [vmem:[#allocation2 + $0x58] sm:$0xff] 0.0
      %88 = vst [vmem:[#allocation2 + $0x60] sm:$0xff] 0.0
      %89 = vst [vmem:[#allocation2 + $0x68] sm:$0xff] 0.0
      %90 = vst [vmem:[#allocation2 + $0x70] sm:$0xff] 0.0
      %91 = vst [vmem:[#allocation2 + $0x78] sm:$0xff] 0.0
    $region37: #{tpu_custom_call.1} parent=1 // pred_fallthru
      _
    %v92 = vld [vmem:[#allocation2] sm:$0xff]
    %v93 = vld [vmem:[#allocation2 + $0x8] sm:$0xff]
    %v94 = vld [vmem:[#allocation2 + $0x10] sm:$0xff]
    %v95 = vld [vmem:[#allocation2 + $0x18] sm:$0xff]
    %v96 = vld [vmem:[#allocation2 + $0x20] sm:$0xff]
    %v97 = vld [vmem:[#allocation2 + $0x28] sm:$0xff]
    %v98 = vld [vmem:[#allocation2 + $0x30] sm:$0xff]
    %v99 = vld [vmem:[#allocation2 + $0x38] sm:$0xff]
    %v100 = vld [vmem:[#allocation2 + $0x40] sm:$0xff]
    %v101 = vld [vmem:[#allocation2 + $0x48] sm:$0xff]
    %v102 = vld [vmem:[#allocation2 + $0x50] sm:$0xff]
    %v103 = vld [vmem:[#allocation2 + $0x58] sm:$0xff]
    %v104 = vld [vmem:[#allocation2 + $0x60] sm:$0xff]
    %v105 = vld [vmem:[#allocation2 + $0x68] sm:$0xff]
    %v106 = vld [vmem:[#allocation2 + $0x70] sm:$0xff]
    %v107 = vld [vmem:[#allocation2 + $0x78] sm:$0xff]
    %v108 = vld [vmem:[#allocation3] sm:$0xff]
    %v109 = vld [vmem:[#allocation3 + $0x8] sm:$0xff]
    %v110 = vld [vmem:[#allocation3 + $0x10] sm:$0xff]
    %v111 = vld [vmem:[#allocation3 + $0x18] sm:$0xff]
    %v112 = vld [vmem:[#allocation3 + $0x20] sm:$0xff]
    %v113 = vld [vmem:[#allocation3 + $0x28] sm:$0xff]
    %v114 = vld [vmem:[#allocation3 + $0x30] sm:$0xff]
    %v115 = vld [vmem:[#allocation3 + $0x38] sm:$0xff]
    %v116 = vld [vmem:[#allocation6] sm:$0xff]
    %v117 = vld [vmem:[#allocation6 + $0x8] sm:$0xff]
    %v118 = vld [vmem:[#allocation6 + $0x10] sm:$0xff]
    %v119 = vld [vmem:[#allocation6 + $0x18] sm:$0xff]
    %v120 = vld [vmem:[#allocation6 + $0x20] sm:$0xff]
    %v121 = vld [vmem:[#allocation6 + $0x28] sm:$0xff]
    %v122 = vld [vmem:[#allocation6 + $0x30] sm:$0xff]
    %v123 = vld [vmem:[#allocation6 + $0x38] sm:$0xff]
    %v124 = vld [vmem:[#allocation6 + $0x40] sm:$0xff]
    %v125 = vld [vmem:[#allocation6 + $0x48] sm:$0xff]
    %v126 = vld [vmem:[#allocation6 + $0x50] sm:$0xff]
    %v127 = vld [vmem:[#allocation6 + $0x58] sm:$0xff]
    %v128 = vld [vmem:[#allocation6 + $0x60] sm:$0xff]
    %v129 = vld [vmem:[#allocation6 + $0x68] sm:$0xff]
    %v130 = vld [vmem:[#allocation6 + $0x70] sm:$0xff]
    %v131 = vld [vmem:[#allocation6 + $0x78] sm:$0xff]
    %v132 = vld [vmem:[#allocation6 + $0x80] sm:$0xff]
    %v133 = vld [vmem:[#allocation6 + $0x88] sm:$0xff]
    %v134 = vld [vmem:[#allocation6 + $0x90] sm:$0xff]
    %v135 = vld [vmem:[#allocation6 + $0x98] sm:$0xff]
    %v136 = vld [vmem:[#allocation6 + $0xa0] sm:$0xff]
    %v137 = vld [vmem:[#allocation6 + $0xa8] sm:$0xff]
    %v138 = vld [vmem:[#allocation6 + $0xb0] sm:$0xff]
    %v139 = vld [vmem:[#allocation6 + $0xb8] sm:$0xff]
    %v140 = vld [vmem:[#allocation6 + $0xc0] sm:$0xff]
    %v141 = vld [vmem:[#allocation6 + $0xc8] sm:$0xff]
    %v142 = vld [vmem:[#allocation6 + $0xd0] sm:$0xff]
    %v143 = vld [vmem:[#allocation6 + $0xd8] sm:$0xff]
    %v144 = vld [vmem:[#allocation6 + $0xe0] sm:$0xff]
    %v145 = vld [vmem:[#allocation6 + $0xe8] sm:$0xff]
    %v146 = vld [vmem:[#allocation6 + $0xf0] sm:$0xff]
    %v147 = vld [vmem:[#allocation6 + $0xf8] sm:$0xff]
    %v148 = vld [vmem:[#allocation6 + $0x100] sm:$0xff]
    %v149 = vld [vmem:[#allocation6 + $0x108] sm:$0xff]
    %v150 = vld [vmem:[#allocation6 + $0x110] sm:$0xff]
    %v151 = vld [vmem:[#allocation6 + $0x118] sm:$0xff]
    %v152 = vld [vmem:[#allocation6 + $0x120] sm:$0xff]
    %v153 = vld [vmem:[#allocation6 + $0x128] sm:$0xff]
    %v154 = vld [vmem:[#allocation6 + $0x130] sm:$0xff]
    %v155 = vld [vmem:[#allocation6 + $0x138] sm:$0xff]
    %v156 = vld [vmem:[#allocation6 + $0x140] sm:$0xff]
    %v157 = vld [vmem:[#allocation6 + $0x148] sm:$0xff]
    %v158 = vld [vmem:[#allocation6 + $0x150] sm:$0xff]
    %v159 = vld [vmem:[#allocation6 + $0x158] sm:$0xff]
    %v160 = vld [vmem:[#allocation6 + $0x160] sm:$0xff]
    %v161 = vld [vmem:[#allocation6 + $0x168] sm:$0xff]
    %v162 = vld [vmem:[#allocation6 + $0x170] sm:$0xff]
    %v163 = vld [vmem:[#allocation6 + $0x178] sm:$0xff]
    %v164 = vld [vmem:[#allocation6 + $0x180] sm:$0xff]
    %v165 = vld [vmem:[#allocation6 + $0x188] sm:$0xff]
    %v166 = vld [vmem:[#allocation6 + $0x190] sm:$0xff]
    %v167 = vld [vmem:[#allocation6 + $0x198] sm:$0xff]
    %v168 = vld [vmem:[#allocation6 + $0x1a0] sm:$0xff]
    %v169 = vld [vmem:[#allocation6 + $0x1a8] sm:$0xff]
    %v170 = vld [vmem:[#allocation6 + $0x1b0] sm:$0xff]
    %v171 = vld [vmem:[#allocation6 + $0x1b8] sm:$0xff]
    %v172 = vld [vmem:[#allocation6 + $0x1c0] sm:$0xff]
    %v173 = vld [vmem:[#allocation6 + $0x1c8] sm:$0xff]
    %v174 = vld [vmem:[#allocation6 + $0x1d0] sm:$0xff]
    %v175 = vld [vmem:[#allocation6 + $0x1d8] sm:$0xff]
    %v176 = vld [vmem:[#allocation6 + $0x1e0] sm:$0xff]
    %v177 = vld [vmem:[#allocation6 + $0x1e8] sm:$0xff]
    %v178 = vld [vmem:[#allocation6 + $0x1f0] sm:$0xff]
    %v179 = vld [vmem:[#allocation6 + $0x1f8] sm:$0xff]
    %v180 = vld [vmem:[#allocation6 + $0x200] sm:$0xff]
    %v181 = vld [vmem:[#allocation6 + $0x208] sm:$0xff]
    %v182 = vld [vmem:[#allocation6 + $0x210] sm:$0xff]
    %v183 = vld [vmem:[#allocation6 + $0x218] sm:$0xff]
    %v184 = vld [vmem:[#allocation6 + $0x220] sm:$0xff]
    %v185 = vld [vmem:[#allocation6 + $0x228] sm:$0xff]
    %v186 = vld [vmem:[#allocation6 + $0x230] sm:$0xff]
    %v187 = vld [vmem:[#allocation6 + $0x238] sm:$0xff]
    %v188 = vld [vmem:[#allocation6 + $0x240] sm:$0xff]
    %v189 = vld [vmem:[#allocation6 + $0x248] sm:$0xff]
    %v190 = vld [vmem:[#allocation6 + $0x250] sm:$0xff]
    %v191 = vld [vmem:[#allocation6 + $0x258] sm:$0xff]
    %v192 = vld [vmem:[#allocation6 + $0x260] sm:$0xff]
    %v193 = vld [vmem:[#allocation6 + $0x268] sm:$0xff]
    %v194 = vld [vmem:[#allocation6 + $0x270] sm:$0xff]
    %v195 = vld [vmem:[#allocation6 + $0x278] sm:$0xff]
    %v196 = vld [vmem:[#allocation6 + $0x280] sm:$0xff]
    %v197 = vld [vmem:[#allocation6 + $0x288] sm:$0xff]
    %v198 = vld [vmem:[#allocation6 + $0x290] sm:$0xff]
    %v199 = vld [vmem:[#allocation6 + $0x298] sm:$0xff]
    %v200 = vld [vmem:[#allocation6 + $0x2a0] sm:$0xff]
    %v201 = vld [vmem:[#allocation6 + $0x2a8] sm:$0xff]
    %v202 = vld [vmem:[#allocation6 + $0x2b0] sm:$0xff]
    %v203 = vld [vmem:[#allocation6 + $0x2b8] sm:$0xff]
    %v204 = vld [vmem:[#allocation6 + $0x2c0] sm:$0xff]
    %v205 = vld [vmem:[#allocation6 + $0x2c8] sm:$0xff]
    %v206 = vld [vmem:[#allocation6 + $0x2d0] sm:$0xff]
    %v207 = vld [vmem:[#allocation6 + $0x2d8] sm:$0xff]
    %v208 = vld [vmem:[#allocation6 + $0x2e0] sm:$0xff]
    %v209 = vld [vmem:[#allocation6 + $0x2e8] sm:$0xff]
    %v210 = vld [vmem:[#allocation6 + $0x2f0] sm:$0xff]
    %v211 = vld [vmem:[#allocation6 + $0x2f8] sm:$0xff]
    %v212 = vld [vmem:[#allocation6 + $0x300] sm:$0xff]
    %v213 = vld [vmem:[#allocation6 + $0x308] sm:$0xff]
    %v214 = vld [vmem:[#allocation6 + $0x310] sm:$0xff]
    %v215 = vld [vmem:[#allocation6 + $0x318] sm:$0xff]
    %v216 = vld [vmem:[#allocation6 + $0x320] sm:$0xff]
    %v217 = vld [vmem:[#allocation6 + $0x328] sm:$0xff]
    %v218 = vld [vmem:[#allocation6 + $0x330] sm:$0xff]
    %v219 = vld [vmem:[#allocation6 + $0x338] sm:$0xff]
    %v220 = vld [vmem:[#allocation6 + $0x340] sm:$0xff]
    %v221 = vld [vmem:[#allocation6 + $0x348] sm:$0xff]
    %v222 = vld [vmem:[#allocation6 + $0x350] sm:$0xff]
    %v223 = vld [vmem:[#allocation6 + $0x358] sm:$0xff]
    %v224 = vld [vmem:[#allocation6 + $0x360] sm:$0xff]
    %v225 = vld [vmem:[#allocation6 + $0x368] sm:$0xff]
    %v226 = vld [vmem:[#allocation6 + $0x370] sm:$0xff]
    %v227 = vld [vmem:[#allocation6 + $0x378] sm:$0xff]
    %v228 = vld [vmem:[#allocation6 + $0x380] sm:$0xff]
    %v229 = vld [vmem:[#allocation6 + $0x388] sm:$0xff]
    %v230 = vld [vmem:[#allocation6 + $0x390] sm:$0xff]
    %v231 = vld [vmem:[#allocation6 + $0x398] sm:$0xff]
    %v232 = vld [vmem:[#allocation6 + $0x3a0] sm:$0xff]
    %v233 = vld [vmem:[#allocation6 + $0x3a8] sm:$0xff]
    %v234 = vld [vmem:[#allocation6 + $0x3b0] sm:$0xff]
    %v235 = vld [vmem:[#allocation6 + $0x3b8] sm:$0xff]
    %v236 = vld [vmem:[#allocation6 + $0x3c0] sm:$0xff]
    %v237 = vld [vmem:[#allocation6 + $0x3c8] sm:$0xff]
    %v238 = vld [vmem:[#allocation6 + $0x3d0] sm:$0xff]
    %v239 = vld [vmem:[#allocation6 + $0x3d8] sm:$0xff]
    %v240 = vld [vmem:[#allocation6 + $0x3e0] sm:$0xff]
    %v241 = vld [vmem:[#allocation6 + $0x3e8] sm:$0xff]
    %v242 = vld [vmem:[#allocation6 + $0x3f0] sm:$0xff]
    %v243 = vld [vmem:[#allocation6 + $0x3f8] sm:$0xff]
    %v244 = vld [vmem:[#allocation6 + $0x400] sm:$0xff]
    %v245 = vld [vmem:[#allocation6 + $0x408] sm:$0xff]
    %v246 = vld [vmem:[#allocation6 + $0x410] sm:$0xff]
    %v247 = vld [vmem:[#allocation6 + $0x418] sm:$0xff]
    %v248 = vld [vmem:[#allocation6 + $0x420] sm:$0xff]
    %v249 = vld [vmem:[#allocation6 + $0x428] sm:$0xff]
    %v250 = vld [vmem:[#allocation6 + $0x430] sm:$0xff]
    %v251 = vld [vmem:[#allocation6 + $0x438] sm:$0xff]
    %v252 = vld [vmem:[#allocation6 + $0x440] sm:$0xff]
    %v253 = vld [vmem:[#allocation6 + $0x448] sm:$0xff]
    %v254 = vld [vmem:[#allocation6 + $0x450] sm:$0xff]
    %v255 = vld [vmem:[#allocation6 + $0x458] sm:$0xff]
    %v256 = vld [vmem:[#allocation6 + $0x460] sm:$0xff]
    %v257 = vld [vmem:[#allocation6 + $0x468] sm:$0xff]
    %v258 = vld [vmem:[#allocation6 + $0x470] sm:$0xff]
    %v259 = vld [vmem:[#allocation6 + $0x478] sm:$0xff]
    %v260 = vld [vmem:[#allocation6 + $0x480] sm:$0xff]
    %v261 = vld [vmem:[#allocation6 + $0x488] sm:$0xff]
    %v262 = vld [vmem:[#allocation6 + $0x490] sm:$0xff]
    %v263 = vld [vmem:[#allocation6 + $0x498] sm:$0xff]
    %v264 = vld [vmem:[#allocation6 + $0x4a0] sm:$0xff]
    %v265 = vld [vmem:[#allocation6 + $0x4a8] sm:$0xff]
    %v266 = vld [vmem:[#allocation6 + $0x4b0] sm:$0xff]
    %v267 = vld [vmem:[#allocation6 + $0x4b8] sm:$0xff]
    %v268 = vld [vmem:[#allocation6 + $0x4c0] sm:$0xff]
    %v269 = vld [vmem:[#allocation6 + $0x4c8] sm:$0xff]
    %v270 = vld [vmem:[#allocation6 + $0x4d0] sm:$0xff]
    %v271 = vld [vmem:[#allocation6 + $0x4d8] sm:$0xff]
    %v272 = vld [vmem:[#allocation6 + $0x4e0] sm:$0xff]
    %v273 = vld [vmem:[#allocation6 + $0x4e8] sm:$0xff]
    %v274 = vld [vmem:[#allocation6 + $0x4f0] sm:$0xff]
    %v275 = vld [vmem:[#allocation6 + $0x4f8] sm:$0xff]
    %v276 = vld [vmem:[#allocation6 + $0x500] sm:$0xff]
    %v277 = vld [vmem:[#allocation6 + $0x508] sm:$0xff]
    %v278 = vld [vmem:[#allocation6 + $0x510] sm:$0xff]
    %v279 = vld [vmem:[#allocation6 + $0x518] sm:$0xff]
    %v280 = vld [vmem:[#allocation6 + $0x520] sm:$0xff]
    %v281 = vld [vmem:[#allocation6 + $0x528] sm:$0xff]
    %v282 = vld [vmem:[#allocation6 + $0x530] sm:$0xff]
    %v283 = vld [vmem:[#allocation6 + $0x538] sm:$0xff]
    %v284 = vld [vmem:[#allocation6 + $0x540] sm:$0xff]
    %v285 = vld [vmem:[#allocation6 + $0x548] sm:$0xff]
    %v286 = vld [vmem:[#allocation6 + $0x550] sm:$0xff]
    %v287 = vld [vmem:[#allocation6 + $0x558] sm:$0xff]
    %v288 = vld [vmem:[#allocation6 + $0x560] sm:$0xff]
    %v289 = vld [vmem:[#allocation6 + $0x568] sm:$0xff]
    %v290 = vld [vmem:[#allocation6 + $0x570] sm:$0xff]
    %v291 = vld [vmem:[#allocation6 + $0x578] sm:$0xff]
    %v292 = vld [vmem:[#allocation6 + $0x580] sm:$0xff]
    %v293 = vld [vmem:[#allocation6 + $0x588] sm:$0xff]
    %v294 = vld [vmem:[#allocation6 + $0x590] sm:$0xff]
    %v295 = vld [vmem:[#allocation6 + $0x598] sm:$0xff]
    %v296 = vld [vmem:[#allocation6 + $0x5a0] sm:$0xff]
    %v297 = vld [vmem:[#allocation6 + $0x5a8] sm:$0xff]
    %v298 = vld [vmem:[#allocation6 + $0x5b0] sm:$0xff]
    %v299 = vld [vmem:[#allocation6 + $0x5b8] sm:$0xff]
    %v300 = vld [vmem:[#allocation6 + $0x5c0] sm:$0xff]
    %v301 = vld [vmem:[#allocation6 + $0x5c8] sm:$0xff]
    %v302 = vld [vmem:[#allocation6 + $0x5d0] sm:$0xff]
    %v303 = vld [vmem:[#allocation6 + $0x5d8] sm:$0xff]
    %v304 = vld [vmem:[#allocation6 + $0x5e0] sm:$0xff]
    %v305 = vld [vmem:[#allocation6 + $0x5e8] sm:$0xff]
    %v306 = vld [vmem:[#allocation6 + $0x5f0] sm:$0xff]
    %v307 = vld [vmem:[#allocation6 + $0x5f8] sm:$0xff]
    %v308 = vld [vmem:[#allocation6 + $0x600] sm:$0xff]
    %v309 = vld [vmem:[#allocation6 + $0x608] sm:$0xff]
    %v310 = vld [vmem:[#allocation6 + $0x610] sm:$0xff]
    %v311 = vld [vmem:[#allocation6 + $0x618] sm:$0xff]
    %v312 = vld [vmem:[#allocation6 + $0x620] sm:$0xff]
    %v313 = vld [vmem:[#allocation6 + $0x628] sm:$0xff]
    %v314 = vld [vmem:[#allocation6 + $0x630] sm:$0xff]
    %v315 = vld [vmem:[#allocation6 + $0x638] sm:$0xff]
    %v316 = vld [vmem:[#allocation6 + $0x640] sm:$0xff]
    %v317 = vld [vmem:[#allocation6 + $0x648] sm:$0xff]
    %v318 = vld [vmem:[#allocation6 + $0x650] sm:$0xff]
    %v319 = vld [vmem:[#allocation6 + $0x658] sm:$0xff]
    %v320 = vld [vmem:[#allocation6 + $0x660] sm:$0xff]
    %v321 = vld [vmem:[#allocation6 + $0x668] sm:$0xff]
    %v322 = vld [vmem:[#allocation6 + $0x670] sm:$0xff]
    %v323 = vld [vmem:[#allocation6 + $0x678] sm:$0xff]
    %v324 = vld [vmem:[#allocation6 + $0x680] sm:$0xff]
    %v325 = vld [vmem:[#allocation6 + $0x688] sm:$0xff]
    %v326 = vld [vmem:[#allocation6 + $0x690] sm:$0xff]
    %v327 = vld [vmem:[#allocation6 + $0x698] sm:$0xff]
    %v328 = vld [vmem:[#allocation6 + $0x6a0] sm:$0xff]
    %v329 = vld [vmem:[#allocation6 + $0x6a8] sm:$0xff]
    %v330 = vld [vmem:[#allocation6 + $0x6b0] sm:$0xff]
    %v331 = vld [vmem:[#allocation6 + $0x6b8] sm:$0xff]
    %v332 = vld [vmem:[#allocation6 + $0x6c0] sm:$0xff]
    %v333 = vld [vmem:[#allocation6 + $0x6c8] sm:$0xff]
    %v334 = vld [vmem:[#allocation6 + $0x6d0] sm:$0xff]
    %v335 = vld [vmem:[#allocation6 + $0x6d8] sm:$0xff]
    %v336 = vld [vmem:[#allocation6 + $0x6e0] sm:$0xff]
    %v337 = vld [vmem:[#allocation6 + $0x6e8] sm:$0xff]
    %v338 = vld [vmem:[#allocation6 + $0x6f0] sm:$0xff]
    %v339 = vld [vmem:[#allocation6 + $0x6f8] sm:$0xff]
    %v340 = vld [vmem:[#allocation6 + $0x700] sm:$0xff]
    %v341 = vld [vmem:[#allocation6 + $0x708] sm:$0xff]
    %v342 = vld [vmem:[#allocation6 + $0x710] sm:$0xff]
    %v343 = vld [vmem:[#allocation6 + $0x718] sm:$0xff]
    %v344 = vld [vmem:[#allocation6 + $0x720] sm:$0xff]
    %v345 = vld [vmem:[#allocation6 + $0x728] sm:$0xff]
    %v346 = vld [vmem:[#allocation6 + $0x730] sm:$0xff]
    %v347 = vld [vmem:[#allocation6 + $0x738] sm:$0xff]
    %v348 = vld [vmem:[#allocation6 + $0x740] sm:$0xff]
    %v349 = vld [vmem:[#allocation6 + $0x748] sm:$0xff]
    %v350 = vld [vmem:[#allocation6 + $0x750] sm:$0xff]
    %v351 = vld [vmem:[#allocation6 + $0x758] sm:$0xff]
    %v352 = vld [vmem:[#allocation6 + $0x760] sm:$0xff]
    %v353 = vld [vmem:[#allocation6 + $0x768] sm:$0xff]
    %v354 = vld [vmem:[#allocation6 + $0x770] sm:$0xff]
    %v355 = vld [vmem:[#allocation6 + $0x778] sm:$0xff]
    %v356 = vld [vmem:[#allocation6 + $0x780] sm:$0xff]
    %v357 = vld [vmem:[#allocation6 + $0x788] sm:$0xff]
    %v358 = vld [vmem:[#allocation6 + $0x790] sm:$0xff]
    %v359 = vld [vmem:[#allocation6 + $0x798] sm:$0xff]
    %v360 = vld [vmem:[#allocation6 + $0x7a0] sm:$0xff]
    %v361 = vld [vmem:[#allocation6 + $0x7a8] sm:$0xff]
    %v362 = vld [vmem:[#allocation6 + $0x7b0] sm:$0xff]
    %v363 = vld [vmem:[#allocation6 + $0x7b8] sm:$0xff]
    %v364 = vld [vmem:[#allocation6 + $0x7c0] sm:$0xff]
    %v365 = vld [vmem:[#allocation6 + $0x7c8] sm:$0xff]
    %v366 = vld [vmem:[#allocation6 + $0x7d0] sm:$0xff]
    %v367 = vld [vmem:[#allocation6 + $0x7d8] sm:$0xff]
    %v368 = vld [vmem:[#allocation6 + $0x7e0] sm:$0xff]
    %v369 = vld [vmem:[#allocation6 + $0x7e8] sm:$0xff]
    %v370 = vld [vmem:[#allocation6 + $0x7f0] sm:$0xff]
    %v371 = vld [vmem:[#allocation6 + $0x7f8] sm:$0xff]
    %v372 = vld [vmem:[#allocation6 + $0x800] sm:$0xff]
    %v373 = vld [vmem:[#allocation6 + $0x808] sm:$0xff]
    %v374 = vld [vmem:[#allocation6 + $0x810] sm:$0xff]
    %v375 = vld [vmem:[#allocation6 + $0x818] sm:$0xff]
    %v376 = vld [vmem:[#allocation6 + $0x820] sm:$0xff]
    %v377 = vld [vmem:[#allocation6 + $0x828] sm:$0xff]
    %v378 = vld [vmem:[#allocation6 + $0x830] sm:$0xff]
    %v379 = vld [vmem:[#allocation6 + $0x838] sm:$0xff]
    %v380 = vld [vmem:[#allocation6 + $0x840] sm:$0xff]
    %v381 = vld [vmem:[#allocation6 + $0x848] sm:$0xff]
    %v382 = vld [vmem:[#allocation6 + $0x850] sm:$0xff]
    %v383 = vld [vmem:[#allocation6 + $0x858] sm:$0xff]
    %v384 = vld [vmem:[#allocation6 + $0x860] sm:$0xff]
    %v385 = vld [vmem:[#allocation6 + $0x868] sm:$0xff]
    %v386 = vld [vmem:[#allocation6 + $0x870] sm:$0xff]
    %v387 = vld [vmem:[#allocation6 + $0x878] sm:$0xff]
    %v388 = vld [vmem:[#allocation6 + $0x880] sm:$0xff]
    %v389 = vld [vmem:[#allocation6 + $0x888] sm:$0xff]
    %v390 = vld [vmem:[#allocation6 + $0x890] sm:$0xff]
    %v391 = vld [vmem:[#allocation6 + $0x898] sm:$0xff]
    %v392 = vld [vmem:[#allocation6 + $0x8a0] sm:$0xff]
    %v393 = vld [vmem:[#allocation6 + $0x8a8] sm:$0xff]
    %v394 = vld [vmem:[#allocation6 + $0x8b0] sm:$0xff]
    %v395 = vld [vmem:[#allocation6 + $0x8b8] sm:$0xff]
    %v396 = vld [vmem:[#allocation6 + $0x8c0] sm:$0xff]
    %v397 = vld [vmem:[#allocation6 + $0x8c8] sm:$0xff]
    %v398 = vld [vmem:[#allocation6 + $0x8d0] sm:$0xff]
    %v399 = vld [vmem:[#allocation6 + $0x8d8] sm:$0xff]
    %v400 = vld [vmem:[#allocation6 + $0x8e0] sm:$0xff]
    %v401 = vld [vmem:[#allocation6 + $0x8e8] sm:$0xff]
    %v402 = vld [vmem:[#allocation6 + $0x8f0] sm:$0xff]
    %v403 = vld [vmem:[#allocation6 + $0x8f8] sm:$0xff]
    %v404 = vld [vmem:[#allocation6 + $0x900] sm:$0xff]
    %v405 = vld [vmem:[#allocation6 + $0x908] sm:$0xff]
    %v406 = vld [vmem:[#allocation6 + $0x910] sm:$0xff]
    %v407 = vld [vmem:[#allocation6 + $0x918] sm:$0xff]
    %v408 = vld [vmem:[#allocation6 + $0x920] sm:$0xff]
    %v409 = vld [vmem:[#allocation6 + $0x928] sm:$0xff]
    %v410 = vld [vmem:[#allocation6 + $0x930] sm:$0xff]
    %v411 = vld [vmem:[#allocation6 + $0x938] sm:$0xff]
    %v412 = vld [vmem:[#allocation6 + $0x940] sm:$0xff]
    %v413 = vld [vmem:[#allocation6 + $0x948] sm:$0xff]
    %v414 = vld [vmem:[#allocation6 + $0x950] sm:$0xff]
    %v415 = vld [vmem:[#allocation6 + $0x958] sm:$0xff]
    %v416 = vld [vmem:[#allocation6 + $0x960] sm:$0xff]
    %v417 = vld [vmem:[#allocation6 + $0x968] sm:$0xff]
    %v418 = vld [vmem:[#allocation6 + $0x970] sm:$0xff]
    %v419 = vld [vmem:[#allocation6 + $0x978] sm:$0xff]
    %v420 = vld [vmem:[#allocation6 + $0x980] sm:$0xff]
    %v421 = vld [vmem:[#allocation6 + $0x988] sm:$0xff]
    %v422 = vld [vmem:[#allocation6 + $0x990] sm:$0xff]
    %v423 = vld [vmem:[#allocation6 + $0x998] sm:$0xff]
    %v424 = vld [vmem:[#allocation6 + $0x9a0] sm:$0xff]
    %v425 = vld [vmem:[#allocation6 + $0x9a8] sm:$0xff]
    %v426 = vld [vmem:[#allocation6 + $0x9b0] sm:$0xff]
    %v427 = vld [vmem:[#allocation6 + $0x9b8] sm:$0xff]
    %v428 = vld [vmem:[#allocation6 + $0x9c0] sm:$0xff]
    %v429 = vld [vmem:[#allocation6 + $0x9c8] sm:$0xff]
    %v430 = vld [vmem:[#allocation6 + $0x9d0] sm:$0xff]
    %v431 = vld [vmem:[#allocation6 + $0x9d8] sm:$0xff]
    %v432 = vld [vmem:[#allocation6 + $0x9e0] sm:$0xff]
    %v433 = vld [vmem:[#allocation6 + $0x9e8] sm:$0xff]
    %v434 = vld [vmem:[#allocation6 + $0x9f0] sm:$0xff]
    %v435 = vld [vmem:[#allocation6 + $0x9f8] sm:$0xff]
    %v436 = vld [vmem:[#allocation6 + $0xa00] sm:$0xff]
    %v437 = vld [vmem:[#allocation6 + $0xa08] sm:$0xff]
    %v438 = vld [vmem:[#allocation6 + $0xa10] sm:$0xff]
    %v439 = vld [vmem:[#allocation6 + $0xa18] sm:$0xff]
    %v440 = vld [vmem:[#allocation6 + $0xa20] sm:$0xff]
    %v441 = vld [vmem:[#allocation6 + $0xa28] sm:$0xff]
    %v442 = vld [vmem:[#allocation6 + $0xa30] sm:$0xff]
    %v443 = vld [vmem:[#allocation6 + $0xa38] sm:$0xff]
    %v444 = vld [vmem:[#allocation6 + $0xa40] sm:$0xff]
    %v445 = vld [vmem:[#allocation6 + $0xa48] sm:$0xff]
    %v446 = vld [vmem:[#allocation6 + $0xa50] sm:$0xff]
    %v447 = vld [vmem:[#allocation6 + $0xa58] sm:$0xff]
    %v448 = vld [vmem:[#allocation6 + $0xa60] sm:$0xff]
    %v449 = vld [vmem:[#allocation6 + $0xa68] sm:$0xff]
    %v450 = vld [vmem:[#allocation6 + $0xa70] sm:$0xff]
    %v451 = vld [vmem:[#allocation6 + $0xa78] sm:$0xff]
    %v452 = vld [vmem:[#allocation6 + $0xa80] sm:$0xff]
    %v453 = vld [vmem:[#allocation6 + $0xa88] sm:$0xff]
    %v454 = vld [vmem:[#allocation6 + $0xa90] sm:$0xff]
    %v455 = vld [vmem:[#allocation6 + $0xa98] sm:$0xff]
    %v456 = vld [vmem:[#allocation6 + $0xaa0] sm:$0xff]
    %v457 = vld [vmem:[#allocation6 + $0xaa8] sm:$0xff]
    %v458 = vld [vmem:[#allocation6 + $0xab0] sm:$0xff]
    %v459 = vld [vmem:[#allocation6 + $0xab8] sm:$0xff]
    %v460 = vld [vmem:[#allocation6 + $0xac0] sm:$0xff]
    %v461 = vld [vmem:[#allocation6 + $0xac8] sm:$0xff]
    %v462 = vld [vmem:[#allocation6 + $0xad0] sm:$0xff]
    %v463 = vld [vmem:[#allocation6 + $0xad8] sm:$0xff]
    %v464 = vld [vmem:[#allocation6 + $0xae0] sm:$0xff]
    %v465 = vld [vmem:[#allocation6 + $0xae8] sm:$0xff]
    %v466 = vld [vmem:[#allocation6 + $0xaf0] sm:$0xff]
    %v467 = vld [vmem:[#allocation6 + $0xaf8] sm:$0xff]
    %v468 = vld [vmem:[#allocation6 + $0xb00] sm:$0xff]
    %v469 = vld [vmem:[#allocation6 + $0xb08] sm:$0xff]
    %v470 = vld [vmem:[#allocation6 + $0xb10] sm:$0xff]
    %v471 = vld [vmem:[#allocation6 + $0xb18] sm:$0xff]
    %v472 = vld [vmem:[#allocation6 + $0xb20] sm:$0xff]
    %v473 = vld [vmem:[#allocation6 + $0xb28] sm:$0xff]
    %v474 = vld [vmem:[#allocation6 + $0xb30] sm:$0xff]
    %v475 = vld [vmem:[#allocation6 + $0xb38] sm:$0xff]
    %v476 = vld [vmem:[#allocation6 + $0xb40] sm:$0xff]
    %v477 = vld [vmem:[#allocation6 + $0xb48] sm:$0xff]
    %v478 = vld [vmem:[#allocation6 + $0xb50] sm:$0xff]
    %v479 = vld [vmem:[#allocation6 + $0xb58] sm:$0xff]
    %v480 = vld [vmem:[#allocation6 + $0xb60] sm:$0xff]
    %v481 = vld [vmem:[#allocation6 + $0xb68] sm:$0xff]
    %v482 = vld [vmem:[#allocation6 + $0xb70] sm:$0xff]
    %v483 = vld [vmem:[#allocation6 + $0xb78] sm:$0xff]
    %v484 = vld [vmem:[#allocation6 + $0xb80] sm:$0xff]
    %v485 = vld [vmem:[#allocation6 + $0xb88] sm:$0xff]
    %v486 = vld [vmem:[#allocation6 + $0xb90] sm:$0xff]
    %v487 = vld [vmem:[#allocation6 + $0xb98] sm:$0xff]
    %v488 = vld [vmem:[#allocation6 + $0xba0] sm:$0xff]
    %v489 = vld [vmem:[#allocation6 + $0xba8] sm:$0xff]
    %v490 = vld [vmem:[#allocation6 + $0xbb0] sm:$0xff]
    %v491 = vld [vmem:[#allocation6 + $0xbb8] sm:$0xff]
    %v492 = vld [vmem:[#allocation6 + $0xbc0] sm:$0xff]
    %v493 = vld [vmem:[#allocation6 + $0xbc8] sm:$0xff]
    %v494 = vld [vmem:[#allocation6 + $0xbd0] sm:$0xff]
    %v495 = vld [vmem:[#allocation6 + $0xbd8] sm:$0xff]
    %v496 = vld [vmem:[#allocation6 + $0xbe0] sm:$0xff]
    %v497 = vld [vmem:[#allocation6 + $0xbe8] sm:$0xff]
    %v498 = vld [vmem:[#allocation6 + $0xbf0] sm:$0xff]
    %v499 = vld [vmem:[#allocation6 + $0xbf8] sm:$0xff]
    %v500 = vld [vmem:[#allocation6 + $0xc00] sm:$0xff]
    %v501 = vld [vmem:[#allocation6 + $0xc08] sm:$0xff]
    %v502 = vld [vmem:[#allocation6 + $0xc10] sm:$0xff]
    %v503 = vld [vmem:[#allocation6 + $0xc18] sm:$0xff]
    %v504 = vld [vmem:[#allocation6 + $0xc20] sm:$0xff]
    %v505 = vld [vmem:[#allocation6 + $0xc28] sm:$0xff]
    %v506 = vld [vmem:[#allocation6 + $0xc30] sm:$0xff]
    %v507 = vld [vmem:[#allocation6 + $0xc38] sm:$0xff]
    %v508 = vld [vmem:[#allocation6 + $0xc40] sm:$0xff]
    %v509 = vld [vmem:[#allocation6 + $0xc48] sm:$0xff]
    %v510 = vld [vmem:[#allocation6 + $0xc50] sm:$0xff]
    %v511 = vld [vmem:[#allocation6 + $0xc58] sm:$0xff]
    %v512 = vld [vmem:[#allocation6 + $0xc60] sm:$0xff]
    %v513 = vld [vmem:[#allocation6 + $0xc68] sm:$0xff]
    %v514 = vld [vmem:[#allocation6 + $0xc70] sm:$0xff]
    %v515 = vld [vmem:[#allocation6 + $0xc78] sm:$0xff]
    %v516 = vld [vmem:[#allocation6 + $0xc80] sm:$0xff]
    %v517 = vld [vmem:[#allocation6 + $0xc88] sm:$0xff]
    %v518 = vld [vmem:[#allocation6 + $0xc90] sm:$0xff]
    %v519 = vld [vmem:[#allocation6 + $0xc98] sm:$0xff]
    %v520 = vld [vmem:[#allocation6 + $0xca0] sm:$0xff]
    %v521 = vld [vmem:[#allocation6 + $0xca8] sm:$0xff]
    %v522 = vld [vmem:[#allocation6 + $0xcb0] sm:$0xff]
    %v523 = vld [vmem:[#allocation6 + $0xcb8] sm:$0xff]
    %v524 = vld [vmem:[#allocation6 + $0xcc0] sm:$0xff]
    %v525 = vld [vmem:[#allocation6 + $0xcc8] sm:$0xff]
    %v526 = vld [vmem:[#allocation6 + $0xcd0] sm:$0xff]
    %v527 = vld [vmem:[#allocation6 + $0xcd8] sm:$0xff]
    %v528 = vld [vmem:[#allocation6 + $0xce0] sm:$0xff]
    %v529 = vld [vmem:[#allocation6 + $0xce8] sm:$0xff]
    %v530 = vld [vmem:[#allocation6 + $0xcf0] sm:$0xff]
    %v531 = vld [vmem:[#allocation6 + $0xcf8] sm:$0xff]
    %v532 = vld [vmem:[#allocation6 + $0xd00] sm:$0xff]
    %v533 = vld [vmem:[#allocation6 + $0xd08] sm:$0xff]
    %v534 = vld [vmem:[#allocation6 + $0xd10] sm:$0xff]
    %v535 = vld [vmem:[#allocation6 + $0xd18] sm:$0xff]
    %v536 = vld [vmem:[#allocation6 + $0xd20] sm:$0xff]
    %v537 = vld [vmem:[#allocation6 + $0xd28] sm:$0xff]
    %v538 = vld [vmem:[#allocation6 + $0xd30] sm:$0xff]
    %v539 = vld [vmem:[#allocation6 + $0xd38] sm:$0xff]
    %v540 = vld [vmem:[#allocation6 + $0xd40] sm:$0xff]
    %v541 = vld [vmem:[#allocation6 + $0xd48] sm:$0xff]
    %v542 = vld [vmem:[#allocation6 + $0xd50] sm:$0xff]
    %v543 = vld [vmem:[#allocation6 + $0xd58] sm:$0xff]
    %v544 = vld [vmem:[#allocation6 + $0xd60] sm:$0xff]
    %v545 = vld [vmem:[#allocation6 + $0xd68] sm:$0xff]
    %v546 = vld [vmem:[#allocation6 + $0xd70] sm:$0xff]
    %v547 = vld [vmem:[#allocation6 + $0xd78] sm:$0xff]
    %v548 = vld [vmem:[#allocation6 + $0xd80] sm:$0xff]
    %v549 = vld [vmem:[#allocation6 + $0xd88] sm:$0xff]
    %v550 = vld [vmem:[#allocation6 + $0xd90] sm:$0xff]
    %v551 = vld [vmem:[#allocation6 + $0xd98] sm:$0xff]
    %v552 = vld [vmem:[#allocation6 + $0xda0] sm:$0xff]
    %v553 = vld [vmem:[#allocation6 + $0xda8] sm:$0xff]
    %v554 = vld [vmem:[#allocation6 + $0xdb0] sm:$0xff]
    %v555 = vld [vmem:[#allocation6 + $0xdb8] sm:$0xff]
    %v556 = vld [vmem:[#allocation6 + $0xdc0] sm:$0xff]
    %v557 = vld [vmem:[#allocation6 + $0xdc8] sm:$0xff]
    %v558 = vld [vmem:[#allocation6 + $0xdd0] sm:$0xff]
    %v559 = vld [vmem:[#allocation6 + $0xdd8] sm:$0xff]
    %v560 = vld [vmem:[#allocation6 + $0xde0] sm:$0xff]
    %v561 = vld [vmem:[#allocation6 + $0xde8] sm:$0xff]
    %v562 = vld [vmem:[#allocation6 + $0xdf0] sm:$0xff]
    %v563 = vld [vmem:[#allocation6 + $0xdf8] sm:$0xff]
    %v564 = vld [vmem:[#allocation6 + $0xe00] sm:$0xff]
    %v565 = vld [vmem:[#allocation6 + $0xe08] sm:$0xff]
    %v566 = vld [vmem:[#allocation6 + $0xe10] sm:$0xff]
    %v567 = vld [vmem:[#allocation6 + $0xe18] sm:$0xff]
    %v568 = vld [vmem:[#allocation6 + $0xe20] sm:$0xff]
    %v569 = vld [vmem:[#allocation6 + $0xe28] sm:$0xff]
    %v570 = vld [vmem:[#allocation6 + $0xe30] sm:$0xff]
    %v571 = vld [vmem:[#allocation6 + $0xe38] sm:$0xff]
    %v572 = vld [vmem:[#allocation6 + $0xe40] sm:$0xff]
    %v573 = vld [vmem:[#allocation6 + $0xe48] sm:$0xff]
    %v574 = vld [vmem:[#allocation6 + $0xe50] sm:$0xff]
    %v575 = vld [vmem:[#allocation6 + $0xe58] sm:$0xff]
    %v576 = vld [vmem:[#allocation6 + $0xe60] sm:$0xff]
    %v577 = vld [vmem:[#allocation6 + $0xe68] sm:$0xff]
    %v578 = vld [vmem:[#allocation6 + $0xe70] sm:$0xff]
    %v579 = vld [vmem:[#allocation6 + $0xe78] sm:$0xff]
    %v580 = vld [vmem:[#allocation6 + $0xe80] sm:$0xff]
    %v581 = vld [vmem:[#allocation6 + $0xe88] sm:$0xff]
    %v582 = vld [vmem:[#allocation6 + $0xe90] sm:$0xff]
    %v583 = vld [vmem:[#allocation6 + $0xe98] sm:$0xff]
    %v584 = vld [vmem:[#allocation6 + $0xea0] sm:$0xff]
    %v585 = vld [vmem:[#allocation6 + $0xea8] sm:$0xff]
    %v586 = vld [vmem:[#allocation6 + $0xeb0] sm:$0xff]
    %v587 = vld [vmem:[#allocation6 + $0xeb8] sm:$0xff]
    %v588 = vld [vmem:[#allocation6 + $0xec0] sm:$0xff]
    %v589 = vld [vmem:[#allocation6 + $0xec8] sm:$0xff]
    %v590 = vld [vmem:[#allocation6 + $0xed0] sm:$0xff]
    %v591 = vld [vmem:[#allocation6 + $0xed8] sm:$0xff]
    %v592 = vld [vmem:[#allocation6 + $0xee0] sm:$0xff]
    %v593 = vld [vmem:[#allocation6 + $0xee8] sm:$0xff]
    %v594 = vld [vmem:[#allocation6 + $0xef0] sm:$0xff]
    %v595 = vld [vmem:[#allocation6 + $0xef8] sm:$0xff]
    %v596 = vld [vmem:[#allocation6 + $0xf00] sm:$0xff]
    %v597 = vld [vmem:[#allocation6 + $0xf08] sm:$0xff]
    %v598 = vld [vmem:[#allocation6 + $0xf10] sm:$0xff]
    %v599 = vld [vmem:[#allocation6 + $0xf18] sm:$0xff]
    %v600 = vld [vmem:[#allocation6 + $0xf20] sm:$0xff]
    %v601 = vld [vmem:[#allocation6 + $0xf28] sm:$0xff]
    %v602 = vld [vmem:[#allocation6 + $0xf30] sm:$0xff]
    %v603 = vld [vmem:[#allocation6 + $0xf38] sm:$0xff]
    %v604 = vld [vmem:[#allocation6 + $0xf40] sm:$0xff]
    %v605 = vld [vmem:[#allocation6 + $0xf48] sm:$0xff]
    %v606 = vld [vmem:[#allocation6 + $0xf50] sm:$0xff]
    %v607 = vld [vmem:[#allocation6 + $0xf58] sm:$0xff]
    %v608 = vld [vmem:[#allocation6 + $0xf60] sm:$0xff]
    %v609 = vld [vmem:[#allocation6 + $0xf68] sm:$0xff]
    %v610 = vld [vmem:[#allocation6 + $0xf70] sm:$0xff]
    %v611 = vld [vmem:[#allocation6 + $0xf78] sm:$0xff]
    %v612 = vld [vmem:[#allocation6 + $0xf80] sm:$0xff]
    %v613 = vld [vmem:[#allocation6 + $0xf88] sm:$0xff]
    %v614 = vld [vmem:[#allocation6 + $0xf90] sm:$0xff]
    %v615 = vld [vmem:[#allocation6 + $0xf98] sm:$0xff]
    %v616 = vld [vmem:[#allocation6 + $0xfa0] sm:$0xff]
    %v617 = vld [vmem:[#allocation6 + $0xfa8] sm:$0xff]
    %v618 = vld [vmem:[#allocation6 + $0xfb0] sm:$0xff]
    %v619 = vld [vmem:[#allocation6 + $0xfb8] sm:$0xff]
    %v620 = vld [vmem:[#allocation6 + $0xfc0] sm:$0xff]
    %v621 = vld [vmem:[#allocation6 + $0xfc8] sm:$0xff]
    %v622 = vld [vmem:[#allocation6 + $0xfd0] sm:$0xff]
    %v623 = vld [vmem:[#allocation6 + $0xfd8] sm:$0xff]
    %v624 = vld [vmem:[#allocation6 + $0xfe0] sm:$0xff]
    %v625 = vld [vmem:[#allocation6 + $0xfe8] sm:$0xff]
    %v626 = vld [vmem:[#allocation6 + $0xff0] sm:$0xff]
    %v627 = vld [vmem:[#allocation6 + $0xff8] sm:$0xff]
    %v636 = vunpack.c.l.b16 %v108
    %v637 = vunpack.c.h.b16 %v108
    %v638 = vunpack.c.l.b16 %v109
    %v639 = vunpack.c.h.b16 %v109
    %v640 = vunpack.c.l.b16 %v110
    %v641 = vunpack.c.h.b16 %v110
    %v642 = vunpack.c.l.b16 %v111
    %v643 = vunpack.c.h.b16 %v111
    %v644 = vunpack.c.l.b16 %v112
    %v645 = vunpack.c.h.b16 %v112
    %v646 = vunpack.c.l.b16 %v113
    %v647 = vunpack.c.h.b16 %v113
    %v648 = vunpack.c.l.b16 %v114
    %v649 = vunpack.c.h.b16 %v114
    %v650 = vunpack.c.l.b16 %v115
    %v651 = vunpack.c.h.b16 %v115
    %v652 = vpack.c.b16 %v644, %v636
    %v653 = vpack.c.b16 %v645, %v637
    %v654 = vpack.c.b16 %v646, %v638
    %v655 = vpack.c.b16 %v647, %v639
    %v656 = vpack.c.b16 %v648, %v640
    %v657 = vpack.c.b16 %v649, %v641
    %v658 = vpack.c.b16 %v650, %v642
    %v659 = vpack.c.b16 %v651, %v643
    %v1180 = vunpack.c.l.b16 %v116
    %v1181 = vunpack.c.h.b16 %v116
    %v1182 = vunpack.c.l.b16 %v117
    %v1183 = vunpack.c.h.b16 %v117
    %v1184 = vunpack.c.l.b16 %v118
    %v1185 = vunpack.c.h.b16 %v118
    %v1186 = vunpack.c.l.b16 %v119
    %v1187 = vunpack.c.h.b16 %v119
    %v1188 = vunpack.c.l.b16 %v120
    %v1189 = vunpack.c.h.b16 %v120
    %v1190 = vunpack.c.l.b16 %v121
    %v1191 = vunpack.c.h.b16 %v121
    %v1192 = vunpack.c.l.b16 %v122
    %v1193 = vunpack.c.h.b16 %v122
    %v1194 = vunpack.c.l.b16 %v123
    %v1195 = vunpack.c.h.b16 %v123
    %v1196 = vunpack.c.l.b16 %v124
    %v1197 = vunpack.c.h.b16 %v124
    %v1198 = vunpack.c.l.b16 %v125
    %v1199 = vunpack.c.h.b16 %v125
    %v1200 = vunpack.c.l.b16 %v126
    %v1201 = vunpack.c.h.b16 %v126
    %v1202 = vunpack.c.l.b16 %v127
    %v1203 = vunpack.c.h.b16 %v127
    %v1204 = vunpack.c.l.b16 %v128
    %v1205 = vunpack.c.h.b16 %v128
    %v1206 = vunpack.c.l.b16 %v129
    %v1207 = vunpack.c.h.b16 %v129
    %v1208 = vunpack.c.l.b16 %v130
    %v1209 = vunpack.c.h.b16 %v130
    %v1210 = vunpack.c.l.b16 %v131
    %v1211 = vunpack.c.h.b16 %v131
    %v1212 = vunpack.c.l.b16 %v132
    %v1213 = vunpack.c.h.b16 %v132
    %v1214 = vunpack.c.l.b16 %v133
    %v1215 = vunpack.c.h.b16 %v133
    %v1216 = vunpack.c.l.b16 %v134
    %v1217 = vunpack.c.h.b16 %v134
    %v1218 = vunpack.c.l.b16 %v135
    %v1219 = vunpack.c.h.b16 %v135
    %v1220 = vunpack.c.l.b16 %v136
    %v1221 = vunpack.c.h.b16 %v136
    %v1222 = vunpack.c.l.b16 %v137
    %v1223 = vunpack.c.h.b16 %v137
    %v1224 = vunpack.c.l.b16 %v138
    %v1225 = vunpack.c.h.b16 %v138
    %v1226 = vunpack.c.l.b16 %v139
    %v1227 = vunpack.c.h.b16 %v139
    %v1228 = vunpack.c.l.b16 %v140
    %v1229 = vunpack.c.h.b16 %v140
    %v1230 = vunpack.c.l.b16 %v141
    %v1231 = vunpack.c.h.b16 %v141
    %v1232 = vunpack.c.l.b16 %v142
    %v1233 = vunpack.c.h.b16 %v142
    %v1234 = vunpack.c.l.b16 %v143
    %v1235 = vunpack.c.h.b16 %v143
    %v1236 = vunpack.c.l.b16 %v144
    %v1237 = vunpack.c.h.b16 %v144
    %v1238 = vunpack.c.l.b16 %v145
    %v1239 = vunpack.c.h.b16 %v145
    %v1240 = vunpack.c.l.b16 %v146
    %v1241 = vunpack.c.h.b16 %v146
    %v1242 = vunpack.c.l.b16 %v147
    %v1243 = vunpack.c.h.b16 %v147
    %v1244 = vunpack.c.l.b16 %v148
    %v1245 = vunpack.c.h.b16 %v148
    %v1246 = vunpack.c.l.b16 %v149
    %v1247 = vunpack.c.h.b16 %v149
    %v1248 = vunpack.c.l.b16 %v150
    %v1249 = vunpack.c.h.b16 %v150
    %v1250 = vunpack.c.l.b16 %v151
    %v1251 = vunpack.c.h.b16 %v151
    %v1252 = vunpack.c.l.b16 %v152
    %v1253 = vunpack.c.h.b16 %v152
    %v1254 = vunpack.c.l.b16 %v153
    %v1255 = vunpack.c.h.b16 %v153
    %v1256 = vunpack.c.l.b16 %v154
    %v1257 = vunpack.c.h.b16 %v154
    %v1258 = vunpack.c.l.b16 %v155
    %v1259 = vunpack.c.h.b16 %v155
    %v1260 = vunpack.c.l.b16 %v156
    %v1261 = vunpack.c.h.b16 %v156
    %v1262 = vunpack.c.l.b16 %v157
    %v1263 = vunpack.c.h.b16 %v157
    %v1264 = vunpack.c.l.b16 %v158
    %v1265 = vunpack.c.h.b16 %v158
    %v1266 = vunpack.c.l.b16 %v159
    %v1267 = vunpack.c.h.b16 %v159
    %v1268 = vunpack.c.l.b16 %v160
    %v1269 = vunpack.c.h.b16 %v160
    %v1270 = vunpack.c.l.b16 %v161
    %v1271 = vunpack.c.h.b16 %v161
    %v1272 = vunpack.c.l.b16 %v162
    %v1273 = vunpack.c.h.b16 %v162
    %v1274 = vunpack.c.l.b16 %v163
    %v1275 = vunpack.c.h.b16 %v163
    %v1276 = vunpack.c.l.b16 %v164
    %v1277 = vunpack.c.h.b16 %v164
    %v1278 = vunpack.c.l.b16 %v165
    %v1279 = vunpack.c.h.b16 %v165
    %v1280 = vunpack.c.l.b16 %v166
    %v1281 = vunpack.c.h.b16 %v166
    %v1282 = vunpack.c.l.b16 %v167
    %v1283 = vunpack.c.h.b16 %v167
    %v1284 = vunpack.c.l.b16 %v168
    %v1285 = vunpack.c.h.b16 %v168
    %v1286 = vunpack.c.l.b16 %v169
    %v1287 = vunpack.c.h.b16 %v169
    %v1288 = vunpack.c.l.b16 %v170
    %v1289 = vunpack.c.h.b16 %v170
    %v1290 = vunpack.c.l.b16 %v171
    %v1291 = vunpack.c.h.b16 %v171
    %v1292 = vunpack.c.l.b16 %v172
    %v1293 = vunpack.c.h.b16 %v172
    %v1294 = vunpack.c.l.b16 %v173
    %v1295 = vunpack.c.h.b16 %v173
    %v1296 = vunpack.c.l.b16 %v174
    %v1297 = vunpack.c.h.b16 %v174
    %v1298 = vunpack.c.l.b16 %v175
    %v1299 = vunpack.c.h.b16 %v175
    %v1300 = vunpack.c.l.b16 %v176
    %v1301 = vunpack.c.h.b16 %v176
    %v1302 = vunpack.c.l.b16 %v177
    %v1303 = vunpack.c.h.b16 %v177
    %v1304 = vunpack.c.l.b16 %v178
    %v1305 = vunpack.c.h.b16 %v178
    %v1306 = vunpack.c.l.b16 %v179
    %v1307 = vunpack.c.h.b16 %v179
    %v1308 = vunpack.c.l.b16 %v180
    %v1309 = vunpack.c.h.b16 %v180
    %v1310 = vunpack.c.l.b16 %v181
    %v1311 = vunpack.c.h.b16 %v181
    %v1312 = vunpack.c.l.b16 %v182
    %v1313 = vunpack.c.h.b16 %v182
    %v1314 = vunpack.c.l.b16 %v183
    %v1315 = vunpack.c.h.b16 %v183
    %v1316 = vunpack.c.l.b16 %v184
    %v1317 = vunpack.c.h.b16 %v184
    %v1318 = vunpack.c.l.b16 %v185
    %v1319 = vunpack.c.h.b16 %v185
    %v1320 = vunpack.c.l.b16 %v186
    %v1321 = vunpack.c.h.b16 %v186
    %v1322 = vunpack.c.l.b16 %v187
    %v1323 = vunpack.c.h.b16 %v187
    %v1324 = vunpack.c.l.b16 %v188
    %v1325 = vunpack.c.h.b16 %v188
    %v1326 = vunpack.c.l.b16 %v189
    %v1327 = vunpack.c.h.b16 %v189
    %v1328 = vunpack.c.l.b16 %v190
    %v1329 = vunpack.c.h.b16 %v190
    %v1330 = vunpack.c.l.b16 %v191
    %v1331 = vunpack.c.h.b16 %v191
    %v1332 = vunpack.c.l.b16 %v192
    %v1333 = vunpack.c.h.b16 %v192
    %v1334 = vunpack.c.l.b16 %v193
    %v1335 = vunpack.c.h.b16 %v193
    %v1336 = vunpack.c.l.b16 %v194
    %v1337 = vunpack.c.h.b16 %v194
    %v1338 = vunpack.c.l.b16 %v195
    %v1339 = vunpack.c.h.b16 %v195
    %v1340 = vunpack.c.l.b16 %v196
    %v1341 = vunpack.c.h.b16 %v196
    %v1342 = vunpack.c.l.b16 %v197
    %v1343 = vunpack.c.h.b16 %v197
    %v1344 = vunpack.c.l.b16 %v198
    %v1345 = vunpack.c.h.b16 %v198
    %v1346 = vunpack.c.l.b16 %v199
    %v1347 = vunpack.c.h.b16 %v199
    %v1348 = vunpack.c.l.b16 %v200
    %v1349 = vunpack.c.h.b16 %v200
    %v1350 = vunpack.c.l.b16 %v201
    %v1351 = vunpack.c.h.b16 %v201
    %v1352 = vunpack.c.l.b16 %v202
    %v1353 = vunpack.c.h.b16 %v202
    %v1354 = vunpack.c.l.b16 %v203
    %v1355 = vunpack.c.h.b16 %v203
    %v1356 = vunpack.c.l.b16 %v204
    %v1357 = vunpack.c.h.b16 %v204
    %v1358 = vunpack.c.l.b16 %v205
    %v1359 = vunpack.c.h.b16 %v205
    %v1360 = vunpack.c.l.b16 %v206
    %v1361 = vunpack.c.h.b16 %v206
    %v1362 = vunpack.c.l.b16 %v207
    %v1363 = vunpack.c.h.b16 %v207
    %v1364 = vunpack.c.l.b16 %v208
    %v1365 = vunpack.c.h.b16 %v208
    %v1366 = vunpack.c.l.b16 %v209
    %v1367 = vunpack.c.h.b16 %v209
    %v1368 = vunpack.c.l.b16 %v210
    %v1369 = vunpack.c.h.b16 %v210
    %v1370 = vunpack.c.l.b16 %v211
    %v1371 = vunpack.c.h.b16 %v211
    %v1372 = vunpack.c.l.b16 %v212
    %v1373 = vunpack.c.h.b16 %v212
    %v1374 = vunpack.c.l.b16 %v213
    %v1375 = vunpack.c.h.b16 %v213
    %v1376 = vunpack.c.l.b16 %v214
    %v1377 = vunpack.c.h.b16 %v214
    %v1378 = vunpack.c.l.b16 %v215
    %v1379 = vunpack.c.h.b16 %v215
    %v1380 = vunpack.c.l.b16 %v216
    %v1381 = vunpack.c.h.b16 %v216
    %v1382 = vunpack.c.l.b16 %v217
    %v1383 = vunpack.c.h.b16 %v217
    %v1384 = vunpack.c.l.b16 %v218
    %v1385 = vunpack.c.h.b16 %v218
    %v1386 = vunpack.c.l.b16 %v219
    %v1387 = vunpack.c.h.b16 %v219
    %v1388 = vunpack.c.l.b16 %v220
    %v1389 = vunpack.c.h.b16 %v220
    %v1390 = vunpack.c.l.b16 %v221
    %v1391 = vunpack.c.h.b16 %v221
    %v1392 = vunpack.c.l.b16 %v222
    %v1393 = vunpack.c.h.b16 %v222
    %v1394 = vunpack.c.l.b16 %v223
    %v1395 = vunpack.c.h.b16 %v223
    %v1396 = vunpack.c.l.b16 %v224
    %v1397 = vunpack.c.h.b16 %v224
    %v1398 = vunpack.c.l.b16 %v225
    %v1399 = vunpack.c.h.b16 %v225
    %v1400 = vunpack.c.l.b16 %v226
    %v1401 = vunpack.c.h.b16 %v226
    %v1402 = vunpack.c.l.b16 %v227
    %v1403 = vunpack.c.h.b16 %v227
    %v1404 = vunpack.c.l.b16 %v228
    %v1405 = vunpack.c.h.b16 %v228
    %v1406 = vunpack.c.l.b16 %v229
    %v1407 = vunpack.c.h.b16 %v229
    %v1408 = vunpack.c.l.b16 %v230
    %v1409 = vunpack.c.h.b16 %v230
    %v1410 = vunpack.c.l.b16 %v231
    %v1411 = vunpack.c.h.b16 %v231
    %v1412 = vunpack.c.l.b16 %v232
    %v1413 = vunpack.c.h.b16 %v232
    %v1414 = vunpack.c.l.b16 %v233
    %v1415 = vunpack.c.h.b16 %v233
    %v1416 = vunpack.c.l.b16 %v234
    %v1417 = vunpack.c.h.b16 %v234
    %v1418 = vunpack.c.l.b16 %v235
    %v1419 = vunpack.c.h.b16 %v235
    %v1420 = vunpack.c.l.b16 %v236
    %v1421 = vunpack.c.h.b16 %v236
    %v1422 = vunpack.c.l.b16 %v237
    %v1423 = vunpack.c.h.b16 %v237
    %v1424 = vunpack.c.l.b16 %v238
    %v1425 = vunpack.c.h.b16 %v238
    %v1426 = vunpack.c.l.b16 %v239
    %v1427 = vunpack.c.h.b16 %v239
    %v1428 = vunpack.c.l.b16 %v240
    %v1429 = vunpack.c.h.b16 %v240
    %v1430 = vunpack.c.l.b16 %v241
    %v1431 = vunpack.c.h.b16 %v241
    %v1432 = vunpack.c.l.b16 %v242
    %v1433 = vunpack.c.h.b16 %v242
    %v1434 = vunpack.c.l.b16 %v243
    %v1435 = vunpack.c.h.b16 %v243
    %v1436 = vunpack.c.l.b16 %v244
    %v1437 = vunpack.c.h.b16 %v244
    %v1438 = vunpack.c.l.b16 %v245
    %v1439 = vunpack.c.h.b16 %v245
    %v1440 = vunpack.c.l.b16 %v246
    %v1441 = vunpack.c.h.b16 %v246
    %v1442 = vunpack.c.l.b16 %v247
    %v1443 = vunpack.c.h.b16 %v247
    %v1444 = vunpack.c.l.b16 %v248
    %v1445 = vunpack.c.h.b16 %v248
    %v1446 = vunpack.c.l.b16 %v249
    %v1447 = vunpack.c.h.b16 %v249
    %v1448 = vunpack.c.l.b16 %v250
    %v1449 = vunpack.c.h.b16 %v250
    %v1450 = vunpack.c.l.b16 %v251
    %v1451 = vunpack.c.h.b16 %v251
    %v1452 = vunpack.c.l.b16 %v252
    %v1453 = vunpack.c.h.b16 %v252
    %v1454 = vunpack.c.l.b16 %v253
    %v1455 = vunpack.c.h.b16 %v253
    %v1456 = vunpack.c.l.b16 %v254
    %v1457 = vunpack.c.h.b16 %v254
    %v1458 = vunpack.c.l.b16 %v255
    %v1459 = vunpack.c.h.b16 %v255
    %v1460 = vunpack.c.l.b16 %v256
    %v1461 = vunpack.c.h.b16 %v256
    %v1462 = vunpack.c.l.b16 %v257
    %v1463 = vunpack.c.h.b16 %v257
    %v1464 = vunpack.c.l.b16 %v258
    %v1465 = vunpack.c.h.b16 %v258
    %v1466 = vunpack.c.l.b16 %v259
    %v1467 = vunpack.c.h.b16 %v259
    %v1468 = vunpack.c.l.b16 %v260
    %v1469 = vunpack.c.h.b16 %v260
    %v1470 = vunpack.c.l.b16 %v261
    %v1471 = vunpack.c.h.b16 %v261
    %v1472 = vunpack.c.l.b16 %v262
    %v1473 = vunpack.c.h.b16 %v262
    %v1474 = vunpack.c.l.b16 %v263
    %v1475 = vunpack.c.h.b16 %v263
    %v1476 = vunpack.c.l.b16 %v264
    %v1477 = vunpack.c.h.b16 %v264
    %v1478 = vunpack.c.l.b16 %v265
    %v1479 = vunpack.c.h.b16 %v265
    %v1480 = vunpack.c.l.b16 %v266
    %v1481 = vunpack.c.h.b16 %v266
    %v1482 = vunpack.c.l.b16 %v267
    %v1483 = vunpack.c.h.b16 %v267
    %v1484 = vunpack.c.l.b16 %v268
    %v1485 = vunpack.c.h.b16 %v268
    %v1486 = vunpack.c.l.b16 %v269
    %v1487 = vunpack.c.h.b16 %v269
    %v1488 = vunpack.c.l.b16 %v270
    %v1489 = vunpack.c.h.b16 %v270
    %v1490 = vunpack.c.l.b16 %v271
    %v1491 = vunpack.c.h.b16 %v271
    %v1492 = vunpack.c.l.b16 %v272
    %v1493 = vunpack.c.h.b16 %v272
    %v1494 = vunpack.c.l.b16 %v273
    %v1495 = vunpack.c.h.b16 %v273
    %v1496 = vunpack.c.l.b16 %v274
    %v1497 = vunpack.c.h.b16 %v274
    %v1498 = vunpack.c.l.b16 %v275
    %v1499 = vunpack.c.h.b16 %v275
    %v1500 = vunpack.c.l.b16 %v276
    %v1501 = vunpack.c.h.b16 %v276
    %v1502 = vunpack.c.l.b16 %v277
    %v1503 = vunpack.c.h.b16 %v277
    %v1504 = vunpack.c.l.b16 %v278
    %v1505 = vunpack.c.h.b16 %v278
    %v1506 = vunpack.c.l.b16 %v279
    %v1507 = vunpack.c.h.b16 %v279
    %v1508 = vunpack.c.l.b16 %v280
    %v1509 = vunpack.c.h.b16 %v280
    %v1510 = vunpack.c.l.b16 %v281
    %v1511 = vunpack.c.h.b16 %v281
    %v1512 = vunpack.c.l.b16 %v282
    %v1513 = vunpack.c.h.b16 %v282
    %v1514 = vunpack.c.l.b16 %v283
    %v1515 = vunpack.c.h.b16 %v283
    %v1516 = vunpack.c.l.b16 %v284
    %v1517 = vunpack.c.h.b16 %v284
    %v1518 = vunpack.c.l.b16 %v285
    %v1519 = vunpack.c.h.b16 %v285
    %v1520 = vunpack.c.l.b16 %v286
    %v1521 = vunpack.c.h.b16 %v286
    %v1522 = vunpack.c.l.b16 %v287
    %v1523 = vunpack.c.h.b16 %v287
    %v1524 = vunpack.c.l.b16 %v288
    %v1525 = vunpack.c.h.b16 %v288
    %v1526 = vunpack.c.l.b16 %v289
    %v1527 = vunpack.c.h.b16 %v289
    %v1528 = vunpack.c.l.b16 %v290
    %v1529 = vunpack.c.h.b16 %v290
    %v1530 = vunpack.c.l.b16 %v291
    %v1531 = vunpack.c.h.b16 %v291
    %v1532 = vunpack.c.l.b16 %v292
    %v1533 = vunpack.c.h.b16 %v292
    %v1534 = vunpack.c.l.b16 %v293
    %v1535 = vunpack.c.h.b16 %v293
    %v1536 = vunpack.c.l.b16 %v294
    %v1537 = vunpack.c.h.b16 %v294
    %v1538 = vunpack.c.l.b16 %v295
    %v1539 = vunpack.c.h.b16 %v295
    %v1540 = vunpack.c.l.b16 %v296
    %v1541 = vunpack.c.h.b16 %v296
    %v1542 = vunpack.c.l.b16 %v297
    %v1543 = vunpack.c.h.b16 %v297
    %v1544 = vunpack.c.l.b16 %v298
    %v1545 = vunpack.c.h.b16 %v298
    %v1546 = vunpack.c.l.b16 %v299
    %v1547 = vunpack.c.h.b16 %v299
    %v1548 = vunpack.c.l.b16 %v300
    %v1549 = vunpack.c.h.b16 %v300
    %v1550 = vunpack.c.l.b16 %v301
    %v1551 = vunpack.c.h.b16 %v301
    %v1552 = vunpack.c.l.b16 %v302
    %v1553 = vunpack.c.h.b16 %v302
    %v1554 = vunpack.c.l.b16 %v303
    %v1555 = vunpack.c.h.b16 %v303
    %v1556 = vunpack.c.l.b16 %v304
    %v1557 = vunpack.c.h.b16 %v304
    %v1558 = vunpack.c.l.b16 %v305
    %v1559 = vunpack.c.h.b16 %v305
    %v1560 = vunpack.c.l.b16 %v306
    %v1561 = vunpack.c.h.b16 %v306
    %v1562 = vunpack.c.l.b16 %v307
    %v1563 = vunpack.c.h.b16 %v307
    %v1564 = vunpack.c.l.b16 %v308
    %v1565 = vunpack.c.h.b16 %v308
    %v1566 = vunpack.c.l.b16 %v309
    %v1567 = vunpack.c.h.b16 %v309
    %v1568 = vunpack.c.l.b16 %v310
    %v1569 = vunpack.c.h.b16 %v310
    %v1570 = vunpack.c.l.b16 %v311
    %v1571 = vunpack.c.h.b16 %v311
    %v1572 = vunpack.c.l.b16 %v312
    %v1573 = vunpack.c.h.b16 %v312
    %v1574 = vunpack.c.l.b16 %v313
    %v1575 = vunpack.c.h.b16 %v313
    %v1576 = vunpack.c.l.b16 %v314
    %v1577 = vunpack.c.h.b16 %v314
    %v1578 = vunpack.c.l.b16 %v315
    %v1579 = vunpack.c.h.b16 %v315
    %v1580 = vunpack.c.l.b16 %v316
    %v1581 = vunpack.c.h.b16 %v316
    %v1582 = vunpack.c.l.b16 %v317
    %v1583 = vunpack.c.h.b16 %v317
    %v1584 = vunpack.c.l.b16 %v318
    %v1585 = vunpack.c.h.b16 %v318
    %v1586 = vunpack.c.l.b16 %v319
    %v1587 = vunpack.c.h.b16 %v319
    %v1588 = vunpack.c.l.b16 %v320
    %v1589 = vunpack.c.h.b16 %v320
    %v1590 = vunpack.c.l.b16 %v321
    %v1591 = vunpack.c.h.b16 %v321
    %v1592 = vunpack.c.l.b16 %v322
    %v1593 = vunpack.c.h.b16 %v322
    %v1594 = vunpack.c.l.b16 %v323
    %v1595 = vunpack.c.h.b16 %v323
    %v1596 = vunpack.c.l.b16 %v324
    %v1597 = vunpack.c.h.b16 %v324
    %v1598 = vunpack.c.l.b16 %v325
    %v1599 = vunpack.c.h.b16 %v325
    %v1600 = vunpack.c.l.b16 %v326
    %v1601 = vunpack.c.h.b16 %v326
    %v1602 = vunpack.c.l.b16 %v327
    %v1603 = vunpack.c.h.b16 %v327
    %v1604 = vunpack.c.l.b16 %v328
    %v1605 = vunpack.c.h.b16 %v328
    %v1606 = vunpack.c.l.b16 %v329
    %v1607 = vunpack.c.h.b16 %v329
    %v1608 = vunpack.c.l.b16 %v330
    %v1609 = vunpack.c.h.b16 %v330
    %v1610 = vunpack.c.l.b16 %v331
    %v1611 = vunpack.c.h.b16 %v331
    %v1612 = vunpack.c.l.b16 %v332
    %v1613 = vunpack.c.h.b16 %v332
    %v1614 = vunpack.c.l.b16 %v333
    %v1615 = vunpack.c.h.b16 %v333
    %v1616 = vunpack.c.l.b16 %v334
    %v1617 = vunpack.c.h.b16 %v334
    %v1618 = vunpack.c.l.b16 %v335
    %v1619 = vunpack.c.h.b16 %v335
    %v1620 = vunpack.c.l.b16 %v336
    %v1621 = vunpack.c.h.b16 %v336
    %v1622 = vunpack.c.l.b16 %v337
    %v1623 = vunpack.c.h.b16 %v337
    %v1624 = vunpack.c.l.b16 %v338
    %v1625 = vunpack.c.h.b16 %v338
    %v1626 = vunpack.c.l.b16 %v339
    %v1627 = vunpack.c.h.b16 %v339
    %v1628 = vunpack.c.l.b16 %v340
    %v1629 = vunpack.c.h.b16 %v340
    %v1630 = vunpack.c.l.b16 %v341
    %v1631 = vunpack.c.h.b16 %v341
    %v1632 = vunpack.c.l.b16 %v342
    %v1633 = vunpack.c.h.b16 %v342
    %v1634 = vunpack.c.l.b16 %v343
    %v1635 = vunpack.c.h.b16 %v343
    %v1636 = vunpack.c.l.b16 %v344
    %v1637 = vunpack.c.h.b16 %v344
    %v1638 = vunpack.c.l.b16 %v345
    %v1639 = vunpack.c.h.b16 %v345
    %v1640 = vunpack.c.l.b16 %v346
    %v1641 = vunpack.c.h.b16 %v346
    %v1642 = vunpack.c.l.b16 %v347
    %v1643 = vunpack.c.h.b16 %v347
    %v1644 = vunpack.c.l.b16 %v348
    %v1645 = vunpack.c.h.b16 %v348
    %v1646 = vunpack.c.l.b16 %v349
    %v1647 = vunpack.c.h.b16 %v349
    %v1648 = vunpack.c.l.b16 %v350
    %v1649 = vunpack.c.h.b16 %v350
    %v1650 = vunpack.c.l.b16 %v351
    %v1651 = vunpack.c.h.b16 %v351
    %v1652 = vunpack.c.l.b16 %v352
    %v1653 = vunpack.c.h.b16 %v352
    %v1654 = vunpack.c.l.b16 %v353
    %v1655 = vunpack.c.h.b16 %v353
    %v1656 = vunpack.c.l.b16 %v354
    %v1657 = vunpack.c.h.b16 %v354
    %v1658 = vunpack.c.l.b16 %v355
    %v1659 = vunpack.c.h.b16 %v355
    %v1660 = vunpack.c.l.b16 %v356
    %v1661 = vunpack.c.h.b16 %v356
    %v1662 = vunpack.c.l.b16 %v357
    %v1663 = vunpack.c.h.b16 %v357
    %v1664 = vunpack.c.l.b16 %v358
    %v1665 = vunpack.c.h.b16 %v358
    %v1666 = vunpack.c.l.b16 %v359
    %v1667 = vunpack.c.h.b16 %v359
    %v1668 = vunpack.c.l.b16 %v360
    %v1669 = vunpack.c.h.b16 %v360
    %v1670 = vunpack.c.l.b16 %v361
    %v1671 = vunpack.c.h.b16 %v361
    %v1672 = vunpack.c.l.b16 %v362
    %v1673 = vunpack.c.h.b16 %v362
    %v1674 = vunpack.c.l.b16 %v363
    %v1675 = vunpack.c.h.b16 %v363
    %v1676 = vunpack.c.l.b16 %v364
    %v1677 = vunpack.c.h.b16 %v364
    %v1678 = vunpack.c.l.b16 %v365
    %v1679 = vunpack.c.h.b16 %v365
    %v1680 = vunpack.c.l.b16 %v366
    %v1681 = vunpack.c.h.b16 %v366
    %v1682 = vunpack.c.l.b16 %v367
    %v1683 = vunpack.c.h.b16 %v367
    %v1684 = vunpack.c.l.b16 %v368
    %v1685 = vunpack.c.h.b16 %v368
    %v1686 = vunpack.c.l.b16 %v369
    %v1687 = vunpack.c.h.b16 %v369
    %v1688 = vunpack.c.l.b16 %v370
    %v1689 = vunpack.c.h.b16 %v370
    %v1690 = vunpack.c.l.b16 %v371
    %v1691 = vunpack.c.h.b16 %v371
    %v1692 = vunpack.c.l.b16 %v372
    %v1693 = vunpack.c.h.b16 %v372
    %v1694 = vunpack.c.l.b16 %v373
    %v1695 = vunpack.c.h.b16 %v373
    %v1696 = vunpack.c.l.b16 %v374
    %v1697 = vunpack.c.h.b16 %v374
    %v1698 = vunpack.c.l.b16 %v375
    %v1699 = vunpack.c.h.b16 %v375
    %v1700 = vunpack.c.l.b16 %v376
    %v1701 = vunpack.c.h.b16 %v376
    %v1702 = vunpack.c.l.b16 %v377
    %v1703 = vunpack.c.h.b16 %v377
    %v1704 = vunpack.c.l.b16 %v378
    %v1705 = vunpack.c.h.b16 %v378
    %v1706 = vunpack.c.l.b16 %v379
    %v1707 = vunpack.c.h.b16 %v379
    %v1708 = vunpack.c.l.b16 %v380
    %v1709 = vunpack.c.h.b16 %v380
    %v1710 = vunpack.c.l.b16 %v381
    %v1711 = vunpack.c.h.b16 %v381
    %v1712 = vunpack.c.l.b16 %v382
    %v1713 = vunpack.c.h.b16 %v382
    %v1714 = vunpack.c.l.b16 %v383
    %v1715 = vunpack.c.h.b16 %v383
    %v1716 = vunpack.c.l.b16 %v384
    %v1717 = vunpack.c.h.b16 %v384
    %v1718 = vunpack.c.l.b16 %v385
    %v1719 = vunpack.c.h.b16 %v385
    %v1720 = vunpack.c.l.b16 %v386
    %v1721 = vunpack.c.h.b16 %v386
    %v1722 = vunpack.c.l.b16 %v387
    %v1723 = vunpack.c.h.b16 %v387
    %v1724 = vunpack.c.l.b16 %v388
    %v1725 = vunpack.c.h.b16 %v388
    %v1726 = vunpack.c.l.b16 %v389
    %v1727 = vunpack.c.h.b16 %v389
    %v1728 = vunpack.c.l.b16 %v390
    %v1729 = vunpack.c.h.b16 %v390
    %v1730 = vunpack.c.l.b16 %v391
    %v1731 = vunpack.c.h.b16 %v391
    %v1732 = vunpack.c.l.b16 %v392
    %v1733 = vunpack.c.h.b16 %v392
    %v1734 = vunpack.c.l.b16 %v393
    %v1735 = vunpack.c.h.b16 %v393
    %v1736 = vunpack.c.l.b16 %v394
    %v1737 = vunpack.c.h.b16 %v394
    %v1738 = vunpack.c.l.b16 %v395
    %v1739 = vunpack.c.h.b16 %v395
    %v1740 = vunpack.c.l.b16 %v396
    %v1741 = vunpack.c.h.b16 %v396
    %v1742 = vunpack.c.l.b16 %v397
    %v1743 = vunpack.c.h.b16 %v397
    %v1744 = vunpack.c.l.b16 %v398
    %v1745 = vunpack.c.h.b16 %v398
    %v1746 = vunpack.c.l.b16 %v399
    %v1747 = vunpack.c.h.b16 %v399
    %v1748 = vunpack.c.l.b16 %v400
    %v1749 = vunpack.c.h.b16 %v400
    %v1750 = vunpack.c.l.b16 %v401
    %v1751 = vunpack.c.h.b16 %v401
    %v1752 = vunpack.c.l.b16 %v402
    %v1753 = vunpack.c.h.b16 %v402
    %v1754 = vunpack.c.l.b16 %v403
    %v1755 = vunpack.c.h.b16 %v403
    %v1756 = vunpack.c.l.b16 %v404
    %v1757 = vunpack.c.h.b16 %v404
    %v1758 = vunpack.c.l.b16 %v405
    %v1759 = vunpack.c.h.b16 %v405
    %v1760 = vunpack.c.l.b16 %v406
    %v1761 = vunpack.c.h.b16 %v406
    %v1762 = vunpack.c.l.b16 %v407
    %v1763 = vunpack.c.h.b16 %v407
    %v1764 = vunpack.c.l.b16 %v408
    %v1765 = vunpack.c.h.b16 %v408
    %v1766 = vunpack.c.l.b16 %v409
    %v1767 = vunpack.c.h.b16 %v409
    %v1768 = vunpack.c.l.b16 %v410
    %v1769 = vunpack.c.h.b16 %v410
    %v1770 = vunpack.c.l.b16 %v411
    %v1771 = vunpack.c.h.b16 %v411
    %v1772 = vunpack.c.l.b16 %v412
    %v1773 = vunpack.c.h.b16 %v412
    %v1774 = vunpack.c.l.b16 %v413
    %v1775 = vunpack.c.h.b16 %v413
    %v1776 = vunpack.c.l.b16 %v414
    %v1777 = vunpack.c.h.b16 %v414
    %v1778 = vunpack.c.l.b16 %v415
    %v1779 = vunpack.c.h.b16 %v415
    %v1780 = vunpack.c.l.b16 %v416
    %v1781 = vunpack.c.h.b16 %v416
    %v1782 = vunpack.c.l.b16 %v417
    %v1783 = vunpack.c.h.b16 %v417
    %v1784 = vunpack.c.l.b16 %v418
    %v1785 = vunpack.c.h.b16 %v418
    %v1786 = vunpack.c.l.b16 %v419
    %v1787 = vunpack.c.h.b16 %v419
    %v1788 = vunpack.c.l.b16 %v420
    %v1789 = vunpack.c.h.b16 %v420
    %v1790 = vunpack.c.l.b16 %v421
    %v1791 = vunpack.c.h.b16 %v421
    %v1792 = vunpack.c.l.b16 %v422
    %v1793 = vunpack.c.h.b16 %v422
    %v1794 = vunpack.c.l.b16 %v423
    %v1795 = vunpack.c.h.b16 %v423
    %v1796 = vunpack.c.l.b16 %v424
    %v1797 = vunpack.c.h.b16 %v424
    %v1798 = vunpack.c.l.b16 %v425
    %v1799 = vunpack.c.h.b16 %v425
    %v1800 = vunpack.c.l.b16 %v426
    %v1801 = vunpack.c.h.b16 %v426
    %v1802 = vunpack.c.l.b16 %v427
    %v1803 = vunpack.c.h.b16 %v427
    %v1804 = vunpack.c.l.b16 %v428
    %v1805 = vunpack.c.h.b16 %v428
    %v1806 = vunpack.c.l.b16 %v429
    %v1807 = vunpack.c.h.b16 %v429
    %v1808 = vunpack.c.l.b16 %v430
    %v1809 = vunpack.c.h.b16 %v430
    %v1810 = vunpack.c.l.b16 %v431
    %v1811 = vunpack.c.h.b16 %v431
    %v1812 = vunpack.c.l.b16 %v432
    %v1813 = vunpack.c.h.b16 %v432
    %v1814 = vunpack.c.l.b16 %v433
    %v1815 = vunpack.c.h.b16 %v433
    %v1816 = vunpack.c.l.b16 %v434
    %v1817 = vunpack.c.h.b16 %v434
    %v1818 = vunpack.c.l.b16 %v435
    %v1819 = vunpack.c.h.b16 %v435
    %v1820 = vunpack.c.l.b16 %v436
    %v1821 = vunpack.c.h.b16 %v436
    %v1822 = vunpack.c.l.b16 %v437
    %v1823 = vunpack.c.h.b16 %v437
    %v1824 = vunpack.c.l.b16 %v438
    %v1825 = vunpack.c.h.b16 %v438
    %v1826 = vunpack.c.l.b16 %v439
    %v1827 = vunpack.c.h.b16 %v439
    %v1828 = vunpack.c.l.b16 %v440
    %v1829 = vunpack.c.h.b16 %v440
    %v1830 = vunpack.c.l.b16 %v441
    %v1831 = vunpack.c.h.b16 %v441
    %v1832 = vunpack.c.l.b16 %v442
    %v1833 = vunpack.c.h.b16 %v442
    %v1834 = vunpack.c.l.b16 %v443
    %v1835 = vunpack.c.h.b16 %v443
    %v1836 = vunpack.c.l.b16 %v444
    %v1837 = vunpack.c.h.b16 %v444
    %v1838 = vunpack.c.l.b16 %v445
    %v1839 = vunpack.c.h.b16 %v445
    %v1840 = vunpack.c.l.b16 %v446
    %v1841 = vunpack.c.h.b16 %v446
    %v1842 = vunpack.c.l.b16 %v447
    %v1843 = vunpack.c.h.b16 %v447
    %v1844 = vunpack.c.l.b16 %v448
    %v1845 = vunpack.c.h.b16 %v448
    %v1846 = vunpack.c.l.b16 %v449
    %v1847 = vunpack.c.h.b16 %v449
    %v1848 = vunpack.c.l.b16 %v450
    %v1849 = vunpack.c.h.b16 %v450
    %v1850 = vunpack.c.l.b16 %v451
    %v1851 = vunpack.c.h.b16 %v451
    %v1852 = vunpack.c.l.b16 %v452
    %v1853 = vunpack.c.h.b16 %v452
    %v1854 = vunpack.c.l.b16 %v453
    %v1855 = vunpack.c.h.b16 %v453
    %v1856 = vunpack.c.l.b16 %v454
    %v1857 = vunpack.c.h.b16 %v454
    %v1858 = vunpack.c.l.b16 %v455
    %v1859 = vunpack.c.h.b16 %v455
    %v1860 = vunpack.c.l.b16 %v456
    %v1861 = vunpack.c.h.b16 %v456
    %v1862 = vunpack.c.l.b16 %v457
    %v1863 = vunpack.c.h.b16 %v457
    %v1864 = vunpack.c.l.b16 %v458
    %v1865 = vunpack.c.h.b16 %v458
    %v1866 = vunpack.c.l.b16 %v459
    %v1867 = vunpack.c.h.b16 %v459
    %v1868 = vunpack.c.l.b16 %v460
    %v1869 = vunpack.c.h.b16 %v460
    %v1870 = vunpack.c.l.b16 %v461
    %v1871 = vunpack.c.h.b16 %v461
    %v1872 = vunpack.c.l.b16 %v462
    %v1873 = vunpack.c.h.b16 %v462
    %v1874 = vunpack.c.l.b16 %v463
    %v1875 = vunpack.c.h.b16 %v463
    %v1876 = vunpack.c.l.b16 %v464
    %v1877 = vunpack.c.h.b16 %v464
    %v1878 = vunpack.c.l.b16 %v465
    %v1879 = vunpack.c.h.b16 %v465
    %v1880 = vunpack.c.l.b16 %v466
    %v1881 = vunpack.c.h.b16 %v466
    %v1882 = vunpack.c.l.b16 %v467
    %v1883 = vunpack.c.h.b16 %v467
    %v1884 = vunpack.c.l.b16 %v468
    %v1885 = vunpack.c.h.b16 %v468
    %v1886 = vunpack.c.l.b16 %v469
    %v1887 = vunpack.c.h.b16 %v469
    %v1888 = vunpack.c.l.b16 %v470
    %v1889 = vunpack.c.h.b16 %v470
    %v1890 = vunpack.c.l.b16 %v471
    %v1891 = vunpack.c.h.b16 %v471
    %v1892 = vunpack.c.l.b16 %v472
    %v1893 = vunpack.c.h.b16 %v472
    %v1894 = vunpack.c.l.b16 %v473
    %v1895 = vunpack.c.h.b16 %v473
    %v1896 = vunpack.c.l.b16 %v474
    %v1897 = vunpack.c.h.b16 %v474
    %v1898 = vunpack.c.l.b16 %v475
    %v1899 = vunpack.c.h.b16 %v475
    %v1900 = vunpack.c.l.b16 %v476
    %v1901 = vunpack.c.h.b16 %v476
    %v1902 = vunpack.c.l.b16 %v477
    %v1903 = vunpack.c.h.b16 %v477
    %v1904 = vunpack.c.l.b16 %v478
    %v1905 = vunpack.c.h.b16 %v478
    %v1906 = vunpack.c.l.b16 %v479
    %v1907 = vunpack.c.h.b16 %v479
    %v1908 = vunpack.c.l.b16 %v480
    %v1909 = vunpack.c.h.b16 %v480
    %v1910 = vunpack.c.l.b16 %v481
    %v1911 = vunpack.c.h.b16 %v481
    %v1912 = vunpack.c.l.b16 %v482
    %v1913 = vunpack.c.h.b16 %v482
    %v1914 = vunpack.c.l.b16 %v483
    %v1915 = vunpack.c.h.b16 %v483
    %v1916 = vunpack.c.l.b16 %v484
    %v1917 = vunpack.c.h.b16 %v484
    %v1918 = vunpack.c.l.b16 %v485
    %v1919 = vunpack.c.h.b16 %v485
    %v1920 = vunpack.c.l.b16 %v486
    %v1921 = vunpack.c.h.b16 %v486
    %v1922 = vunpack.c.l.b16 %v487
    %v1923 = vunpack.c.h.b16 %v487
    %v1924 = vunpack.c.l.b16 %v488
    %v1925 = vunpack.c.h.b16 %v488
    %v1926 = vunpack.c.l.b16 %v489
    %v1927 = vunpack.c.h.b16 %v489
    %v1928 = vunpack.c.l.b16 %v490
    %v1929 = vunpack.c.h.b16 %v490
    %v1930 = vunpack.c.l.b16 %v491
    %v1931 = vunpack.c.h.b16 %v491
    %v1932 = vunpack.c.l.b16 %v492
    %v1933 = vunpack.c.h.b16 %v492
    %v1934 = vunpack.c.l.b16 %v493
    %v1935 = vunpack.c.h.b16 %v493
    %v1936 = vunpack.c.l.b16 %v494
    %v1937 = vunpack.c.h.b16 %v494
    %v1938 = vunpack.c.l.b16 %v495
    %v1939 = vunpack.c.h.b16 %v495
    %v1940 = vunpack.c.l.b16 %v496
    %v1941 = vunpack.c.h.b16 %v496
    %v1942 = vunpack.c.l.b16 %v497
    %v1943 = vunpack.c.h.b16 %v497
    %v1944 = vunpack.c.l.b16 %v498
    %v1945 = vunpack.c.h.b16 %v498
    %v1946 = vunpack.c.l.b16 %v499
    %v1947 = vunpack.c.h.b16 %v499
    %v1948 = vunpack.c.l.b16 %v500
    %v1949 = vunpack.c.h.b16 %v500
    %v1950 = vunpack.c.l.b16 %v501
    %v1951 = vunpack.c.h.b16 %v501
    %v1952 = vunpack.c.l.b16 %v502
    %v1953 = vunpack.c.h.b16 %v502
    %v1954 = vunpack.c.l.b16 %v503
    %v1955 = vunpack.c.h.b16 %v503
    %v1956 = vunpack.c.l.b16 %v504
    %v1957 = vunpack.c.h.b16 %v504
    %v1958 = vunpack.c.l.b16 %v505
    %v1959 = vunpack.c.h.b16 %v505
    %v1960 = vunpack.c.l.b16 %v506
    %v1961 = vunpack.c.h.b16 %v506
    %v1962 = vunpack.c.l.b16 %v507
    %v1963 = vunpack.c.h.b16 %v507
    %v1964 = vunpack.c.l.b16 %v508
    %v1965 = vunpack.c.h.b16 %v508
    %v1966 = vunpack.c.l.b16 %v509
    %v1967 = vunpack.c.h.b16 %v509
    %v1968 = vunpack.c.l.b16 %v510
    %v1969 = vunpack.c.h.b16 %v510
    %v1970 = vunpack.c.l.b16 %v511
    %v1971 = vunpack.c.h.b16 %v511
    %v1972 = vunpack.c.l.b16 %v512
    %v1973 = vunpack.c.h.b16 %v512
    %v1974 = vunpack.c.l.b16 %v513
    %v1975 = vunpack.c.h.b16 %v513
    %v1976 = vunpack.c.l.b16 %v514
    %v1977 = vunpack.c.h.b16 %v514
    %v1978 = vunpack.c.l.b16 %v515
    %v1979 = vunpack.c.h.b16 %v515
    %v1980 = vunpack.c.l.b16 %v516
    %v1981 = vunpack.c.h.b16 %v516
    %v1982 = vunpack.c.l.b16 %v517
    %v1983 = vunpack.c.h.b16 %v517
    %v1984 = vunpack.c.l.b16 %v518
    %v1985 = vunpack.c.h.b16 %v518
    %v1986 = vunpack.c.l.b16 %v519
    %v1987 = vunpack.c.h.b16 %v519
    %v1988 = vunpack.c.l.b16 %v520
    %v1989 = vunpack.c.h.b16 %v520
    %v1990 = vunpack.c.l.b16 %v521
    %v1991 = vunpack.c.h.b16 %v521
    %v1992 = vunpack.c.l.b16 %v522
    %v1993 = vunpack.c.h.b16 %v522
    %v1994 = vunpack.c.l.b16 %v523
    %v1995 = vunpack.c.h.b16 %v523
    %v1996 = vunpack.c.l.b16 %v524
    %v1997 = vunpack.c.h.b16 %v524
    %v1998 = vunpack.c.l.b16 %v525
    %v1999 = vunpack.c.h.b16 %v525
    %v2000 = vunpack.c.l.b16 %v526
    %v2001 = vunpack.c.h.b16 %v526
    %v2002 = vunpack.c.l.b16 %v527
    %v2003 = vunpack.c.h.b16 %v527
    %v2004 = vunpack.c.l.b16 %v528
    %v2005 = vunpack.c.h.b16 %v528
    %v2006 = vunpack.c.l.b16 %v529
    %v2007 = vunpack.c.h.b16 %v529
    %v2008 = vunpack.c.l.b16 %v530
    %v2009 = vunpack.c.h.b16 %v530
    %v2010 = vunpack.c.l.b16 %v531
    %v2011 = vunpack.c.h.b16 %v531
    %v2012 = vunpack.c.l.b16 %v532
    %v2013 = vunpack.c.h.b16 %v532
    %v2014 = vunpack.c.l.b16 %v533
    %v2015 = vunpack.c.h.b16 %v533
    %v2016 = vunpack.c.l.b16 %v534
    %v2017 = vunpack.c.h.b16 %v534
    %v2018 = vunpack.c.l.b16 %v535
    %v2019 = vunpack.c.h.b16 %v535
    %v2020 = vunpack.c.l.b16 %v536
    %v2021 = vunpack.c.h.b16 %v536
    %v2022 = vunpack.c.l.b16 %v537
    %v2023 = vunpack.c.h.b16 %v537
    %v2024 = vunpack.c.l.b16 %v538
    %v2025 = vunpack.c.h.b16 %v538
    %v2026 = vunpack.c.l.b16 %v539
    %v2027 = vunpack.c.h.b16 %v539
    %v2028 = vunpack.c.l.b16 %v540
    %v2029 = vunpack.c.h.b16 %v540
    %v2030 = vunpack.c.l.b16 %v541
    %v2031 = vunpack.c.h.b16 %v541
    %v2032 = vunpack.c.l.b16 %v542
    %v2033 = vunpack.c.h.b16 %v542
    %v2034 = vunpack.c.l.b16 %v543
    %v2035 = vunpack.c.h.b16 %v543
    %v2036 = vunpack.c.l.b16 %v544
    %v2037 = vunpack.c.h.b16 %v544
    %v2038 = vunpack.c.l.b16 %v545
    %v2039 = vunpack.c.h.b16 %v545
    %v2040 = vunpack.c.l.b16 %v546
    %v2041 = vunpack.c.h.b16 %v546
    %v2042 = vunpack.c.l.b16 %v547
    %v2043 = vunpack.c.h.b16 %v547
    %v2044 = vunpack.c.l.b16 %v548
    %v2045 = vunpack.c.h.b16 %v548
    %v2046 = vunpack.c.l.b16 %v549
    %v2047 = vunpack.c.h.b16 %v549
    %v2048 = vunpack.c.l.b16 %v550
    %v2049 = vunpack.c.h.b16 %v550
    %v2050 = vunpack.c.l.b16 %v551
    %v2051 = vunpack.c.h.b16 %v551
    %v2052 = vunpack.c.l.b16 %v552
    %v2053 = vunpack.c.h.b16 %v552
    %v2054 = vunpack.c.l.b16 %v553
    %v2055 = vunpack.c.h.b16 %v553
    %v2056 = vunpack.c.l.b16 %v554
    %v2057 = vunpack.c.h.b16 %v554
    %v2058 = vunpack.c.l.b16 %v555
    %v2059 = vunpack.c.h.b16 %v555
    %v2060 = vunpack.c.l.b16 %v556
    %v2061 = vunpack.c.h.b16 %v556
    %v2062 = vunpack.c.l.b16 %v557
    %v2063 = vunpack.c.h.b16 %v557
    %v2064 = vunpack.c.l.b16 %v558
    %v2065 = vunpack.c.h.b16 %v558
    %v2066 = vunpack.c.l.b16 %v559
    %v2067 = vunpack.c.h.b16 %v559
    %v2068 = vunpack.c.l.b16 %v560
    %v2069 = vunpack.c.h.b16 %v560
    %v2070 = vunpack.c.l.b16 %v561
    %v2071 = vunpack.c.h.b16 %v561
    %v2072 = vunpack.c.l.b16 %v562
    %v2073 = vunpack.c.h.b16 %v562
    %v2074 = vunpack.c.l.b16 %v563
    %v2075 = vunpack.c.h.b16 %v563
    %v2076 = vunpack.c.l.b16 %v564
    %v2077 = vunpack.c.h.b16 %v564
    %v2078 = vunpack.c.l.b16 %v565
    %v2079 = vunpack.c.h.b16 %v565
    %v2080 = vunpack.c.l.b16 %v566
    %v2081 = vunpack.c.h.b16 %v566
    %v2082 = vunpack.c.l.b16 %v567
    %v2083 = vunpack.c.h.b16 %v567
    %v2084 = vunpack.c.l.b16 %v568
    %v2085 = vunpack.c.h.b16 %v568
    %v2086 = vunpack.c.l.b16 %v569
    %v2087 = vunpack.c.h.b16 %v569
    %v2088 = vunpack.c.l.b16 %v570
    %v2089 = vunpack.c.h.b16 %v570
    %v2090 = vunpack.c.l.b16 %v571
    %v2091 = vunpack.c.h.b16 %v571
    %v2092 = vunpack.c.l.b16 %v572
    %v2093 = vunpack.c.h.b16 %v572
    %v2094 = vunpack.c.l.b16 %v573
    %v2095 = vunpack.c.h.b16 %v573
    %v2096 = vunpack.c.l.b16 %v574
    %v2097 = vunpack.c.h.b16 %v574
    %v2098 = vunpack.c.l.b16 %v575
    %v2099 = vunpack.c.h.b16 %v575
    %v2100 = vunpack.c.l.b16 %v576
    %v2101 = vunpack.c.h.b16 %v576
    %v2102 = vunpack.c.l.b16 %v577
    %v2103 = vunpack.c.h.b16 %v577
    %v2104 = vunpack.c.l.b16 %v578
    %v2105 = vunpack.c.h.b16 %v578
    %v2106 = vunpack.c.l.b16 %v579
    %v2107 = vunpack.c.h.b16 %v579
    %v2108 = vunpack.c.l.b16 %v580
    %v2109 = vunpack.c.h.b16 %v580
    %v2110 = vunpack.c.l.b16 %v581
    %v2111 = vunpack.c.h.b16 %v581
    %v2112 = vunpack.c.l.b16 %v582
    %v2113 = vunpack.c.h.b16 %v582
    %v2114 = vunpack.c.l.b16 %v583
    %v2115 = vunpack.c.h.b16 %v583
    %v2116 = vunpack.c.l.b16 %v584
    %v2117 = vunpack.c.h.b16 %v584
    %v2118 = vunpack.c.l.b16 %v585
    %v2119 = vunpack.c.h.b16 %v585
    %v2120 = vunpack.c.l.b16 %v586
    %v2121 = vunpack.c.h.b16 %v586
    %v2122 = vunpack.c.l.b16 %v587
    %v2123 = vunpack.c.h.b16 %v587
    %v2124 = vunpack.c.l.b16 %v588
    %v2125 = vunpack.c.h.b16 %v588
    %v2126 = vunpack.c.l.b16 %v589
    %v2127 = vunpack.c.h.b16 %v589
    %v2128 = vunpack.c.l.b16 %v590
    %v2129 = vunpack.c.h.b16 %v590
    %v2130 = vunpack.c.l.b16 %v591
    %v2131 = vunpack.c.h.b16 %v591
    %v2132 = vunpack.c.l.b16 %v592
    %v2133 = vunpack.c.h.b16 %v592
    %v2134 = vunpack.c.l.b16 %v593
    %v2135 = vunpack.c.h.b16 %v593
    %v2136 = vunpack.c.l.b16 %v594
    %v2137 = vunpack.c.h.b16 %v594
    %v2138 = vunpack.c.l.b16 %v595
    %v2139 = vunpack.c.h.b16 %v595
    %v2140 = vunpack.c.l.b16 %v596
    %v2141 = vunpack.c.h.b16 %v596
    %v2142 = vunpack.c.l.b16 %v597
    %v2143 = vunpack.c.h.b16 %v597
    %v2144 = vunpack.c.l.b16 %v598
    %v2145 = vunpack.c.h.b16 %v598
    %v2146 = vunpack.c.l.b16 %v599
    %v2147 = vunpack.c.h.b16 %v599
    %v2148 = vunpack.c.l.b16 %v600
    %v2149 = vunpack.c.h.b16 %v600
    %v2150 = vunpack.c.l.b16 %v601
    %v2151 = vunpack.c.h.b16 %v601
    %v2152 = vunpack.c.l.b16 %v602
    %v2153 = vunpack.c.h.b16 %v602
    %v2154 = vunpack.c.l.b16 %v603
    %v2155 = vunpack.c.h.b16 %v603
    %v2156 = vunpack.c.l.b16 %v604
    %v2157 = vunpack.c.h.b16 %v604
    %v2158 = vunpack.c.l.b16 %v605
    %v2159 = vunpack.c.h.b16 %v605
    %v2160 = vunpack.c.l.b16 %v606
    %v2161 = vunpack.c.h.b16 %v606
    %v2162 = vunpack.c.l.b16 %v607
    %v2163 = vunpack.c.h.b16 %v607
    %v2164 = vunpack.c.l.b16 %v608
    %v2165 = vunpack.c.h.b16 %v608
    %v2166 = vunpack.c.l.b16 %v609
    %v2167 = vunpack.c.h.b16 %v609
    %v2168 = vunpack.c.l.b16 %v610
    %v2169 = vunpack.c.h.b16 %v610
    %v2170 = vunpack.c.l.b16 %v611
    %v2171 = vunpack.c.h.b16 %v611
    %v2172 = vunpack.c.l.b16 %v612
    %v2173 = vunpack.c.h.b16 %v612
    %v2174 = vunpack.c.l.b16 %v613
    %v2175 = vunpack.c.h.b16 %v613
    %v2176 = vunpack.c.l.b16 %v614
    %v2177 = vunpack.c.h.b16 %v614
    %v2178 = vunpack.c.l.b16 %v615
    %v2179 = vunpack.c.h.b16 %v615
    %v2180 = vunpack.c.l.b16 %v616
    %v2181 = vunpack.c.h.b16 %v616
    %v2182 = vunpack.c.l.b16 %v617
    %v2183 = vunpack.c.h.b16 %v617
    %v2184 = vunpack.c.l.b16 %v618
    %v2185 = vunpack.c.h.b16 %v618
    %v2186 = vunpack.c.l.b16 %v619
    %v2187 = vunpack.c.h.b16 %v619
    %v2188 = vunpack.c.l.b16 %v620
    %v2189 = vunpack.c.h.b16 %v620
    %v2190 = vunpack.c.l.b16 %v621
    %v2191 = vunpack.c.h.b16 %v621
    %v2192 = vunpack.c.l.b16 %v622
    %v2193 = vunpack.c.h.b16 %v622
    %v2194 = vunpack.c.l.b16 %v623
    %v2195 = vunpack.c.h.b16 %v623
    %v2196 = vunpack.c.l.b16 %v624
    %v2197 = vunpack.c.h.b16 %v624
    %v2198 = vunpack.c.l.b16 %v625
    %v2199 = vunpack.c.h.b16 %v625
    %v2200 = vunpack.c.l.b16 %v626
    %v2201 = vunpack.c.h.b16 %v626
    %v2202 = vunpack.c.l.b16 %v627
    %v2203 = vunpack.c.h.b16 %v627
    %v2204 = vpack.c.b16 %v1188, %v1180
    %v2205 = vpack.c.b16 %v1189, %v1181
    %v2206 = vpack.c.b16 %v1190, %v1182
    %v2207 = vpack.c.b16 %v1191, %v1183
    %v2208 = vpack.c.b16 %v1192, %v1184
    %v2209 = vpack.c.b16 %v1193, %v1185
    %v2210 = vpack.c.b16 %v1194, %v1186
    %v2211 = vpack.c.b16 %v1195, %v1187
    %v2212 = vpack.c.b16 %v1204, %v1196
    %v2213 = vpack.c.b16 %v1205, %v1197
    %v2214 = vpack.c.b16 %v1206, %v1198
    %v2215 = vpack.c.b16 %v1207, %v1199
    %v2216 = vpack.c.b16 %v1208, %v1200
    %v2217 = vpack.c.b16 %v1209, %v1201
    %v2218 = vpack.c.b16 %v1210, %v1202
    %v2219 = vpack.c.b16 %v1211, %v1203
    %v2220 = vpack.c.b16 %v1220, %v1212
    %v2221 = vpack.c.b16 %v1221, %v1213
    %v2222 = vpack.c.b16 %v1222, %v1214
    %v2223 = vpack.c.b16 %v1223, %v1215
    %v2224 = vpack.c.b16 %v1224, %v1216
    %v2225 = vpack.c.b16 %v1225, %v1217
    %v2226 = vpack.c.b16 %v1226, %v1218
    %v2227 = vpack.c.b16 %v1227, %v1219
    %v2228 = vpack.c.b16 %v1236, %v1228
    %v2229 = vpack.c.b16 %v1237, %v1229
    %v2230 = vpack.c.b16 %v1238, %v1230
    %v2231 = vpack.c.b16 %v1239, %v1231
    %v2232 = vpack.c.b16 %v1240, %v1232
    %v2233 = vpack.c.b16 %v1241, %v1233
    %v2234 = vpack.c.b16 %v1242, %v1234
    %v2235 = vpack.c.b16 %v1243, %v1235
    %v2236 = vpack.c.b16 %v1252, %v1244
    %v2237 = vpack.c.b16 %v1253, %v1245
    %v2238 = vpack.c.b16 %v1254, %v1246
    %v2239 = vpack.c.b16 %v1255, %v1247
    %v2240 = vpack.c.b16 %v1256, %v1248
    %v2241 = vpack.c.b16 %v1257, %v1249
    %v2242 = vpack.c.b16 %v1258, %v1250
    %v2243 = vpack.c.b16 %v1259, %v1251
    %v2244 = vpack.c.b16 %v1268, %v1260
    %v2245 = vpack.c.b16 %v1269, %v1261
    %v2246 = vpack.c.b16 %v1270, %v1262
    %v2247 = vpack.c.b16 %v1271, %v1263
    %v2248 = vpack.c.b16 %v1272, %v1264
    %v2249 = vpack.c.b16 %v1273, %v1265
    %v2250 = vpack.c.b16 %v1274, %v1266
    %v2251 = vpack.c.b16 %v1275, %v1267
    %v2252 = vpack.c.b16 %v1284, %v1276
    %v2253 = vpack.c.b16 %v1285, %v1277
    %v2254 = vpack.c.b16 %v1286, %v1278
    %v2255 = vpack.c.b16 %v1287, %v1279
    %v2256 = vpack.c.b16 %v1288, %v1280
    %v2257 = vpack.c.b16 %v1289, %v1281
    %v2258 = vpack.c.b16 %v1290, %v1282
    %v2259 = vpack.c.b16 %v1291, %v1283
    %v2260 = vpack.c.b16 %v1300, %v1292
    %v2261 = vpack.c.b16 %v1301, %v1293
    %v2262 = vpack.c.b16 %v1302, %v1294
    %v2263 = vpack.c.b16 %v1303, %v1295
    %v2264 = vpack.c.b16 %v1304, %v1296
    %v2265 = vpack.c.b16 %v1305, %v1297
    %v2266 = vpack.c.b16 %v1306, %v1298
    %v2267 = vpack.c.b16 %v1307, %v1299
    %v2268 = vpack.c.b16 %v1316, %v1308
    %v2269 = vpack.c.b16 %v1317, %v1309
    %v2270 = vpack.c.b16 %v1318, %v1310
    %v2271 = vpack.c.b16 %v1319, %v1311
    %v2272 = vpack.c.b16 %v1320, %v1312
    %v2273 = vpack.c.b16 %v1321, %v1313
    %v2274 = vpack.c.b16 %v1322, %v1314
    %v2275 = vpack.c.b16 %v1323, %v1315
    %v2276 = vpack.c.b16 %v1332, %v1324
    %v2277 = vpack.c.b16 %v1333, %v1325
    %v2278 = vpack.c.b16 %v1334, %v1326
    %v2279 = vpack.c.b16 %v1335, %v1327
    %v2280 = vpack.c.b16 %v1336, %v1328
    %v2281 = vpack.c.b16 %v1337, %v1329
    %v2282 = vpack.c.b16 %v1338, %v1330
    %v2283 = vpack.c.b16 %v1339, %v1331
    %v2284 = vpack.c.b16 %v1348, %v1340
    %v2285 = vpack.c.b16 %v1349, %v1341
    %v2286 = vpack.c.b16 %v1350, %v1342
    %v2287 = vpack.c.b16 %v1351, %v1343
    %v2288 = vpack.c.b16 %v1352, %v1344
    %v2289 = vpack.c.b16 %v1353, %v1345
    %v2290 = vpack.c.b16 %v1354, %v1346
    %v2291 = vpack.c.b16 %v1355, %v1347
    %v2292 = vpack.c.b16 %v1364, %v1356
    %v2293 = vpack.c.b16 %v1365, %v1357
    %v2294 = vpack.c.b16 %v1366, %v1358
    %v2295 = vpack.c.b16 %v1367, %v1359
    %v2296 = vpack.c.b16 %v1368, %v1360
    %v2297 = vpack.c.b16 %v1369, %v1361
    %v2298 = vpack.c.b16 %v1370, %v1362
    %v2299 = vpack.c.b16 %v1371, %v1363
    %v2300 = vpack.c.b16 %v1380, %v1372
    %v2301 = vpack.c.b16 %v1381, %v1373
    %v2302 = vpack.c.b16 %v1382, %v1374
    %v2303 = vpack.c.b16 %v1383, %v1375
    %v2304 = vpack.c.b16 %v1384, %v1376
    %v2305 = vpack.c.b16 %v1385, %v1377
    %v2306 = vpack.c.b16 %v1386, %v1378
    %v2307 = vpack.c.b16 %v1387, %v1379
    %v2308 = vpack.c.b16 %v1396, %v1388
    %v2309 = vpack.c.b16 %v1397, %v1389
    %v2310 = vpack.c.b16 %v1398, %v1390
    %v2311 = vpack.c.b16 %v1399, %v1391
    %v2312 = vpack.c.b16 %v1400, %v1392
    %v2313 = vpack.c.b16 %v1401, %v1393
    %v2314 = vpack.c.b16 %v1402, %v1394
    %v2315 = vpack.c.b16 %v1403, %v1395
    %v2316 = vpack.c.b16 %v1412, %v1404
    %v2317 = vpack.c.b16 %v1413, %v1405
    %v2318 = vpack.c.b16 %v1414, %v1406
    %v2319 = vpack.c.b16 %v1415, %v1407
    %v2320 = vpack.c.b16 %v1416, %v1408
    %v2321 = vpack.c.b16 %v1417, %v1409
    %v2322 = vpack.c.b16 %v1418, %v1410
    %v2323 = vpack.c.b16 %v1419, %v1411
    %v2324 = vpack.c.b16 %v1428, %v1420
    %v2325 = vpack.c.b16 %v1429, %v1421
    %v2326 = vpack.c.b16 %v1430, %v1422
    %v2327 = vpack.c.b16 %v1431, %v1423
    %v2328 = vpack.c.b16 %v1432, %v1424
    %v2329 = vpack.c.b16 %v1433, %v1425
    %v2330 = vpack.c.b16 %v1434, %v1426
    %v2331 = vpack.c.b16 %v1435, %v1427
    %v2332 = vpack.c.b16 %v1444, %v1436
    %v2333 = vpack.c.b16 %v1445, %v1437
    %v2334 = vpack.c.b16 %v1446, %v1438
    %v2335 = vpack.c.b16 %v1447, %v1439
    %v2336 = vpack.c.b16 %v1448, %v1440
    %v2337 = vpack.c.b16 %v1449, %v1441
    %v2338 = vpack.c.b16 %v1450, %v1442
    %v2339 = vpack.c.b16 %v1451, %v1443
    %v2340 = vpack.c.b16 %v1460, %v1452
    %v2341 = vpack.c.b16 %v1461, %v1453
    %v2342 = vpack.c.b16 %v1462, %v1454
    %v2343 = vpack.c.b16 %v1463, %v1455
    %v2344 = vpack.c.b16 %v1464, %v1456
    %v2345 = vpack.c.b16 %v1465, %v1457
    %v2346 = vpack.c.b16 %v1466, %v1458
    %v2347 = vpack.c.b16 %v1467, %v1459
    %v2348 = vpack.c.b16 %v1476, %v1468
    %v2349 = vpack.c.b16 %v1477, %v1469
    %v2350 = vpack.c.b16 %v1478, %v1470
    %v2351 = vpack.c.b16 %v1479, %v1471
    %v2352 = vpack.c.b16 %v1480, %v1472
    %v2353 = vpack.c.b16 %v1481, %v1473
    %v2354 = vpack.c.b16 %v1482, %v1474
    %v2355 = vpack.c.b16 %v1483, %v1475
    %v2356 = vpack.c.b16 %v1492, %v1484
    %v2357 = vpack.c.b16 %v1493, %v1485
    %v2358 = vpack.c.b16 %v1494, %v1486
    %v2359 = vpack.c.b16 %v1495, %v1487
    %v2360 = vpack.c.b16 %v1496, %v1488
    %v2361 = vpack.c.b16 %v1497, %v1489
    %v2362 = vpack.c.b16 %v1498, %v1490
    %v2363 = vpack.c.b16 %v1499, %v1491
    %v2364 = vpack.c.b16 %v1508, %v1500
    %v2365 = vpack.c.b16 %v1509, %v1501
    %v2366 = vpack.c.b16 %v1510, %v1502
    %v2367 = vpack.c.b16 %v1511, %v1503
    %v2368 = vpack.c.b16 %v1512, %v1504
    %v2369 = vpack.c.b16 %v1513, %v1505
    %v2370 = vpack.c.b16 %v1514, %v1506
    %v2371 = vpack.c.b16 %v1515, %v1507
    %v2372 = vpack.c.b16 %v1524, %v1516
    %v2373 = vpack.c.b16 %v1525, %v1517
    %v2374 = vpack.c.b16 %v1526, %v1518
    %v2375 = vpack.c.b16 %v1527, %v1519
    %v2376 = vpack.c.b16 %v1528, %v1520
    %v2377 = vpack.c.b16 %v1529, %v1521
    %v2378 = vpack.c.b16 %v1530, %v1522
    %v2379 = vpack.c.b16 %v1531, %v1523
    %v2380 = vpack.c.b16 %v1540, %v1532
    %v2381 = vpack.c.b16 %v1541, %v1533
    %v2382 = vpack.c.b16 %v1542, %v1534
    %v2383 = vpack.c.b16 %v1543, %v1535
    %v2384 = vpack.c.b16 %v1544, %v1536
    %v2385 = vpack.c.b16 %v1545, %v1537
    %v2386 = vpack.c.b16 %v1546, %v1538
    %v2387 = vpack.c.b16 %v1547, %v1539
    %v2388 = vpack.c.b16 %v1556, %v1548
    %v2389 = vpack.c.b16 %v1557, %v1549
    %v2390 = vpack.c.b16 %v1558, %v1550
    %v2391 = vpack.c.b16 %v1559, %v1551
    %v2392 = vpack.c.b16 %v1560, %v1552
    %v2393 = vpack.c.b16 %v1561, %v1553
    %v2394 = vpack.c.b16 %v1562, %v1554
    %v2395 = vpack.c.b16 %v1563, %v1555
    %v2396 = vpack.c.b16 %v1572, %v1564
    %v2397 = vpack.c.b16 %v1573, %v1565
    %v2398 = vpack.c.b16 %v1574, %v1566
    %v2399 = vpack.c.b16 %v1575, %v1567
    %v2400 = vpack.c.b16 %v1576, %v1568
    %v2401 = vpack.c.b16 %v1577, %v1569
    %v2402 = vpack.c.b16 %v1578, %v1570
    %v2403 = vpack.c.b16 %v1579, %v1571
    %v2404 = vpack.c.b16 %v1588, %v1580
    %v2405 = vpack.c.b16 %v1589, %v1581
    %v2406 = vpack.c.b16 %v1590, %v1582
    %v2407 = vpack.c.b16 %v1591, %v1583
    %v2408 = vpack.c.b16 %v1592, %v1584
    %v2409 = vpack.c.b16 %v1593, %v1585
    %v2410 = vpack.c.b16 %v1594, %v1586
    %v2411 = vpack.c.b16 %v1595, %v1587
    %v2412 = vpack.c.b16 %v1604, %v1596
    %v2413 = vpack.c.b16 %v1605, %v1597
    %v2414 = vpack.c.b16 %v1606, %v1598
    %v2415 = vpack.c.b16 %v1607, %v1599
    %v2416 = vpack.c.b16 %v1608, %v1600
    %v2417 = vpack.c.b16 %v1609, %v1601
    %v2418 = vpack.c.b16 %v1610, %v1602
    %v2419 = vpack.c.b16 %v1611, %v1603
    %v2420 = vpack.c.b16 %v1620, %v1612
    %v2421 = vpack.c.b16 %v1621, %v1613
    %v2422 = vpack.c.b16 %v1622, %v1614
    %v2423 = vpack.c.b16 %v1623, %v1615
    %v2424 = vpack.c.b16 %v1624, %v1616
    %v2425 = vpack.c.b16 %v1625, %v1617
    %v2426 = vpack.c.b16 %v1626, %v1618
    %v2427 = vpack.c.b16 %v1627, %v1619
    %v2428 = vpack.c.b16 %v1636, %v1628
    %v2429 = vpack.c.b16 %v1637, %v1629
    %v2430 = vpack.c.b16 %v1638, %v1630
    %v2431 = vpack.c.b16 %v1639, %v1631
    %v2432 = vpack.c.b16 %v1640, %v1632
    %v2433 = vpack.c.b16 %v1641, %v1633
    %v2434 = vpack.c.b16 %v1642, %v1634
    %v2435 = vpack.c.b16 %v1643, %v1635
    %v2436 = vpack.c.b16 %v1652, %v1644
    %v2437 = vpack.c.b16 %v1653, %v1645
    %v2438 = vpack.c.b16 %v1654, %v1646
    %v2439 = vpack.c.b16 %v1655, %v1647
    %v2440 = vpack.c.b16 %v1656, %v1648
    %v2441 = vpack.c.b16 %v1657, %v1649
    %v2442 = vpack.c.b16 %v1658, %v1650
    %v2443 = vpack.c.b16 %v1659, %v1651
    %v2444 = vpack.c.b16 %v1668, %v1660
    %v2445 = vpack.c.b16 %v1669, %v1661
    %v2446 = vpack.c.b16 %v1670, %v1662
    %v2447 = vpack.c.b16 %v1671, %v1663
    %v2448 = vpack.c.b16 %v1672, %v1664
    %v2449 = vpack.c.b16 %v1673, %v1665
    %v2450 = vpack.c.b16 %v1674, %v1666
    %v2451 = vpack.c.b16 %v1675, %v1667
    %v2452 = vpack.c.b16 %v1684, %v1676
    %v2453 = vpack.c.b16 %v1685, %v1677
    %v2454 = vpack.c.b16 %v1686, %v1678
    %v2455 = vpack.c.b16 %v1687, %v1679
    %v2456 = vpack.c.b16 %v1688, %v1680
    %v2457 = vpack.c.b16 %v1689, %v1681
    %v2458 = vpack.c.b16 %v1690, %v1682
    %v2459 = vpack.c.b16 %v1691, %v1683
    %v2460 = vpack.c.b16 %v1700, %v1692
    %v2461 = vpack.c.b16 %v1701, %v1693
    %v2462 = vpack.c.b16 %v1702, %v1694
    %v2463 = vpack.c.b16 %v1703, %v1695
    %v2464 = vpack.c.b16 %v1704, %v1696
    %v2465 = vpack.c.b16 %v1705, %v1697
    %v2466 = vpack.c.b16 %v1706, %v1698
    %v2467 = vpack.c.b16 %v1707, %v1699
    %v2468 = vpack.c.b16 %v1716, %v1708
    %v2469 = vpack.c.b16 %v1717, %v1709
    %v2470 = vpack.c.b16 %v1718, %v1710
    %v2471 = vpack.c.b16 %v1719, %v1711
    %v2472 = vpack.c.b16 %v1720, %v1712
    %v2473 = vpack.c.b16 %v1721, %v1713
    %v2474 = vpack.c.b16 %v1722, %v1714
    %v2475 = vpack.c.b16 %v1723, %v1715
    %v2476 = vpack.c.b16 %v1732, %v1724
    %v2477 = vpack.c.b16 %v1733, %v1725
    %v2478 = vpack.c.b16 %v1734, %v1726
    %v2479 = vpack.c.b16 %v1735, %v1727
    %v2480 = vpack.c.b16 %v1736, %v1728
    %v2481 = vpack.c.b16 %v1737, %v1729
    %v2482 = vpack.c.b16 %v1738, %v1730
    %v2483 = vpack.c.b16 %v1739, %v1731
    %v2484 = vpack.c.b16 %v1748, %v1740
    %v2485 = vpack.c.b16 %v1749, %v1741
    %v2486 = vpack.c.b16 %v1750, %v1742
    %v2487 = vpack.c.b16 %v1751, %v1743
    %v2488 = vpack.c.b16 %v1752, %v1744
    %v2489 = vpack.c.b16 %v1753, %v1745
    %v2490 = vpack.c.b16 %v1754, %v1746
    %v2491 = vpack.c.b16 %v1755, %v1747
    %v2492 = vpack.c.b16 %v1764, %v1756
    %v2493 = vpack.c.b16 %v1765, %v1757
    %v2494 = vpack.c.b16 %v1766, %v1758
    %v2495 = vpack.c.b16 %v1767, %v1759
    %v2496 = vpack.c.b16 %v1768, %v1760
    %v2497 = vpack.c.b16 %v1769, %v1761
    %v2498 = vpack.c.b16 %v1770, %v1762
    %v2499 = vpack.c.b16 %v1771, %v1763
    %v2500 = vpack.c.b16 %v1780, %v1772
    %v2501 = vpack.c.b16 %v1781, %v1773
    %v2502 = vpack.c.b16 %v1782, %v1774
    %v2503 = vpack.c.b16 %v1783, %v1775
    %v2504 = vpack.c.b16 %v1784, %v1776
    %v2505 = vpack.c.b16 %v1785, %v1777
    %v2506 = vpack.c.b16 %v1786, %v1778
    %v2507 = vpack.c.b16 %v1787, %v1779
    %v2508 = vpack.c.b16 %v1796, %v1788
    %v2509 = vpack.c.b16 %v1797, %v1789
    %v2510 = vpack.c.b16 %v1798, %v1790
    %v2511 = vpack.c.b16 %v1799, %v1791
    %v2512 = vpack.c.b16 %v1800, %v1792
    %v2513 = vpack.c.b16 %v1801, %v1793
    %v2514 = vpack.c.b16 %v1802, %v1794
    %v2515 = vpack.c.b16 %v1803, %v1795
    %v2516 = vpack.c.b16 %v1812, %v1804
    %v2517 = vpack.c.b16 %v1813, %v1805
    %v2518 = vpack.c.b16 %v1814, %v1806
    %v2519 = vpack.c.b16 %v1815, %v1807
    %v2520 = vpack.c.b16 %v1816, %v1808
    %v2521 = vpack.c.b16 %v1817, %v1809
    %v2522 = vpack.c.b16 %v1818, %v1810
    %v2523 = vpack.c.b16 %v1819, %v1811
    %v2524 = vpack.c.b16 %v1828, %v1820
    %v2525 = vpack.c.b16 %v1829, %v1821
    %v2526 = vpack.c.b16 %v1830, %v1822
    %v2527 = vpack.c.b16 %v1831, %v1823
    %v2528 = vpack.c.b16 %v1832, %v1824
    %v2529 = vpack.c.b16 %v1833, %v1825
    %v2530 = vpack.c.b16 %v1834, %v1826
    %v2531 = vpack.c.b16 %v1835, %v1827
    %v2532 = vpack.c.b16 %v1844, %v1836
    %v2533 = vpack.c.b16 %v1845, %v1837
    %v2534 = vpack.c.b16 %v1846, %v1838
    %v2535 = vpack.c.b16 %v1847, %v1839
    %v2536 = vpack.c.b16 %v1848, %v1840
    %v2537 = vpack.c.b16 %v1849, %v1841
    %v2538 = vpack.c.b16 %v1850, %v1842
    %v2539 = vpack.c.b16 %v1851, %v1843
    %v2540 = vpack.c.b16 %v1860, %v1852
    %v2541 = vpack.c.b16 %v1861, %v1853
    %v2542 = vpack.c.b16 %v1862, %v1854
    %v2543 = vpack.c.b16 %v1863, %v1855
    %v2544 = vpack.c.b16 %v1864, %v1856
    %v2545 = vpack.c.b16 %v1865, %v1857
    %v2546 = vpack.c.b16 %v1866, %v1858
    %v2547 = vpack.c.b16 %v1867, %v1859
    %v2548 = vpack.c.b16 %v1876, %v1868
    %v2549 = vpack.c.b16 %v1877, %v1869
    %v2550 = vpack.c.b16 %v1878, %v1870
    %v2551 = vpack.c.b16 %v1879, %v1871
    %v2552 = vpack.c.b16 %v1880, %v1872
    %v2553 = vpack.c.b16 %v1881, %v1873
    %v2554 = vpack.c.b16 %v1882, %v1874
    %v2555 = vpack.c.b16 %v1883, %v1875
    %v2556 = vpack.c.b16 %v1892, %v1884
    %v2557 = vpack.c.b16 %v1893, %v1885
    %v2558 = vpack.c.b16 %v1894, %v1886
    %v2559 = vpack.c.b16 %v1895, %v1887
    %v2560 = vpack.c.b16 %v1896, %v1888
    %v2561 = vpack.c.b16 %v1897, %v1889
    %v2562 = vpack.c.b16 %v1898, %v1890
    %v2563 = vpack.c.b16 %v1899, %v1891
    %v2564 = vpack.c.b16 %v1908, %v1900
    %v2565 = vpack.c.b16 %v1909, %v1901
    %v2566 = vpack.c.b16 %v1910, %v1902
    %v2567 = vpack.c.b16 %v1911, %v1903
    %v2568 = vpack.c.b16 %v1912, %v1904
    %v2569 = vpack.c.b16 %v1913, %v1905
    %v2570 = vpack.c.b16 %v1914, %v1906
    %v2571 = vpack.c.b16 %v1915, %v1907
    %v2572 = vpack.c.b16 %v1924, %v1916
    %v2573 = vpack.c.b16 %v1925, %v1917
    %v2574 = vpack.c.b16 %v1926, %v1918
    %v2575 = vpack.c.b16 %v1927, %v1919
    %v2576 = vpack.c.b16 %v1928, %v1920
    %v2577 = vpack.c.b16 %v1929, %v1921
    %v2578 = vpack.c.b16 %v1930, %v1922
    %v2579 = vpack.c.b16 %v1931, %v1923
    %v2580 = vpack.c.b16 %v1940, %v1932
    %v2581 = vpack.c.b16 %v1941, %v1933
    %v2582 = vpack.c.b16 %v1942, %v1934
    %v2583 = vpack.c.b16 %v1943, %v1935
    %v2584 = vpack.c.b16 %v1944, %v1936
    %v2585 = vpack.c.b16 %v1945, %v1937
    %v2586 = vpack.c.b16 %v1946, %v1938
    %v2587 = vpack.c.b16 %v1947, %v1939
    %v2588 = vpack.c.b16 %v1956, %v1948
    %v2589 = vpack.c.b16 %v1957, %v1949
    %v2590 = vpack.c.b16 %v1958, %v1950
    %v2591 = vpack.c.b16 %v1959, %v1951
    %v2592 = vpack.c.b16 %v1960, %v1952
    %v2593 = vpack.c.b16 %v1961, %v1953
    %v2594 = vpack.c.b16 %v1962, %v1954
    %v2595 = vpack.c.b16 %v1963, %v1955
    %v2596 = vpack.c.b16 %v1972, %v1964
    %v2597 = vpack.c.b16 %v1973, %v1965
    %v2598 = vpack.c.b16 %v1974, %v1966
    %v2599 = vpack.c.b16 %v1975, %v1967
    %v2600 = vpack.c.b16 %v1976, %v1968
    %v2601 = vpack.c.b16 %v1977, %v1969
    %v2602 = vpack.c.b16 %v1978, %v1970
    %v2603 = vpack.c.b16 %v1979, %v1971
    %v2604 = vpack.c.b16 %v1988, %v1980
    %v2605 = vpack.c.b16 %v1989, %v1981
    %v2606 = vpack.c.b16 %v1990, %v1982
    %v2607 = vpack.c.b16 %v1991, %v1983
    %v2608 = vpack.c.b16 %v1992, %v1984
    %v2609 = vpack.c.b16 %v1993, %v1985
    %v2610 = vpack.c.b16 %v1994, %v1986
    %v2611 = vpack.c.b16 %v1995, %v1987
    %v2612 = vpack.c.b16 %v2004, %v1996
    %v2613 = vpack.c.b16 %v2005, %v1997
    %v2614 = vpack.c.b16 %v2006, %v1998
    %v2615 = vpack.c.b16 %v2007, %v1999
    %v2616 = vpack.c.b16 %v2008, %v2000
    %v2617 = vpack.c.b16 %v2009, %v2001
    %v2618 = vpack.c.b16 %v2010, %v2002
    %v2619 = vpack.c.b16 %v2011, %v2003
    %v2620 = vpack.c.b16 %v2020, %v2012
    %v2621 = vpack.c.b16 %v2021, %v2013
    %v2622 = vpack.c.b16 %v2022, %v2014
    %v2623 = vpack.c.b16 %v2023, %v2015
    %v2624 = vpack.c.b16 %v2024, %v2016
    %v2625 = vpack.c.b16 %v2025, %v2017
    %v2626 = vpack.c.b16 %v2026, %v2018
    %v2627 = vpack.c.b16 %v2027, %v2019
    %v2628 = vpack.c.b16 %v2036, %v2028
    %v2629 = vpack.c.b16 %v2037, %v2029
    %v2630 = vpack.c.b16 %v2038, %v2030
    %v2631 = vpack.c.b16 %v2039, %v2031
    %v2632 = vpack.c.b16 %v2040, %v2032
    %v2633 = vpack.c.b16 %v2041, %v2033
    %v2634 = vpack.c.b16 %v2042, %v2034
    %v2635 = vpack.c.b16 %v2043, %v2035
    %v2636 = vpack.c.b16 %v2052, %v2044
    %v2637 = vpack.c.b16 %v2053, %v2045
    %v2638 = vpack.c.b16 %v2054, %v2046
    %v2639 = vpack.c.b16 %v2055, %v2047
    %v2640 = vpack.c.b16 %v2056, %v2048
    %v2641 = vpack.c.b16 %v2057, %v2049
    %v2642 = vpack.c.b16 %v2058, %v2050
    %v2643 = vpack.c.b16 %v2059, %v2051
    %v2644 = vpack.c.b16 %v2068, %v2060
    %v2645 = vpack.c.b16 %v2069, %v2061
    %v2646 = vpack.c.b16 %v2070, %v2062
    %v2647 = vpack.c.b16 %v2071, %v2063
    %v2648 = vpack.c.b16 %v2072, %v2064
    %v2649 = vpack.c.b16 %v2073, %v2065
    %v2650 = vpack.c.b16 %v2074, %v2066
    %v2651 = vpack.c.b16 %v2075, %v2067
    %v2652 = vpack.c.b16 %v2084, %v2076
    %v2653 = vpack.c.b16 %v2085, %v2077
    %v2654 = vpack.c.b16 %v2086, %v2078
    %v2655 = vpack.c.b16 %v2087, %v2079
    %v2656 = vpack.c.b16 %v2088, %v2080
    %v2657 = vpack.c.b16 %v2089, %v2081
    %v2658 = vpack.c.b16 %v2090, %v2082
    %v2659 = vpack.c.b16 %v2091, %v2083
    %v2660 = vpack.c.b16 %v2100, %v2092
    %v2661 = vpack.c.b16 %v2101, %v2093
    %v2662 = vpack.c.b16 %v2102, %v2094
    %v2663 = vpack.c.b16 %v2103, %v2095
    %v2664 = vpack.c.b16 %v2104, %v2096
    %v2665 = vpack.c.b16 %v2105, %v2097
    %v2666 = vpack.c.b16 %v2106, %v2098
    %v2667 = vpack.c.b16 %v2107, %v2099
    %v2668 = vpack.c.b16 %v2116, %v2108
    %v2669 = vpack.c.b16 %v2117, %v2109
    %v2670 = vpack.c.b16 %v2118, %v2110
    %v2671 = vpack.c.b16 %v2119, %v2111
    %v2672 = vpack.c.b16 %v2120, %v2112
    %v2673 = vpack.c.b16 %v2121, %v2113
    %v2674 = vpack.c.b16 %v2122, %v2114
    %v2675 = vpack.c.b16 %v2123, %v2115
    %v2676 = vpack.c.b16 %v2132, %v2124
    %v2677 = vpack.c.b16 %v2133, %v2125
    %v2678 = vpack.c.b16 %v2134, %v2126
    %v2679 = vpack.c.b16 %v2135, %v2127
    %v2680 = vpack.c.b16 %v2136, %v2128
    %v2681 = vpack.c.b16 %v2137, %v2129
    %v2682 = vpack.c.b16 %v2138, %v2130
    %v2683 = vpack.c.b16 %v2139, %v2131
    %v2684 = vpack.c.b16 %v2148, %v2140
    %v2685 = vpack.c.b16 %v2149, %v2141
    %v2686 = vpack.c.b16 %v2150, %v2142
    %v2687 = vpack.c.b16 %v2151, %v2143
    %v2688 = vpack.c.b16 %v2152, %v2144
    %v2689 = vpack.c.b16 %v2153, %v2145
    %v2690 = vpack.c.b16 %v2154, %v2146
    %v2691 = vpack.c.b16 %v2155, %v2147
    %v2692 = vpack.c.b16 %v2164, %v2156
    %v2693 = vpack.c.b16 %v2165, %v2157
    %v2694 = vpack.c.b16 %v2166, %v2158
    %v2695 = vpack.c.b16 %v2167, %v2159
    %v2696 = vpack.c.b16 %v2168, %v2160
    %v2697 = vpack.c.b16 %v2169, %v2161
    %v2698 = vpack.c.b16 %v2170, %v2162
    %v2699 = vpack.c.b16 %v2171, %v2163
    %v2700 = vpack.c.b16 %v2180, %v2172
    %v2701 = vpack.c.b16 %v2181, %v2173
    %v2702 = vpack.c.b16 %v2182, %v2174
    %v2703 = vpack.c.b16 %v2183, %v2175
    %v2704 = vpack.c.b16 %v2184, %v2176
    %v2705 = vpack.c.b16 %v2185, %v2177
    %v2706 = vpack.c.b16 %v2186, %v2178
    %v2707 = vpack.c.b16 %v2187, %v2179
    %v2708 = vpack.c.b16 %v2196, %v2188
    %v2709 = vpack.c.b16 %v2197, %v2189
    %v2710 = vpack.c.b16 %v2198, %v2190
    %v2711 = vpack.c.b16 %v2199, %v2191
    %v2712 = vpack.c.b16 %v2200, %v2192
    %v2713 = vpack.c.b16 %v2201, %v2193
    %v2714 = vpack.c.b16 %v2202, %v2194
    %v2715 = vpack.c.b16 %v2203, %v2195
    %3228 = vmatprep.subr.bf16.mxu0 %v2205
    %3229 = vmatpush1.bf16.msra.mxu0 %v2204
    %3230 = vmatprep.subr.bf16.mxu0 %v2213
    %3231 = vmatpush1.bf16.msra.mxu0 %v2212
    %3232 = vmatprep.subr.bf16.mxu0 %v2221
    %3233 = vmatpush1.bf16.msra.mxu0 %v2220
    %3234 = vmatprep.subr.bf16.mxu0 %v2229
    %3235 = vmatpush1.bf16.msra.mxu0 %v2228
    %3236 = vmatprep.subr.bf16.mxu0 %v2237
    %3237 = vmatpush1.bf16.msra.mxu0 %v2236
    %3238 = vmatprep.subr.bf16.mxu0 %v2245
    %3239 = vmatpush1.bf16.msra.mxu0 %v2244
    %3240 = vmatprep.subr.bf16.mxu0 %v2253
    %3241 = vmatpush1.bf16.msra.mxu0 %v2252
    %3242 = vmatprep.subr.bf16.mxu0 %v2261
    %3243 = vmatpush1.bf16.msra.mxu0 %v2260
    %3244 = vmatprep.subr.bf16.mxu0 %v2269
    %3245 = vmatpush1.bf16.msra.mxu0 %v2268
    %3246 = vmatprep.subr.bf16.mxu0 %v2277
    %3247 = vmatpush1.bf16.msra.mxu0 %v2276
    %3248 = vmatprep.subr.bf16.mxu0 %v2285
    %3249 = vmatpush1.bf16.msra.mxu0 %v2284
    %3250 = vmatprep.subr.bf16.mxu0 %v2293
    %3251 = vmatpush1.bf16.msra.mxu0 %v2292
    %3252 = vmatprep.subr.bf16.mxu0 %v2301
    %3253 = vmatpush1.bf16.msra.mxu0 %v2300
    %3254 = vmatprep.subr.bf16.mxu0 %v2309
    %3255 = vmatpush1.bf16.msra.mxu0 %v2308
    %3256 = vmatprep.subr.bf16.mxu0 %v2317
    %3257 = vmatpush1.bf16.msra.mxu0 %v2316
    %3258 = vmatprep.subr.bf16.mxu0 %v2325
    %3259 = vmatpush1.bf16.msra.mxu0 %v2324
    %3260 = vmatprep.mubr.bf16.mxu0 %v653
    %3261 = vmatmul.mubr.bf16.gmra.mrb[0].mxu0 %v652
    %v3262 = vpop.f32.mrb[0].mxu0
    %v3263 = vadd.f32 0.0, %v3262
    %v3264 = vpop.f32.mrb[0].mxu0
    %v3265 = vadd.f32 0.0, %v3264
    %v3266 = vpop.f32.mrb[0].mxu0
    %v3267 = vadd.f32 0.0, %v3266
    %v3268 = vpop.f32.mrb[0].mxu0
    %v3269 = vadd.f32 0.0, %v3268
    %3270 = vdwg.mxu0
    %3271 = vmatprep.subr.bf16.mxu0 %v2333
    %3272 = vmatpush1.bf16.msra.mxu0 %v2332
    %3273 = vmatprep.subr.bf16.mxu0 %v2341
    %3274 = vmatpush1.bf16.msra.mxu0 %v2340
    %3275 = vmatprep.subr.bf16.mxu0 %v2349
    %3276 = vmatpush1.bf16.msra.mxu0 %v2348
    %3277 = vmatprep.subr.bf16.mxu0 %v2357
    %3278 = vmatpush1.bf16.msra.mxu0 %v2356
    %3279 = vmatprep.subr.bf16.mxu0 %v2365
    %3280 = vmatpush1.bf16.msra.mxu0 %v2364
    %3281 = vmatprep.subr.bf16.mxu0 %v2373
    %3282 = vmatpush1.bf16.msra.mxu0 %v2372
    %3283 = vmatprep.subr.bf16.mxu0 %v2381
    %3284 = vmatpush1.bf16.msra.mxu0 %v2380
    %3285 = vmatprep.subr.bf16.mxu0 %v2389
    %3286 = vmatpush1.bf16.msra.mxu0 %v2388
    %3287 = vmatprep.subr.bf16.mxu0 %v2397
    %3288 = vmatpush1.bf16.msra.mxu0 %v2396
    %3289 = vmatprep.subr.bf16.mxu0 %v2405
    %3290 = vmatpush1.bf16.msra.mxu0 %v2404
    %3291 = vmatprep.subr.bf16.mxu0 %v2413
    %3292 = vmatpush1.bf16.msra.mxu0 %v2412
    %3293 = vmatprep.subr.bf16.mxu0 %v2421
    %3294 = vmatpush1.bf16.msra.mxu0 %v2420
    %3295 = vmatprep.subr.bf16.mxu0 %v2429
    %3296 = vmatpush1.bf16.msra.mxu0 %v2428
    %3297 = vmatprep.subr.bf16.mxu0 %v2437
    %3298 = vmatpush1.bf16.msra.mxu0 %v2436
    %3299 = vmatprep.subr.bf16.mxu0 %v2445
    %3300 = vmatpush1.bf16.msra.mxu0 %v2444
    %3301 = vmatprep.subr.bf16.mxu0 %v2453
    %3302 = vmatpush1.bf16.msra.mxu0 %v2452
    %3303 = vmatprep.mubr.bf16.mxu0 %v655
    %3304 = vmatmul.mubr.bf16.gmra.mrb[0].mxu0 %v654
    %v3305 = vpop.f32.mrb[0].mxu0
    %v3306 = vadd.f32 %v3263, %v3305
    %v3307 = vpop.f32.mrb[0].mxu0
    %v3308 = vadd.f32 %v3265, %v3307
    %v3309 = vpop.f32.mrb[0].mxu0
    %v3310 = vadd.f32 %v3267, %v3309
    %v3311 = vpop.f32.mrb[0].mxu0
    %v3312 = vadd.f32 %v3269, %v3311
    %3313 = vdwg.mxu0
    %3314 = vmatprep.subr.bf16.mxu0 %v2461
    %3315 = vmatpush1.bf16.msra.mxu0 %v2460
    %3316 = vmatprep.subr.bf16.mxu0 %v2469
    %3317 = vmatpush1.bf16.msra.mxu0 %v2468
    %3318 = vmatprep.subr.bf16.mxu0 %v2477
    %3319 = vmatpush1.bf16.msra.mxu0 %v2476
    %3320 = vmatprep.subr.bf16.mxu0 %v2485
    %3321 = vmatpush1.bf16.msra.mxu0 %v2484
    %3322 = vmatprep.subr.bf16.mxu0 %v2493
    %3323 = vmatpush1.bf16.msra.mxu0 %v2492
    %3324 = vmatprep.subr.bf16.mxu0 %v2501
    %3325 = vmatpush1.bf16.msra.mxu0 %v2500
    %3326 = vmatprep.subr.bf16.mxu0 %v2509
    %3327 = vmatpush1.bf16.msra.mxu0 %v2508
    %3328 = vmatprep.subr.bf16.mxu0 %v2517
    %3329 = vmatpush1.bf16.msra.mxu0 %v2516
    %3330 = vmatprep.subr.bf16.mxu0 %v2525
    %3331 = vmatpush1.bf16.msra.mxu0 %v2524
    %3332 = vmatprep.subr.bf16.mxu0 %v2533
    %3333 = vmatpush1.bf16.msra.mxu0 %v2532
    %3334 = vmatprep.subr.bf16.mxu0 %v2541
    %3335 = vmatpush1.bf16.msra.mxu0 %v2540
    %3336 = vmatprep.subr.bf16.mxu0 %v2549
    %3337 = vmatpush1.bf16.msra.mxu0 %v2548
    %3338 = vmatprep.subr.bf16.mxu0 %v2557
    %3339 = vmatpush1.bf16.msra.mxu0 %v2556
    %3340 = vmatprep.subr.bf16.mxu0 %v2565
    %3341 = vmatpush1.bf16.msra.mxu0 %v2564
    %3342 = vmatprep.subr.bf16.mxu0 %v2573
    %3343 = vmatpush1.bf16.msra.mxu0 %v2572
    %3344 = vmatprep.subr.bf16.mxu0 %v2581
    %3345 = vmatpush1.bf16.msra.mxu0 %v2580
    %3346 = vmatprep.mubr.bf16.mxu0 %v657
    %3347 = vmatmul.mubr.bf16.gmra.mrb[0].mxu0 %v656
    %v3348 = vpop.f32.mrb[0].mxu0
    %v3349 = vadd.f32 %v3306, %v3348
    %v3350 = vpop.f32.mrb[0].mxu0
    %v3351 = vadd.f32 %v3308, %v3350
    %v3352 = vpop.f32.mrb[0].mxu0
    %v3353 = vadd.f32 %v3310, %v3352
    %v3354 = vpop.f32.mrb[0].mxu0
    %v3355 = vadd.f32 %v3312, %v3354
    %3356 = vdwg.mxu0
    %3357 = vmatprep.subr.bf16.mxu0 %v2589
    %3358 = vmatpush1.bf16.msra.mxu0 %v2588
    %3359 = vmatprep.subr.bf16.mxu0 %v2597
    %3360 = vmatpush1.bf16.msra.mxu0 %v2596
    %3361 = vmatprep.subr.bf16.mxu0 %v2605
    %3362 = vmatpush1.bf16.msra.mxu0 %v2604
    %3363 = vmatprep.subr.bf16.mxu0 %v2613
    %3364 = vmatpush1.bf16.msra.mxu0 %v2612
    %3365 = vmatprep.subr.bf16.mxu0 %v2621
    %3366 = vmatpush1.bf16.msra.mxu0 %v2620
    %3367 = vmatprep.subr.bf16.mxu0 %v2629
    %3368 = vmatpush1.bf16.msra.mxu0 %v2628
    %3369 = vmatprep.subr.bf16.mxu0 %v2637
    %3370 = vmatpush1.bf16.msra.mxu0 %v2636
    %3371 = vmatprep.subr.bf16.mxu0 %v2645
    %3372 = vmatpush1.bf16.msra.mxu0 %v2644
    %3373 = vmatprep.subr.bf16.mxu0 %v2653
    %3374 = vmatpush1.bf16.msra.mxu0 %v2652
    %3375 = vmatprep.subr.bf16.mxu0 %v2661
    %3376 = vmatpush1.bf16.msra.mxu0 %v2660
    %3377 = vmatprep.subr.bf16.mxu0 %v2669
    %3378 = vmatpush1.bf16.msra.mxu0 %v2668
    %3379 = vmatprep.subr.bf16.mxu0 %v2677
    %3380 = vmatpush1.bf16.msra.mxu0 %v2676
    %3381 = vmatprep.subr.bf16.mxu0 %v2685
    %3382 = vmatpush1.bf16.msra.mxu0 %v2684
    %3383 = vmatprep.subr.bf16.mxu0 %v2693
    %3384 = vmatpush1.bf16.msra.mxu0 %v2692
    %3385 = vmatprep.subr.bf16.mxu0 %v2701
    %3386 = vmatpush1.bf16.msra.mxu0 %v2700
    %3387 = vmatprep.subr.bf16.mxu0 %v2709
    %3388 = vmatpush1.bf16.msra.mxu0 %v2708
    %3389 = vmatprep.mubr.bf16.mxu0 %v659
    %3390 = vmatmul.mubr.bf16.gmra.mrb[0].mxu0 %v658
    %v3391 = vpop.f32.mrb[0].mxu0
    %v3392 = vadd.f32 %v3349, %v3391
    %v3393 = vpop.f32.mrb[0].mxu0
    %v3394 = vadd.f32 %v3351, %v3393
    %v3395 = vpop.f32.mrb[0].mxu0
    %v3396 = vadd.f32 %v3353, %v3395
    %v3397 = vpop.f32.mrb[0].mxu0
    %v3398 = vadd.f32 %v3355, %v3397
    %3399 = vdwg.mxu0
    %3400 = vmatprep.subr.bf16.mxu0 %v2207
    %3401 = vmatpush1.bf16.msra.mxu0 %v2206
    %3402 = vmatprep.subr.bf16.mxu0 %v2215
    %3403 = vmatpush1.bf16.msra.mxu0 %v2214
    %3404 = vmatprep.subr.bf16.mxu0 %v2223
    %3405 = vmatpush1.bf16.msra.mxu0 %v2222
    %3406 = vmatprep.subr.bf16.mxu0 %v2231
    %3407 = vmatpush1.bf16.msra.mxu0 %v2230
    %3408 = vmatprep.subr.bf16.mxu0 %v2239
    %3409 = vmatpush1.bf16.msra.mxu0 %v2238
    %3410 = vmatprep.subr.bf16.mxu0 %v2247
    %3411 = vmatpush1.bf16.msra.mxu0 %v2246
    %3412 = vmatprep.subr.bf16.mxu0 %v2255
    %3413 = vmatpush1.bf16.msra.mxu0 %v2254
    %3414 = vmatprep.subr.bf16.mxu0 %v2263
    %3415 = vmatpush1.bf16.msra.mxu0 %v2262
    %3416 = vmatprep.subr.bf16.mxu0 %v2271
    %3417 = vmatpush1.bf16.msra.mxu0 %v2270
    %3418 = vmatprep.subr.bf16.mxu0 %v2279
    %3419 = vmatpush1.bf16.msra.mxu0 %v2278
    %3420 = vmatprep.subr.bf16.mxu0 %v2287
    %3421 = vmatpush1.bf16.msra.mxu0 %v2286
    %3422 = vmatprep.subr.bf16.mxu0 %v2295
    %3423 = vmatpush1.bf16.msra.mxu0 %v2294
    %3424 = vmatprep.subr.bf16.mxu0 %v2303
    %3425 = vmatpush1.bf16.msra.mxu0 %v2302
    %3426 = vmatprep.subr.bf16.mxu0 %v2311
    %3427 = vmatpush1.bf16.msra.mxu0 %v2310
    %3428 = vmatprep.subr.bf16.mxu0 %v2319
    %3429 = vmatpush1.bf16.msra.mxu0 %v2318
    %3430 = vmatprep.subr.bf16.mxu0 %v2327
    %3431 = vmatpush1.bf16.msra.mxu0 %v2326
    %3432 = vmatprep.mubr.bf16.mxu0 %v653
    %3433 = vmatmul.mubr.bf16.gmra.mrb[0].mxu0 %v652
    %v3434 = vpop.f32.mrb[0].mxu0
    %v3435 = vadd.f32 0.0, %v3434
    %v3436 = vpop.f32.mrb[0].mxu0
    %v3437 = vadd.f32 0.0, %v3436
    %v3438 = vpop.f32.mrb[0].mxu0
    %v3439 = vadd.f32 0.0, %v3438
    %v3440 = vpop.f32.mrb[0].mxu0
    %v3441 = vadd.f32 0.0, %v3440
    %3442 = vdwg.mxu0
    %3443 = vmatprep.subr.bf16.mxu0 %v2335
    %3444 = vmatpush1.bf16.msra.mxu0 %v2334
    %3445 = vmatprep.subr.bf16.mxu0 %v2343
    %3446 = vmatpush1.bf16.msra.mxu0 %v2342
    %3447 = vmatprep.subr.bf16.mxu0 %v2351
    %3448 = vmatpush1.bf16.msra.mxu0 %v2350
    %3449 = vmatprep.subr.bf16.mxu0 %v2359
    %3450 = vmatpush1.bf16.msra.mxu0 %v2358
    %3451 = vmatprep.subr.bf16.mxu0 %v2367
    %3452 = vmatpush1.bf16.msra.mxu0 %v2366
    %3453 = vmatprep.subr.bf16.mxu0 %v2375
    %3454 = vmatpush1.bf16.msra.mxu0 %v2374
    %3455 = vmatprep.subr.bf16.mxu0 %v2383
    %3456 = vmatpush1.bf16.msra.mxu0 %v2382
    %3457 = vmatprep.subr.bf16.mxu0 %v2391
    %3458 = vmatpush1.bf16.msra.mxu0 %v2390
    %3459 = vmatprep.subr.bf16.mxu0 %v2399
    %3460 = vmatpush1.bf16.msra.mxu0 %v2398
    %3461 = vmatprep.subr.bf16.mxu0 %v2407
    %3462 = vmatpush1.bf16.msra.mxu0 %v2406
    %3463 = vmatprep.subr.bf16.mxu0 %v2415
    %3464 = vmatpush1.bf16.msra.mxu0 %v2414
    %3465 = vmatprep.subr.bf16.mxu0 %v2423
    %3466 = vmatpush1.bf16.msra.mxu0 %v2422
    %3467 = vmatprep.subr.bf16.mxu0 %v2431
    %3468 = vmatpush1.bf16.msra.mxu0 %v2430
    %3469 = vmatprep.subr.bf16.mxu0 %v2439
    %3470 = vmatpush1.bf16.msra.mxu0 %v2438
    %3471 = vmatprep.subr.bf16.mxu0 %v2447
    %3472 = vmatpush1.bf16.msra.mxu0 %v2446
    %3473 = vmatprep.subr.bf16.mxu0 %v2455
    %3474 = vmatpush1.bf16.msra.mxu0 %v2454
    %3475 = vmatprep.mubr.bf16.mxu0 %v655
    %3476 = vmatmul.mubr.bf16.gmra.mrb[0].mxu0 %v654
    %v3477 = vpop.f32.mrb[0].mxu0
    %v3478 = vadd.f32 %v3435, %v3477
    %v3479 = vpop.f32.mrb[0].mxu0
    %v3480 = vadd.f32 %v3437, %v3479
    %v3481 = vpop.f32.mrb[0].mxu0
    %v3482 = vadd.f32 %v3439, %v3481
    %v3483 = vpop.f32.mrb[0].mxu0
    %v3484 = vadd.f32 %v3441, %v3483
    %3485 = vdwg.mxu0
    %3486 = vmatprep.subr.bf16.mxu0 %v2463
    %3487 = vmatpush1.bf16.msra.mxu0 %v2462
    %3488 = vmatprep.subr.bf16.mxu0 %v2471
    %3489 = vmatpush1.bf16.msra.mxu0 %v2470
    %3490 = vmatprep.subr.bf16.mxu0 %v2479
    %3491 = vmatpush1.bf16.msra.mxu0 %v2478
    %3492 = vmatprep.subr.bf16.mxu0 %v2487
    %3493 = vmatpush1.bf16.msra.mxu0 %v2486
    %3494 = vmatprep.subr.bf16.mxu0 %v2495
    %3495 = vmatpush1.bf16.msra.mxu0 %v2494
    %3496 = vmatprep.subr.bf16.mxu0 %v2503
    %3497 = vmatpush1.bf16.msra.mxu0 %v2502
    %3498 = vmatprep.subr.bf16.mxu0 %v2511
    %3499 = vmatpush1.bf16.msra.mxu0 %v2510
    %3500 = vmatprep.subr.bf16.mxu0 %v2519
    %3501 = vmatpush1.bf16.msra.mxu0 %v2518
    %3502 = vmatprep.subr.bf16.mxu0 %v2527
    %3503 = vmatpush1.bf16.msra.mxu0 %v2526
    %3504 = vmatprep.subr.bf16.mxu0 %v2535
    %3505 = vmatpush1.bf16.msra.mxu0 %v2534
    %3506 = vmatprep.subr.bf16.mxu0 %v2543
    %3507 = vmatpush1.bf16.msra.mxu0 %v2542
    %3508 = vmatprep.subr.bf16.mxu0 %v2551
    %3509 = vmatpush1.bf16.msra.mxu0 %v2550
    %3510 = vmatprep.subr.bf16.mxu0 %v2559
    %3511 = vmatpush1.bf16.msra.mxu0 %v2558
    %3512 = vmatprep.subr.bf16.mxu0 %v2567
    %3513 = vmatpush1.bf16.msra.mxu0 %v2566
    %3514 = vmatprep.subr.bf16.mxu0 %v2575
    %3515 = vmatpush1.bf16.msra.mxu0 %v2574
    %3516 = vmatprep.subr.bf16.mxu0 %v2583
    %3517 = vmatpush1.bf16.msra.mxu0 %v2582
    %3518 = vmatprep.mubr.bf16.mxu0 %v657
    %3519 = vmatmul.mubr.bf16.gmra.mrb[0].mxu0 %v656
    %v3520 = vpop.f32.mrb[0].mxu0
    %v3521 = vadd.f32 %v3478, %v3520
    %v3522 = vpop.f32.mrb[0].mxu0
    %v3523 = vadd.f32 %v3480, %v3522
    %v3524 = vpop.f32.mrb[0].mxu0
    %v3525 = vadd.f32 %v3482, %v3524
    %v3526 = vpop.f32.mrb[0].mxu0
    %v3527 = vadd.f32 %v3484, %v3526
    %3528 = vdwg.mxu0
    %3529 = vmatprep.subr.bf16.mxu0 %v2591
    %3530 = vmatpush1.bf16.msra.mxu0 %v2590
    %3531 = vmatprep.subr.bf16.mxu0 %v2599
    %3532 = vmatpush1.bf16.msra.mxu0 %v2598
    %3533 = vmatprep.subr.bf16.mxu0 %v2607
    %3534 = vmatpush1.bf16.msra.mxu0 %v2606
    %3535 = vmatprep.subr.bf16.mxu0 %v2615
    %3536 = vmatpush1.bf16.msra.mxu0 %v2614
    %3537 = vmatprep.subr.bf16.mxu0 %v2623
    %3538 = vmatpush1.bf16.msra.mxu0 %v2622
    %3539 = vmatprep.subr.bf16.mxu0 %v2631
    %3540 = vmatpush1.bf16.msra.mxu0 %v2630
    %3541 = vmatprep.subr.bf16.mxu0 %v2639
    %3542 = vmatpush1.bf16.msra.mxu0 %v2638
    %3543 = vmatprep.subr.bf16.mxu0 %v2647
    %3544 = vmatpush1.bf16.msra.mxu0 %v2646
    %3545 = vmatprep.subr.bf16.mxu0 %v2655
    %3546 = vmatpush1.bf16.msra.mxu0 %v2654
    %3547 = vmatprep.subr.bf16.mxu0 %v2663
    %3548 = vmatpush1.bf16.msra.mxu0 %v2662
    %3549 = vmatprep.subr.bf16.mxu0 %v2671
    %3550 = vmatpush1.bf16.msra.mxu0 %v2670
    %3551 = vmatprep.subr.bf16.mxu0 %v2679
    %3552 = vmatpush1.bf16.msra.mxu0 %v2678
    %3553 = vmatprep.subr.bf16.mxu0 %v2687
    %3554 = vmatpush1.bf16.msra.mxu0 %v2686
    %3555 = vmatprep.subr.bf16.mxu0 %v2695
    %3556 = vmatpush1.bf16.msra.mxu0 %v2694
    %3557 = vmatprep.subr.bf16.mxu0 %v2703
    %3558 = vmatpush1.bf16.msra.mxu0 %v2702
    %3559 = vmatprep.subr.bf16.mxu0 %v2711
    %3560 = vmatpush1.bf16.msra.mxu0 %v2710
    %3561 = vmatprep.mubr.bf16.mxu0 %v659
    %3562 = vmatmul.mubr.bf16.gmra.mrb[0].mxu0 %v658
    %v3563 = vpop.f32.mrb[0].mxu0
    %v3564 = vadd.f32 %v3521, %v3563
    %v3565 = vpop.f32.mrb[0].mxu0
    %v3566 = vadd.f32 %v3523, %v3565
    %v3567 = vpop.f32.mrb[0].mxu0
    %v3568 = vadd.f32 %v3525, %v3567
    %v3569 = vpop.f32.mrb[0].mxu0
    %v3570 = vadd.f32 %v3527, %v3569
    %3571 = vdwg.mxu0
    %3572 = vmatprep.subr.bf16.mxu0 %v2209
    %3573 = vmatpush1.bf16.msra.mxu0 %v2208
    %3574 = vmatprep.subr.bf16.mxu0 %v2217
    %3575 = vmatpush1.bf16.msra.mxu0 %v2216
    %3576 = vmatprep.subr.bf16.mxu0 %v2225
    %3577 = vmatpush1.bf16.msra.mxu0 %v2224
    %3578 = vmatprep.subr.bf16.mxu0 %v2233
    %3579 = vmatpush1.bf16.msra.mxu0 %v2232
    %3580 = vmatprep.subr.bf16.mxu0 %v2241
    %3581 = vmatpush1.bf16.msra.mxu0 %v2240
    %3582 = vmatprep.subr.bf16.mxu0 %v2249
    %3583 = vmatpush1.bf16.msra.mxu0 %v2248
    %3584 = vmatprep.subr.bf16.mxu0 %v2257
    %3585 = vmatpush1.bf16.msra.mxu0 %v2256
    %3586 = vmatprep.subr.bf16.mxu0 %v2265
    %3587 = vmatpush1.bf16.msra.mxu0 %v2264
    %3588 = vmatprep.subr.bf16.mxu0 %v2273
    %3589 = vmatpush1.bf16.msra.mxu0 %v2272
    %3590 = vmatprep.subr.bf16.mxu0 %v2281
    %3591 = vmatpush1.bf16.msra.mxu0 %v2280
    %3592 = vmatprep.subr.bf16.mxu0 %v2289
    %3593 = vmatpush1.bf16.msra.mxu0 %v2288
    %3594 = vmatprep.subr.bf16.mxu0 %v2297
    %3595 = vmatpush1.bf16.msra.mxu0 %v2296
    %3596 = vmatprep.subr.bf16.mxu0 %v2305
    %3597 = vmatpush1.bf16.msra.mxu0 %v2304
    %3598 = vmatprep.subr.bf16.mxu0 %v2313
    %3599 = vmatpush1.bf16.msra.mxu0 %v2312
    %3600 = vmatprep.subr.bf16.mxu0 %v2321
    %3601 = vmatpush1.bf16.msra.mxu0 %v2320
    %3602 = vmatprep.subr.bf16.mxu0 %v2329
    %3603 = vmatpush1.bf16.msra.mxu0 %v2328
    %3604 = vmatprep.mubr.bf16.mxu0 %v653
    %3605 = vmatmul.mubr.bf16.gmra.mrb[0].mxu0 %v652
    %v3606 = vpop.f32.mrb[0].mxu0
    %v3607 = vadd.f32 0.0, %v3606
    %v3608 = vpop.f32.mrb[0].mxu0
    %v3609 = vadd.f32 0.0, %v3608
    %v3610 = vpop.f32.mrb[0].mxu0
    %v3611 = vadd.f32 0.0, %v3610
    %v3612 = vpop.f32.mrb[0].mxu0
    %v3613 = vadd.f32 0.0, %v3612
    %3614 = vdwg.mxu0
    %3615 = vmatprep.subr.bf16.mxu0 %v2337
    %3616 = vmatpush1.bf16.msra.mxu0 %v2336
    %3617 = vmatprep.subr.bf16.mxu0 %v2345
    %3618 = vmatpush1.bf16.msra.mxu0 %v2344
    %3619 = vmatprep.subr.bf16.mxu0 %v2353
    %3620 = vmatpush1.bf16.msra.mxu0 %v2352
    %3621 = vmatprep.subr.bf16.mxu0 %v2361
    %3622 = vmatpush1.bf16.msra.mxu0 %v2360
    %3623 = vmatprep.subr.bf16.mxu0 %v2369
    %3624 = vmatpush1.bf16.msra.mxu0 %v2368
    %3625 = vmatprep.subr.bf16.mxu0 %v2377
    %3626 = vmatpush1.bf16.msra.mxu0 %v2376
    %3627 = vmatprep.subr.bf16.mxu0 %v2385
    %3628 = vmatpush1.bf16.msra.mxu0 %v2384
    %3629 = vmatprep.subr.bf16.mxu0 %v2393
    %3630 = vmatpush1.bf16.msra.mxu0 %v2392
    %3631 = vmatprep.subr.bf16.mxu0 %v2401
    %3632 = vmatpush1.bf16.msra.mxu0 %v2400
    %3633 = vmatprep.subr.bf16.mxu0 %v2409
    %3634 = vmatpush1.bf16.msra.mxu0 %v2408
    %3635 = vmatprep.subr.bf16.mxu0 %v2417
    %3636 = vmatpush1.bf16.msra.mxu0 %v2416
    %3637 = vmatprep.subr.bf16.mxu0 %v2425
    %3638 = vmatpush1.bf16.msra.mxu0 %v2424
    %3639 = vmatprep.subr.bf16.mxu0 %v2433
    %3640 = vmatpush1.bf16.msra.mxu0 %v2432
    %3641 = vmatprep.subr.bf16.mxu0 %v2441
    %3642 = vmatpush1.bf16.msra.mxu0 %v2440
    %3643 = vmatprep.subr.bf16.mxu0 %v2449
    %3644 = vmatpush1.bf16.msra.mxu0 %v2448
    %3645 = vmatprep.subr.bf16.mxu0 %v2457
    %3646 = vmatpush1.bf16.msra.mxu0 %v2456
    %3647 = vmatprep.mubr.bf16.mxu0 %v655
    %3648 = vmatmul.mubr.bf16.gmra.mrb[0].mxu0 %v654
    %v3649 = vpop.f32.mrb[0].mxu0
    %v3650 = vadd.f32 %v3607, %v3649
    %v3651 = vpop.f32.mrb[0].mxu0
    %v3652 = vadd.f32 %v3609, %v3651
    %v3653 = vpop.f32.mrb[0].mxu0
    %v3654 = vadd.f32 %v3611, %v3653
    %v3655 = vpop.f32.mrb[0].mxu0
    %v3656 = vadd.f32 %v3613, %v3655
    %3657 = vdwg.mxu0
    %3658 = vmatprep.subr.bf16.mxu0 %v2465
    %3659 = vmatpush1.bf16.msra.mxu0 %v2464
    %3660 = vmatprep.subr.bf16.mxu0 %v2473
    %3661 = vmatpush1.bf16.msra.mxu0 %v2472
    %3662 = vmatprep.subr.bf16.mxu0 %v2481
    %3663 = vmatpush1.bf16.msra.mxu0 %v2480
    %3664 = vmatprep.subr.bf16.mxu0 %v2489
    %3665 = vmatpush1.bf16.msra.mxu0 %v2488
    %3666 = vmatprep.subr.bf16.mxu0 %v2497
    %3667 = vmatpush1.bf16.msra.mxu0 %v2496
    %3668 = vmatprep.subr.bf16.mxu0 %v2505
    %3669 = vmatpush1.bf16.msra.mxu0 %v2504
    %3670 = vmatprep.subr.bf16.mxu0 %v2513
    %3671 = vmatpush1.bf16.msra.mxu0 %v2512
    %3672 = vmatprep.subr.bf16.mxu0 %v2521
    %3673 = vmatpush1.bf16.msra.mxu0 %v2520
    %3674 = vmatprep.subr.bf16.mxu0 %v2529
    %3675 = vmatpush1.bf16.msra.mxu0 %v2528
    %3676 = vmatprep.subr.bf16.mxu0 %v2537
    %3677 = vmatpush1.bf16.msra.mxu0 %v2536
    %3678 = vmatprep.subr.bf16.mxu0 %v2545
    %3679 = vmatpush1.bf16.msra.mxu0 %v2544
    %3680 = vmatprep.subr.bf16.mxu0 %v2553
    %3681 = vmatpush1.bf16.msra.mxu0 %v2552
    %3682 = vmatprep.subr.bf16.mxu0 %v2561
    %3683 = vmatpush1.bf16.msra.mxu0 %v2560
    %3684 = vmatprep.subr.bf16.mxu0 %v2569
    %3685 = vmatpush1.bf16.msra.mxu0 %v2568
    %3686 = vmatprep.subr.bf16.mxu0 %v2577
    %3687 = vmatpush1.bf16.msra.mxu0 %v2576
    %3688 = vmatprep.subr.bf16.mxu0 %v2585
    %3689 = vmatpush1.bf16.msra.mxu0 %v2584
    %3690 = vmatprep.mubr.bf16.mxu0 %v657
    %3691 = vmatmul.mubr.bf16.gmra.mrb[0].mxu0 %v656
    %v3692 = vpop.f32.mrb[0].mxu0
    %v3693 = vadd.f32 %v3650, %v3692
    %v3694 = vpop.f32.mrb[0].mxu0
    %v3695 = vadd.f32 %v3652, %v3694
    %v3696 = vpop.f32.mrb[0].mxu0
    %v3697 = vadd.f32 %v3654, %v3696
    %v3698 = vpop.f32.mrb[0].mxu0
    %v3699 = vadd.f32 %v3656, %v3698
    %3700 = vdwg.mxu0
    %3701 = vmatprep.subr.bf16.mxu0 %v2593
    %3702 = vmatpush1.bf16.msra.mxu0 %v2592
    %3703 = vmatprep.subr.bf16.mxu0 %v2601
    %3704 = vmatpush1.bf16.msra.mxu0 %v2600
    %3705 = vmatprep.subr.bf16.mxu0 %v2609
    %3706 = vmatpush1.bf16.msra.mxu0 %v2608
    %3707 = vmatprep.subr.bf16.mxu0 %v2617
    %3708 = vmatpush1.bf16.msra.mxu0 %v2616
    %3709 = vmatprep.subr.bf16.mxu0 %v2625
    %3710 = vmatpush1.bf16.msra.mxu0 %v2624
    %3711 = vmatprep.subr.bf16.mxu0 %v2633
    %3712 = vmatpush1.bf16.msra.mxu0 %v2632
    %3713 = vmatprep.subr.bf16.mxu0 %v2641
    %3714 = vmatpush1.bf16.msra.mxu0 %v2640
    %3715 = vmatprep.subr.bf16.mxu0 %v2649
    %3716 = vmatpush1.bf16.msra.mxu0 %v2648
    %3717 = vmatprep.subr.bf16.mxu0 %v2657
    %3718 = vmatpush1.bf16.msra.mxu0 %v2656
    %3719 = vmatprep.subr.bf16.mxu0 %v2665
    %3720 = vmatpush1.bf16.msra.mxu0 %v2664
    %3721 = vmatprep.subr.bf16.mxu0 %v2673
    %3722 = vmatpush1.bf16.msra.mxu0 %v2672
    %3723 = vmatprep.subr.bf16.mxu0 %v2681
    %3724 = vmatpush1.bf16.msra.mxu0 %v2680
    %3725 = vmatprep.subr.bf16.mxu0 %v2689
    %3726 = vmatpush1.bf16.msra.mxu0 %v2688
    %3727 = vmatprep.subr.bf16.mxu0 %v2697
    %3728 = vmatpush1.bf16.msra.mxu0 %v2696
    %3729 = vmatprep.subr.bf16.mxu0 %v2705
    %3730 = vmatpush1.bf16.msra.mxu0 %v2704
    %3731 = vmatprep.subr.bf16.mxu0 %v2713
    %3732 = vmatpush1.bf16.msra.mxu0 %v2712
    %3733 = vmatprep.mubr.bf16.mxu0 %v659
    %3734 = vmatmul.mubr.bf16.gmra.mrb[0].mxu0 %v658
    %v3735 = vpop.f32.mrb[0].mxu0
    %v3736 = vadd.f32 %v3693, %v3735
    %v3737 = vpop.f32.mrb[0].mxu0
    %v3738 = vadd.f32 %v3695, %v3737
    %v3739 = vpop.f32.mrb[0].mxu0
    %v3740 = vadd.f32 %v3697, %v3739
    %v3741 = vpop.f32.mrb[0].mxu0
    %v3742 = vadd.f32 %v3699, %v3741
    %3743 = vdwg.mxu0
    %3744 = vmatprep.subr.bf16.mxu0 %v2211
    %3745 = vmatpush1.bf16.msra.mxu0 %v2210
    %3746 = vmatprep.subr.bf16.mxu0 %v2219
    %3747 = vmatpush1.bf16.msra.mxu0 %v2218
    %3748 = vmatprep.subr.bf16.mxu0 %v2227
    %3749 = vmatpush1.bf16.msra.mxu0 %v2226
    %3750 = vmatprep.subr.bf16.mxu0 %v2235
    %3751 = vmatpush1.bf16.msra.mxu0 %v2234
    %3752 = vmatprep.subr.bf16.mxu0 %v2243
    %3753 = vmatpush1.bf16.msra.mxu0 %v2242
    %3754 = vmatprep.subr.bf16.mxu0 %v2251
    %3755 = vmatpush1.bf16.msra.mxu0 %v2250
    %3756 = vmatprep.subr.bf16.mxu0 %v2259
    %3757 = vmatpush1.bf16.msra.mxu0 %v2258
    %3758 = vmatprep.subr.bf16.mxu0 %v2267
    %3759 = vmatpush1.bf16.msra.mxu0 %v2266
    %3760 = vmatprep.subr.bf16.mxu0 %v2275
    %3761 = vmatpush1.bf16.msra.mxu0 %v2274
    %3762 = vmatprep.subr.bf16.mxu0 %v2283
    %3763 = vmatpush1.bf16.msra.mxu0 %v2282
    %3764 = vmatprep.subr.bf16.mxu0 %v2291
    %3765 = vmatpush1.bf16.msra.mxu0 %v2290
    %3766 = vmatprep.subr.bf16.mxu0 %v2299
    %3767 = vmatpush1.bf16.msra.mxu0 %v2298
    %3768 = vmatprep.subr.bf16.mxu0 %v2307
    %3769 = vmatpush1.bf16.msra.mxu0 %v2306
    %3770 = vmatprep.subr.bf16.mxu0 %v2315
    %3771 = vmatpush1.bf16.msra.mxu0 %v2314
    %3772 = vmatprep.subr.bf16.mxu0 %v2323
    %3773 = vmatpush1.bf16.msra.mxu0 %v2322
    %3774 = vmatprep.subr.bf16.mxu0 %v2331
    %3775 = vmatpush1.bf16.msra.mxu0 %v2330
    %3776 = vmatprep.mubr.bf16.mxu0 %v653
    %3777 = vmatmul.mubr.bf16.gmra.mrb[0].mxu0 %v652
    %v3778 = vpop.f32.mrb[0].mxu0
    %v3779 = vadd.f32 0.0, %v3778
    %v3780 = vpop.f32.mrb[0].mxu0
    %v3781 = vadd.f32 0.0, %v3780
    %v3782 = vpop.f32.mrb[0].mxu0
    %v3783 = vadd.f32 0.0, %v3782
    %v3784 = vpop.f32.mrb[0].mxu0
    %v3785 = vadd.f32 0.0, %v3784
    %3786 = vdwg.mxu0
    %3787 = vmatprep.subr.bf16.mxu0 %v2339
    %3788 = vmatpush1.bf16.msra.mxu0 %v2338
    %3789 = vmatprep.subr.bf16.mxu0 %v2347
    %3790 = vmatpush1.bf16.msra.mxu0 %v2346
    %3791 = vmatprep.subr.bf16.mxu0 %v2355
    %3792 = vmatpush1.bf16.msra.mxu0 %v2354
    %3793 = vmatprep.subr.bf16.mxu0 %v2363
    %3794 = vmatpush1.bf16.msra.mxu0 %v2362
    %3795 = vmatprep.subr.bf16.mxu0 %v2371
    %3796 = vmatpush1.bf16.msra.mxu0 %v2370
    %3797 = vmatprep.subr.bf16.mxu0 %v2379
    %3798 = vmatpush1.bf16.msra.mxu0 %v2378
    %3799 = vmatprep.subr.bf16.mxu0 %v2387
    %3800 = vmatpush1.bf16.msra.mxu0 %v2386
    %3801 = vmatprep.subr.bf16.mxu0 %v2395
    %3802 = vmatpush1.bf16.msra.mxu0 %v2394
    %3803 = vmatprep.subr.bf16.mxu0 %v2403
    %3804 = vmatpush1.bf16.msra.mxu0 %v2402
    %3805 = vmatprep.subr.bf16.mxu0 %v2411
    %3806 = vmatpush1.bf16.msra.mxu0 %v2410
    %3807 = vmatprep.subr.bf16.mxu0 %v2419
    %3808 = vmatpush1.bf16.msra.mxu0 %v2418
    %3809 = vmatprep.subr.bf16.mxu0 %v2427
    %3810 = vmatpush1.bf16.msra.mxu0 %v2426
    %3811 = vmatprep.subr.bf16.mxu0 %v2435
    %3812 = vmatpush1.bf16.msra.mxu0 %v2434
    %3813 = vmatprep.subr.bf16.mxu0 %v2443
    %3814 = vmatpush1.bf16.msra.mxu0 %v2442
    %3815 = vmatprep.subr.bf16.mxu0 %v2451
    %3816 = vmatpush1.bf16.msra.mxu0 %v2450
    %3817 = vmatprep.subr.bf16.mxu0 %v2459
    %3818 = vmatpush1.bf16.msra.mxu0 %v2458
    %3819 = vmatprep.mubr.bf16.mxu0 %v655
    %3820 = vmatmul.mubr.bf16.gmra.mrb[0].mxu0 %v654
    %v3821 = vpop.f32.mrb[0].mxu0
    %v3822 = vadd.f32 %v3779, %v3821
    %v3823 = vpop.f32.mrb[0].mxu0
    %v3824 = vadd.f32 %v3781, %v3823
    %v3825 = vpop.f32.mrb[0].mxu0
    %v3826 = vadd.f32 %v3783, %v3825
    %v3827 = vpop.f32.mrb[0].mxu0
    %v3828 = vadd.f32 %v3785, %v3827
    %3829 = vdwg.mxu0
    %3830 = vmatprep.subr.bf16.mxu0 %v2467
    %3831 = vmatpush1.bf16.msra.mxu0 %v2466
    %3832 = vmatprep.subr.bf16.mxu0 %v2475
    %3833 = vmatpush1.bf16.msra.mxu0 %v2474
    %3834 = vmatprep.subr.bf16.mxu0 %v2483
    %3835 = vmatpush1.bf16.msra.mxu0 %v2482
    %3836 = vmatprep.subr.bf16.mxu0 %v2491
    %3837 = vmatpush1.bf16.msra.mxu0 %v2490
    %3838 = vmatprep.subr.bf16.mxu0 %v2499
    %3839 = vmatpush1.bf16.msra.mxu0 %v2498
    %3840 = vmatprep.subr.bf16.mxu0 %v2507
    %3841 = vmatpush1.bf16.msra.mxu0 %v2506
    %3842 = vmatprep.subr.bf16.mxu0 %v2515
    %3843 = vmatpush1.bf16.msra.mxu0 %v2514
    %3844 = vmatprep.subr.bf16.mxu0 %v2523
    %3845 = vmatpush1.bf16.msra.mxu0 %v2522
    %3846 = vmatprep.subr.bf16.mxu0 %v2531
    %3847 = vmatpush1.bf16.msra.mxu0 %v2530
    %3848 = vmatprep.subr.bf16.mxu0 %v2539
    %3849 = vmatpush1.bf16.msra.mxu0 %v2538
    %3850 = vmatprep.subr.bf16.mxu0 %v2547
    %3851 = vmatpush1.bf16.msra.mxu0 %v2546
    %3852 = vmatprep.subr.bf16.mxu0 %v2555
    %3853 = vmatpush1.bf16.msra.mxu0 %v2554
    %3854 = vmatprep.subr.bf16.mxu0 %v2563
    %3855 = vmatpush1.bf16.msra.mxu0 %v2562
    %3856 = vmatprep.subr.bf16.mxu0 %v2571
    %3857 = vmatpush1.bf16.msra.mxu0 %v2570
    %3858 = vmatprep.subr.bf16.mxu0 %v2579
    %3859 = vmatpush1.bf16.msra.mxu0 %v2578
    %3860 = vmatprep.subr.bf16.mxu0 %v2587
    %3861 = vmatpush1.bf16.msra.mxu0 %v2586
    %3862 = vmatprep.mubr.bf16.mxu0 %v657
    %3863 = vmatmul.mubr.bf16.gmra.mrb[0].mxu0 %v656
    %v3864 = vpop.f32.mrb[0].mxu0
    %v3865 = vadd.f32 %v3822, %v3864
    %v3866 = vpop.f32.mrb[0].mxu0
    %v3867 = vadd.f32 %v3824, %v3866
    %v3868 = vpop.f32.mrb[0].mxu0
    %v3869 = vadd.f32 %v3826, %v3868
    %v3870 = vpop.f32.mrb[0].mxu0
    %v3871 = vadd.f32 %v3828, %v3870
    %3872 = vdwg.mxu0
    %3873 = vmatprep.subr.bf16.mxu0 %v2595
    %3874 = vmatpush1.bf16.msra.mxu0 %v2594
    %3875 = vmatprep.subr.bf16.mxu0 %v2603
    %3876 = vmatpush1.bf16.msra.mxu0 %v2602
    %3877 = vmatprep.subr.bf16.mxu0 %v2611
    %3878 = vmatpush1.bf16.msra.mxu0 %v2610
    %3879 = vmatprep.subr.bf16.mxu0 %v2619
    %3880 = vmatpush1.bf16.msra.mxu0 %v2618
    %3881 = vmatprep.subr.bf16.mxu0 %v2627
    %3882 = vmatpush1.bf16.msra.mxu0 %v2626
    %3883 = vmatprep.subr.bf16.mxu0 %v2635
    %3884 = vmatpush1.bf16.msra.mxu0 %v2634
    %3885 = vmatprep.subr.bf16.mxu0 %v2643
    %3886 = vmatpush1.bf16.msra.mxu0 %v2642
    %3887 = vmatprep.subr.bf16.mxu0 %v2651
    %3888 = vmatpush1.bf16.msra.mxu0 %v2650
    %3889 = vmatprep.subr.bf16.mxu0 %v2659
    %3890 = vmatpush1.bf16.msra.mxu0 %v2658
    %3891 = vmatprep.subr.bf16.mxu0 %v2667
    %3892 = vmatpush1.bf16.msra.mxu0 %v2666
    %3893 = vmatprep.subr.bf16.mxu0 %v2675
    %3894 = vmatpush1.bf16.msra.mxu0 %v2674
    %3895 = vmatprep.subr.bf16.mxu0 %v2683
    %3896 = vmatpush1.bf16.msra.mxu0 %v2682
    %3897 = vmatprep.subr.bf16.mxu0 %v2691
    %3898 = vmatpush1.bf16.msra.mxu0 %v2690
    %3899 = vmatprep.subr.bf16.mxu0 %v2699
    %3900 = vmatpush1.bf16.msra.mxu0 %v2698
    %3901 = vmatprep.subr.bf16.mxu0 %v2707
    %3902 = vmatpush1.bf16.msra.mxu0 %v2706
    %3903 = vmatprep.subr.bf16.mxu0 %v2715
    %3904 = vmatpush1.bf16.msra.mxu0 %v2714
    %3905 = vmatprep.mubr.bf16.mxu0 %v659
    %3906 = vmatmul.mubr.bf16.gmra.mrb[0].mxu0 %v658
    %v3907 = vpop.f32.mrb[0].mxu0
    %v3908 = vadd.f32 %v3865, %v3907
    %v3909 = vpop.f32.mrb[0].mxu0
    %v3910 = vadd.f32 %v3867, %v3909
    %v3911 = vpop.f32.mrb[0].mxu0
    %v3912 = vadd.f32 %v3869, %v3911
    %v3913 = vpop.f32.mrb[0].mxu0
    %v3914 = vadd.f32 %v3871, %v3913
    %3915 = vdwg.mxu0
    %v3916 = vadd.f32 %v92, %v3392
    %v3917 = vadd.f32 %v93, %v3394
    %v3918 = vadd.f32 %v94, %v3564
    %v3919 = vadd.f32 %v95, %v3566
    %v3920 = vadd.f32 %v96, %v3736
    %v3921 = vadd.f32 %v97, %v3738
    %v3922 = vadd.f32 %v98, %v3908
    %v3923 = vadd.f32 %v99, %v3910
    %v3924 = vadd.f32 %v100, %v3396
    %v3925 = vadd.f32 %v101, %v3398
    %v3926 = vadd.f32 %v102, %v3568
    %v3927 = vadd.f32 %v103, %v3570
    %v3928 = vadd.f32 %v104, %v3740
    %v3929 = vadd.f32 %v105, %v3742
    %v3930 = vadd.f32 %v106, %v3912
    %v3931 = vadd.f32 %v107, %v3914
    %3932 = vst [vmem:[#allocation2] sm:$0xff] %v3916
    %3933 = vst [vmem:[#allocation2 + $0x8] sm:$0xff] %v3917
    %3934 = vst [vmem:[#allocation2 + $0x10] sm:$0xff] %v3918
    %3935 = vst [vmem:[#allocation2 + $0x18] sm:$0xff] %v3919
    %3936 = vst [vmem:[#allocation2 + $0x20] sm:$0xff] %v3920
    %3937 = vst [vmem:[#allocation2 + $0x28] sm:$0xff] %v3921
    %3938 = vst [vmem:[#allocation2 + $0x30] sm:$0xff] %v3922
    %3939 = vst [vmem:[#allocation2 + $0x38] sm:$0xff] %v3923
    %3940 = vst [vmem:[#allocation2 + $0x40] sm:$0xff] %v3924
    %3941 = vst [vmem:[#allocation2 + $0x48] sm:$0xff] %v3925
    %3942 = vst [vmem:[#allocation2 + $0x50] sm:$0xff] %v3926
    %3943 = vst [vmem:[#allocation2 + $0x58] sm:$0xff] %v3927
    %3944 = vst [vmem:[#allocation2 + $0x60] sm:$0xff] %v3928
    %3945 = vst [vmem:[#allocation2 + $0x68] sm:$0xff] %v3929
    %3946 = vst [vmem:[#allocation2 + $0x70] sm:$0xff] %v3930
    %3947 = vst [vmem:[#allocation2 + $0x78] sm:$0xff] %v3931
    // Predicated region
    $region38: #{tpu_custom_call.1} parent=1 // pred_check
      %p3948 = pneg %p72
    $region39: #{tpu_custom_call.1} parent=1 // pred_check_branch
      %3950 = sbr.rel (%p3948) target = $region41
    $region40: #{tpu_custom_call.1} parent=1 // pred_region
      %v3951 = vld [vmem:[#allocation2] sm:$0xff]
      %v3952 = vld [vmem:[#allocation2 + $0x8] sm:$0xff]
      %v3953 = vld [vmem:[#allocation2 + $0x10] sm:$0xff]
      %v3954 = vld [vmem:[#allocation2 + $0x18] sm:$0xff]
      %v3955 = vld [vmem:[#allocation2 + $0x20] sm:$0xff]
      %v3956 = vld [vmem:[#allocation2 + $0x28] sm:$0xff]
      %v3957 = vld [vmem:[#allocation2 + $0x30] sm:$0xff]
      %v3958 = vld [vmem:[#allocation2 + $0x38] sm:$0xff]
      %v3959 = vld [vmem:[#allocation2 + $0x40] sm:$0xff]
      %v3960 = vld [vmem:[#allocation2 + $0x48] sm:$0xff]
      %v3961 = vld [vmem:[#allocation2 + $0x50] sm:$0xff]
      %v3962 = vld [vmem:[#allocation2 + $0x58] sm:$0xff]
      %v3963 = vld [vmem:[#allocation2 + $0x60] sm:$0xff]
      %v3964 = vld [vmem:[#allocation2 + $0x68] sm:$0xff]
      %v3965 = vld [vmem:[#allocation2 + $0x70] sm:$0xff]
      %v3966 = vld [vmem:[#allocation2 + $0x78] sm:$0xff]
      %v3967 = vld [vmem:[#allocation8] sm:$0xff]
      %v3969 = vlaneseq
      %v3970 = vshrl.u32 %v3969, 7
      %v3971 = vsub.s32 0, %v3970
      %v3972 = vrot.slane %v3967, %v3971
      %v3973 = vlaneseq
      %v3974 = vshrl.u32 %v3973, 7
      %v3975 = vsub.s32 1, %v3974
      %v3976 = vrot.slane %v3967, %v3975
      %v3977 = vlaneseq
      %v3978 = vshrl.u32 %v3977, 7
      %v3979 = vsub.s32 2, %v3978
      %v3980 = vrot.slane %v3967, %v3979
      %v3981 = vlaneseq
      %v3982 = vshrl.u32 %v3981, 7
      %v3983 = vsub.s32 3, %v3982
      %v3984 = vrot.slane %v3967, %v3983
      %v3985 = vlaneseq
      %v3986 = vshrl.u32 %v3985, 7
      %v3987 = vsub.s32 4, %v3986
      %v3988 = vrot.slane %v3967, %v3987
      %v3989 = vlaneseq
      %v3990 = vshrl.u32 %v3989, 7
      %v3991 = vsub.s32 5, %v3990
      %v3992 = vrot.slane %v3967, %v3991
      %v3993 = vlaneseq
      %v3994 = vshrl.u32 %v3993, 7
      %v3995 = vsub.s32 6, %v3994
      %v3996 = vrot.slane %v3967, %v3995
      %v3997 = vlaneseq
      %v3998 = vshrl.u32 %v3997, 7
      %v3999 = vsub.s32 7, %v3998
      %v4000 = vrot.slane %v3967, %v3999
      %v4009 = vadd.f32 %v3951, %v3972
      %v4010 = vadd.f32 %v3952, %v3976
      %v4011 = vadd.f32 %v3953, %v3980
      %v4012 = vadd.f32 %v3954, %v3984
      %v4013 = vadd.f32 %v3955, %v3988
      %v4014 = vadd.f32 %v3956, %v3992
      %v4015 = vadd.f32 %v3957, %v3996
      %v4016 = vadd.f32 %v3958, %v4000
      %v4017 = vadd.f32 %v3959, %v3972
      %v4018 = vadd.f32 %v3960, %v3976
      %v4019 = vadd.f32 %v3961, %v3980
      %v4020 = vadd.f32 %v3962, %v3984
      %v4021 = vadd.f32 %v3963, %v3988
      %v4022 = vadd.f32 %v3964, %v3992
      %v4023 = vadd.f32 %v3965, %v3996
      %v4024 = vadd.f32 %v3966, %v4000
      %v4025 = vmax.f32 %v4009, 0.0
      %v4026 = vmax.f32 %v4010, 0.0
      %v4027 = vmax.f32 %v4011, 0.0
      %v4028 = vmax.f32 %v4012, 0.0
      %v4029 = vmax.f32 %v4013, 0.0
      %v4030 = vmax.f32 %v4014, 0.0
      %v4031 = vmax.f32 %v4015, 0.0
      %v4032 = vmax.f32 %v4016, 0.0
      %v4033 = vmax.f32 %v4017, 0.0
      %v4034 = vmax.f32 %v4018, 0.0
      %v4035 = vmax.f32 %v4019, 0.0
      %v4036 = vmax.f32 %v4020, 0.0
      %v4037 = vmax.f32 %v4021, 0.0
      %v4038 = vmax.f32 %v4022, 0.0
      %v4039 = vmax.f32 %v4023, 0.0
      %v4040 = vmax.f32 %v4024, 0.0
      %v4041 = vpack.c.bf16 %v4033, %v4025
      %v4042 = vpack.c.bf16 %v4034, %v4026
      %v4043 = vpack.c.bf16 %v4035, %v4027
      %v4044 = vpack.c.bf16 %v4036, %v4028
      %v4045 = vpack.c.bf16 %v4037, %v4029
      %v4046 = vpack.c.bf16 %v4038, %v4030
      %v4047 = vpack.c.bf16 %v4039, %v4031
      %v4048 = vpack.c.bf16 %v4040, %v4032
      %v4049 = vld [vmem:[#allocation9] sm:$0xf]
      %v4050 = vld [vmem:[#allocation9 + $0x4] sm:$0xf]
      %v4051 = vld [vmem:[#allocation9 + $0x8] sm:$0xf]
      %v4052 = vld [vmem:[#allocation9 + $0xc] sm:$0xf]
      %v4053 = vld [vmem:[#allocation9 + $0x10] sm:$0xf]
      %v4054 = vld [vmem:[#allocation9 + $0x14] sm:$0xf]
      %v4055 = vld [vmem:[#allocation9 + $0x18] sm:$0xf]
      %v4056 = vld [vmem:[#allocation9 + $0x1c] sm:$0xf]
      %v4057 = vld [vmem:[#allocation9 + $0x20] sm:$0xf]
      %v4058 = vld [vmem:[#allocation9 + $0x24] sm:$0xf]
      %v4059 = vld [vmem:[#allocation9 + $0x28] sm:$0xf]
      %v4060 = vld [vmem:[#allocation9 + $0x2c] sm:$0xf]
      %v4061 = vld [vmem:[#allocation9 + $0x30] sm:$0xf]
      %v4062 = vld [vmem:[#allocation9 + $0x34] sm:$0xf]
      %v4063 = vld [vmem:[#allocation9 + $0x38] sm:$0xf]
      %v4064 = vld [vmem:[#allocation9 + $0x3c] sm:$0xf]
      %v4065 = vld [vmem:[#allocation9 + $0x40] sm:$0xf]
      %v4066 = vld [vmem:[#allocation9 + $0x44] sm:$0xf]
      %v4067 = vld [vmem:[#allocation9 + $0x48] sm:$0xf]
      %v4068 = vld [vmem:[#allocation9 + $0x4c] sm:$0xf]
      %v4069 = vld [vmem:[#allocation9 + $0x50] sm:$0xf]
      %v4070 = vld [vmem:[#allocation9 + $0x54] sm:$0xf]
      %v4071 = vld [vmem:[#allocation9 + $0x58] sm:$0xf]
      %v4072 = vld [vmem:[#allocation9 + $0x5c] sm:$0xf]
      %v4073 = vld [vmem:[#allocation9 + $0x60] sm:$0xf]
      %v4074 = vld [vmem:[#allocation9 + $0x64] sm:$0xf]
      %v4075 = vld [vmem:[#allocation9 + $0x68] sm:$0xf]
      %v4076 = vld [vmem:[#allocation9 + $0x6c] sm:$0xf]
      %v4077 = vld [vmem:[#allocation9 + $0x70] sm:$0xf]
      %v4078 = vld [vmem:[#allocation9 + $0x74] sm:$0xf]
      %v4079 = vld [vmem:[#allocation9 + $0x78] sm:$0xf]
      %v4080 = vld [vmem:[#allocation9 + $0x7c] sm:$0xf]
      %v4081 = vld [vmem:[#allocation9 + $0x80] sm:$0xf]
      %v4082 = vld [vmem:[#allocation9 + $0x84] sm:$0xf]
      %v4083 = vld [vmem:[#allocation9 + $0x88] sm:$0xf]
      %v4084 = vld [vmem:[#allocation9 + $0x8c] sm:$0xf]
      %v4085 = vld [vmem:[#allocation9 + $0x90] sm:$0xf]
      %v4086 = vld [vmem:[#allocation9 + $0x94] sm:$0xf]
      %v4087 = vld [vmem:[#allocation9 + $0x98] sm:$0xf]
      %v4088 = vld [vmem:[#allocation9 + $0x9c] sm:$0xf]
      %v4089 = vld [vmem:[#allocation9 + $0xa0] sm:$0xf]
      %v4090 = vld [vmem:[#allocation9 + $0xa4] sm:$0xf]
      %v4091 = vld [vmem:[#allocation9 + $0xa8] sm:$0xf]
      %v4092 = vld [vmem:[#allocation9 + $0xac] sm:$0xf]
      %v4093 = vld [vmem:[#allocation9 + $0xb0] sm:$0xf]
      %v4094 = vld [vmem:[#allocation9 + $0xb4] sm:$0xf]
      %v4095 = vld [vmem:[#allocation9 + $0xb8] sm:$0xf]
      %v4096 = vld [vmem:[#allocation9 + $0xbc] sm:$0xf]
      %v4097 = vld [vmem:[#allocation9 + $0xc0] sm:$0xf]
      %v4098 = vld [vmem:[#allocation9 + $0xc4] sm:$0xf]
      %v4099 = vld [vmem:[#allocation9 + $0xc8] sm:$0xf]
      %v4100 = vld [vmem:[#allocation9 + $0xcc] sm:$0xf]
      %v4101 = vld [vmem:[#allocation9 + $0xd0] sm:$0xf]
      %v4102 = vld [vmem:[#allocation9 + $0xd4] sm:$0xf]
      %v4103 = vld [vmem:[#allocation9 + $0xd8] sm:$0xf]
      %v4104 = vld [vmem:[#allocation9 + $0xdc] sm:$0xf]
      %v4105 = vld [vmem:[#allocation9 + $0xe0] sm:$0xf]
      %v4106 = vld [vmem:[#allocation9 + $0xe4] sm:$0xf]
      %v4107 = vld [vmem:[#allocation9 + $0xe8] sm:$0xf]
      %v4108 = vld [vmem:[#allocation9 + $0xec] sm:$0xf]
      %v4109 = vld [vmem:[#allocation9 + $0xf0] sm:$0xf]
      %v4110 = vld [vmem:[#allocation9 + $0xf4] sm:$0xf]
      %v4111 = vld [vmem:[#allocation9 + $0xf8] sm:$0xf]
      %v4112 = vld [vmem:[#allocation9 + $0xfc] sm:$0xf]
      %v4113 = vld [vmem:[#allocation9 + $0x100] sm:$0xf]
      %v4114 = vld [vmem:[#allocation9 + $0x104] sm:$0xf]
      %v4115 = vld [vmem:[#allocation9 + $0x108] sm:$0xf]
      %v4116 = vld [vmem:[#allocation9 + $0x10c] sm:$0xf]
      %v4117 = vld [vmem:[#allocation9 + $0x110] sm:$0xf]
      %v4118 = vld [vmem:[#allocation9 + $0x114] sm:$0xf]
      %v4119 = vld [vmem:[#allocation9 + $0x118] sm:$0xf]
      %v4120 = vld [vmem:[#allocation9 + $0x11c] sm:$0xf]
      %v4121 = vld [vmem:[#allocation9 + $0x120] sm:$0xf]
      %v4122 = vld [vmem:[#allocation9 + $0x124] sm:$0xf]
      %v4123 = vld [vmem:[#allocation9 + $0x128] sm:$0xf]
      %v4124 = vld [vmem:[#allocation9 + $0x12c] sm:$0xf]
      %v4125 = vld [vmem:[#allocation9 + $0x130] sm:$0xf]
      %v4126 = vld [vmem:[#allocation9 + $0x134] sm:$0xf]
      %v4127 = vld [vmem:[#allocation9 + $0x138] sm:$0xf]
      %v4128 = vld [vmem:[#allocation9 + $0x13c] sm:$0xf]
      %v4129 = vld [vmem:[#allocation9 + $0x140] sm:$0xf]
      %v4130 = vld [vmem:[#allocation9 + $0x144] sm:$0xf]
      %v4131 = vld [vmem:[#allocation9 + $0x148] sm:$0xf]
      %v4132 = vld [vmem:[#allocation9 + $0x14c] sm:$0xf]
      %v4133 = vld [vmem:[#allocation9 + $0x150] sm:$0xf]
      %v4134 = vld [vmem:[#allocation9 + $0x154] sm:$0xf]
      %v4135 = vld [vmem:[#allocation9 + $0x158] sm:$0xf]
      %v4136 = vld [vmem:[#allocation9 + $0x15c] sm:$0xf]
      %v4137 = vld [vmem:[#allocation9 + $0x160] sm:$0xf]
      %v4138 = vld [vmem:[#allocation9 + $0x164] sm:$0xf]
      %v4139 = vld [vmem:[#allocation9 + $0x168] sm:$0xf]
      %v4140 = vld [vmem:[#allocation9 + $0x16c] sm:$0xf]
      %v4141 = vld [vmem:[#allocation9 + $0x170] sm:$0xf]
      %v4142 = vld [vmem:[#allocation9 + $0x174] sm:$0xf]
      %v4143 = vld [vmem:[#allocation9 + $0x178] sm:$0xf]
      %v4144 = vld [vmem:[#allocation9 + $0x17c] sm:$0xf]
      %v4145 = vld [vmem:[#allocation9 + $0x180] sm:$0xf]
      %v4146 = vld [vmem:[#allocation9 + $0x184] sm:$0xf]
      %v4147 = vld [vmem:[#allocation9 + $0x188] sm:$0xf]
      %v4148 = vld [vmem:[#allocation9 + $0x18c] sm:$0xf]
      %v4149 = vld [vmem:[#allocation9 + $0x190] sm:$0xf]
      %v4150 = vld [vmem:[#allocation9 + $0x194] sm:$0xf]
      %v4151 = vld [vmem:[#allocation9 + $0x198] sm:$0xf]
      %v4152 = vld [vmem:[#allocation9 + $0x19c] sm:$0xf]
      %v4153 = vld [vmem:[#allocation9 + $0x1a0] sm:$0xf]
      %v4154 = vld [vmem:[#allocation9 + $0x1a4] sm:$0xf]
      %v4155 = vld [vmem:[#allocation9 + $0x1a8] sm:$0xf]
      %v4156 = vld [vmem:[#allocation9 + $0x1ac] sm:$0xf]
      %v4157 = vld [vmem:[#allocation9 + $0x1b0] sm:$0xf]
      %v4158 = vld [vmem:[#allocation9 + $0x1b4] sm:$0xf]
      %v4159 = vld [vmem:[#allocation9 + $0x1b8] sm:$0xf]
      %v4160 = vld [vmem:[#allocation9 + $0x1bc] sm:$0xf]
      %v4161 = vld [vmem:[#allocation9 + $0x1c0] sm:$0xf]
      %v4162 = vld [vmem:[#allocation9 + $0x1c4] sm:$0xf]
      %v4163 = vld [vmem:[#allocation9 + $0x1c8] sm:$0xf]
      %v4164 = vld [vmem:[#allocation9 + $0x1cc] sm:$0xf]
      %v4165 = vld [vmem:[#allocation9 + $0x1d0] sm:$0xf]
      %v4166 = vld [vmem:[#allocation9 + $0x1d4] sm:$0xf]
      %v4167 = vld [vmem:[#allocation9 + $0x1d8] sm:$0xf]
      %v4168 = vld [vmem:[#allocation9 + $0x1dc] sm:$0xf]
      %v4169 = vld [vmem:[#allocation9 + $0x1e0] sm:$0xf]
      %v4170 = vld [vmem:[#allocation9 + $0x1e4] sm:$0xf]
      %v4171 = vld [vmem:[#allocation9 + $0x1e8] sm:$0xf]
      %v4172 = vld [vmem:[#allocation9 + $0x1ec] sm:$0xf]
      %v4173 = vld [vmem:[#allocation9 + $0x1f0] sm:$0xf]
      %v4174 = vld [vmem:[#allocation9 + $0x1f4] sm:$0xf]
      %v4175 = vld [vmem:[#allocation9 + $0x1f8] sm:$0xf]
      %v4176 = vld [vmem:[#allocation9 + $0x1fc] sm:$0xf]
      %v4305 = vunpack.c.l.b16 %v4049
      %v4306 = vunpack.c.l.b16 %v4050
      %v4307 = vunpack.c.l.b16 %v4051
      %v4308 = vunpack.c.l.b16 %v4052
      %v4309 = vunpack.c.l.b16 %v4053
      %v4310 = vunpack.c.l.b16 %v4054
      %v4311 = vunpack.c.l.b16 %v4055
      %v4312 = vunpack.c.l.b16 %v4056
      %v4313 = vunpack.c.l.b16 %v4057
      %v4314 = vunpack.c.l.b16 %v4058
      %v4315 = vunpack.c.l.b16 %v4059
      %v4316 = vunpack.c.l.b16 %v4060
      %v4317 = vunpack.c.l.b16 %v4061
      %v4318 = vunpack.c.l.b16 %v4062
      %v4319 = vunpack.c.l.b16 %v4063
      %v4320 = vunpack.c.l.b16 %v4064
      %v4321 = vunpack.c.l.b16 %v4065
      %v4322 = vunpack.c.l.b16 %v4066
      %v4323 = vunpack.c.l.b16 %v4067
      %v4324 = vunpack.c.l.b16 %v4068
      %v4325 = vunpack.c.l.b16 %v4069
      %v4326 = vunpack.c.l.b16 %v4070
      %v4327 = vunpack.c.l.b16 %v4071
      %v4328 = vunpack.c.l.b16 %v4072
      %v4329 = vunpack.c.l.b16 %v4073
      %v4330 = vunpack.c.l.b16 %v4074
      %v4331 = vunpack.c.l.b16 %v4075
      %v4332 = vunpack.c.l.b16 %v4076
      %v4333 = vunpack.c.l.b16 %v4077
      %v4334 = vunpack.c.l.b16 %v4078
      %v4335 = vunpack.c.l.b16 %v4079
      %v4336 = vunpack.c.l.b16 %v4080
      %v4337 = vunpack.c.l.b16 %v4081
      %v4338 = vunpack.c.l.b16 %v4082
      %v4339 = vunpack.c.l.b16 %v4083
      %v4340 = vunpack.c.l.b16 %v4084
      %v4341 = vunpack.c.l.b16 %v4085
      %v4342 = vunpack.c.l.b16 %v4086
      %v4343 = vunpack.c.l.b16 %v4087
      %v4344 = vunpack.c.l.b16 %v4088
      %v4345 = vunpack.c.l.b16 %v4089
      %v4346 = vunpack.c.l.b16 %v4090
      %v4347 = vunpack.c.l.b16 %v4091
      %v4348 = vunpack.c.l.b16 %v4092
      %v4349 = vunpack.c.l.b16 %v4093
      %v4350 = vunpack.c.l.b16 %v4094
      %v4351 = vunpack.c.l.b16 %v4095
      %v4352 = vunpack.c.l.b16 %v4096
      %v4353 = vunpack.c.l.b16 %v4097
      %v4354 = vunpack.c.l.b16 %v4098
      %v4355 = vunpack.c.l.b16 %v4099
      %v4356 = vunpack.c.l.b16 %v4100
      %v4357 = vunpack.c.l.b16 %v4101
      %v4358 = vunpack.c.l.b16 %v4102
      %v4359 = vunpack.c.l.b16 %v4103
      %v4360 = vunpack.c.l.b16 %v4104
      %v4361 = vunpack.c.l.b16 %v4105
      %v4362 = vunpack.c.l.b16 %v4106
      %v4363 = vunpack.c.l.b16 %v4107
      %v4364 = vunpack.c.l.b16 %v4108
      %v4365 = vunpack.c.l.b16 %v4109
      %v4366 = vunpack.c.l.b16 %v4110
      %v4367 = vunpack.c.l.b16 %v4111
      %v4368 = vunpack.c.l.b16 %v4112
      %v4369 = vunpack.c.l.b16 %v4113
      %v4370 = vunpack.c.l.b16 %v4114
      %v4371 = vunpack.c.l.b16 %v4115
      %v4372 = vunpack.c.l.b16 %v4116
      %v4373 = vunpack.c.l.b16 %v4117
      %v4374 = vunpack.c.l.b16 %v4118
      %v4375 = vunpack.c.l.b16 %v4119
      %v4376 = vunpack.c.l.b16 %v4120
      %v4377 = vunpack.c.l.b16 %v4121
      %v4378 = vunpack.c.l.b16 %v4122
      %v4379 = vunpack.c.l.b16 %v4123
      %v4380 = vunpack.c.l.b16 %v4124
      %v4381 = vunpack.c.l.b16 %v4125
      %v4382 = vunpack.c.l.b16 %v4126
      %v4383 = vunpack.c.l.b16 %v4127
      %v4384 = vunpack.c.l.b16 %v4128
      %v4385 = vunpack.c.l.b16 %v4129
      %v4386 = vunpack.c.l.b16 %v4130
      %v4387 = vunpack.c.l.b16 %v4131
      %v4388 = vunpack.c.l.b16 %v4132
      %v4389 = vunpack.c.l.b16 %v4133
      %v4390 = vunpack.c.l.b16 %v4134
      %v4391 = vunpack.c.l.b16 %v4135
      %v4392 = vunpack.c.l.b16 %v4136
      %v4393 = vunpack.c.l.b16 %v4137
      %v4394 = vunpack.c.l.b16 %v4138
      %v4395 = vunpack.c.l.b16 %v4139
      %v4396 = vunpack.c.l.b16 %v4140
      %v4397 = vunpack.c.l.b16 %v4141
      %v4398 = vunpack.c.l.b16 %v4142
      %v4399 = vunpack.c.l.b16 %v4143
      %v4400 = vunpack.c.l.b16 %v4144
      %v4401 = vunpack.c.l.b16 %v4145
      %v4402 = vunpack.c.l.b16 %v4146
      %v4403 = vunpack.c.l.b16 %v4147
      %v4404 = vunpack.c.l.b16 %v4148
      %v4405 = vunpack.c.l.b16 %v4149
      %v4406 = vunpack.c.l.b16 %v4150
      %v4407 = vunpack.c.l.b16 %v4151
      %v4408 = vunpack.c.l.b16 %v4152
      %v4409 = vunpack.c.l.b16 %v4153
      %v4410 = vunpack.c.l.b16 %v4154
      %v4411 = vunpack.c.l.b16 %v4155
      %v4412 = vunpack.c.l.b16 %v4156
      %v4413 = vunpack.c.l.b16 %v4157
      %v4414 = vunpack.c.l.b16 %v4158
      %v4415 = vunpack.c.l.b16 %v4159
      %v4416 = vunpack.c.l.b16 %v4160
      %v4417 = vunpack.c.l.b16 %v4161
      %v4418 = vunpack.c.l.b16 %v4162
      %v4419 = vunpack.c.l.b16 %v4163
      %v4420 = vunpack.c.l.b16 %v4164
      %v4421 = vunpack.c.l.b16 %v4165
      %v4422 = vunpack.c.l.b16 %v4166
      %v4423 = vunpack.c.l.b16 %v4167
      %v4424 = vunpack.c.l.b16 %v4168
      %v4425 = vunpack.c.l.b16 %v4169
      %v4426 = vunpack.c.l.b16 %v4170
      %v4427 = vunpack.c.l.b16 %v4171
      %v4428 = vunpack.c.l.b16 %v4172
      %v4429 = vunpack.c.l.b16 %v4173
      %v4430 = vunpack.c.l.b16 %v4174
      %v4431 = vunpack.c.l.b16 %v4175
      %v4432 = vunpack.c.l.b16 %v4176
      %v4433 = vpack.c.b16 %v4306, %v4305
      %v4434 = vpack.c.b16 %v4308, %v4307
      %v4435 = vpack.c.b16 %v4310, %v4309
      %v4436 = vpack.c.b16 %v4312, %v4311
      %v4437 = vpack.c.b16 %v4314, %v4313
      %v4438 = vpack.c.b16 %v4316, %v4315
      %v4439 = vpack.c.b16 %v4318, %v4317
      %v4440 = vpack.c.b16 %v4320, %v4319
      %v4441 = vpack.c.b16 %v4322, %v4321
      %v4442 = vpack.c.b16 %v4324, %v4323
      %v4443 = vpack.c.b16 %v4326, %v4325
      %v4444 = vpack.c.b16 %v4328, %v4327
      %v4445 = vpack.c.b16 %v4330, %v4329
      %v4446 = vpack.c.b16 %v4332, %v4331
      %v4447 = vpack.c.b16 %v4334, %v4333
      %v4448 = vpack.c.b16 %v4336, %v4335
      %v4449 = vpack.c.b16 %v4338, %v4337
      %v4450 = vpack.c.b16 %v4340, %v4339
      %v4451 = vpack.c.b16 %v4342, %v4341
      %v4452 = vpack.c.b16 %v4344, %v4343
      %v4453 = vpack.c.b16 %v4346, %v4345
      %v4454 = vpack.c.b16 %v4348, %v4347
      %v4455 = vpack.c.b16 %v4350, %v4349
      %v4456 = vpack.c.b16 %v4352, %v4351
      %v4457 = vpack.c.b16 %v4354, %v4353
      %v4458 = vpack.c.b16 %v4356, %v4355
      %v4459 = vpack.c.b16 %v4358, %v4357
      %v4460 = vpack.c.b16 %v4360, %v4359
      %v4461 = vpack.c.b16 %v4362, %v4361
      %v4462 = vpack.c.b16 %v4364, %v4363
      %v4463 = vpack.c.b16 %v4366, %v4365
      %v4464 = vpack.c.b16 %v4368, %v4367
      %v4465 = vpack.c.b16 %v4370, %v4369
      %v4466 = vpack.c.b16 %v4372, %v4371
      %v4467 = vpack.c.b16 %v4374, %v4373
      %v4468 = vpack.c.b16 %v4376, %v4375
      %v4469 = vpack.c.b16 %v4378, %v4377
      %v4470 = vpack.c.b16 %v4380, %v4379
      %v4471 = vpack.c.b16 %v4382, %v4381
      %v4472 = vpack.c.b16 %v4384, %v4383
      %v4473 = vpack.c.b16 %v4386, %v4385
      %v4474 = vpack.c.b16 %v4388, %v4387
      %v4475 = vpack.c.b16 %v4390, %v4389
      %v4476 = vpack.c.b16 %v4392, %v4391
      %v4477 = vpack.c.b16 %v4394, %v4393
      %v4478 = vpack.c.b16 %v4396, %v4395
      %v4479 = vpack.c.b16 %v4398, %v4397
      %v4480 = vpack.c.b16 %v4400, %v4399
      %v4481 = vpack.c.b16 %v4402, %v4401
      %v4482 = vpack.c.b16 %v4404, %v4403
      %v4483 = vpack.c.b16 %v4406, %v4405
      %v4484 = vpack.c.b16 %v4408, %v4407
      %v4485 = vpack.c.b16 %v4410, %v4409
      %v4486 = vpack.c.b16 %v4412, %v4411
      %v4487 = vpack.c.b16 %v4414, %v4413
      %v4488 = vpack.c.b16 %v4416, %v4415
      %v4489 = vpack.c.b16 %v4418, %v4417
      %v4490 = vpack.c.b16 %v4420, %v4419
      %v4491 = vpack.c.b16 %v4422, %v4421
      %v4492 = vpack.c.b16 %v4424, %v4423
      %v4493 = vpack.c.b16 %v4426, %v4425
      %v4494 = vpack.c.b16 %v4428, %v4427
      %v4495 = vpack.c.b16 %v4430, %v4429
      %v4496 = vpack.c.b16 %v4432, %v4431
      %4561 = vmatprep.subr.bf16.mxu0 0
      %4562 = vmatpush1.bf16.msra.mxu0 %v4433
      %4563 = vmatprep.subr.bf16.mxu0 0
      %4564 = vmatpush1.bf16.msra.mxu0 %v4434
      %4565 = vmatprep.subr.bf16.mxu0 0
      %4566 = vmatpush1.bf16.msra.mxu0 %v4435
      %4567 = vmatprep.subr.bf16.mxu0 0
      %4568 = vmatpush1.bf16.msra.mxu0 %v4436
      %4569 = vmatprep.subr.bf16.mxu0 0
      %4570 = vmatpush1.bf16.msra.mxu0 %v4437
      %4571 = vmatprep.subr.bf16.mxu0 0
      %4572 = vmatpush1.bf16.msra.mxu0 %v4438
      %4573 = vmatprep.subr.bf16.mxu0 0
      %4574 = vmatpush1.bf16.msra.mxu0 %v4439
      %4575 = vmatprep.subr.bf16.mxu0 0
      %4576 = vmatpush1.bf16.msra.mxu0 %v4440
      %4577 = vmatprep.subr.bf16.mxu0 0
      %4578 = vmatpush1.bf16.msra.mxu0 %v4441
      %4579 = vmatprep.subr.bf16.mxu0 0
      %4580 = vmatpush1.bf16.msra.mxu0 %v4442
      %4581 = vmatprep.subr.bf16.mxu0 0
      %4582 = vmatpush1.bf16.msra.mxu0 %v4443
      %4583 = vmatprep.subr.bf16.mxu0 0
      %4584 = vmatpush1.bf16.msra.mxu0 %v4444
      %4585 = vmatprep.subr.bf16.mxu0 0
      %4586 = vmatpush1.bf16.msra.mxu0 %v4445
      %4587 = vmatprep.subr.bf16.mxu0 0
      %4588 = vmatpush1.bf16.msra.mxu0 %v4446
      %4589 = vmatprep.subr.bf16.mxu0 0
      %4590 = vmatpush1.bf16.msra.mxu0 %v4447
      %4591 = vmatprep.subr.bf16.mxu0 0
      %4592 = vmatpush1.bf16.msra.mxu0 %v4448
      %4593 = vmatprep.mubr.bf16.mxu0 %v4042
      %4594 = vmatmul.mubr.bf16.gmra.mrb[0].mxu0 %v4041
      %v4595 = vpop.f32.mrb[0].mxu0
      %v4596 = vadd.f32 0.0, %v4595
      %v4597 = vpop.f32.mrb[0].mxu0
      %v4598 = vpop.f32.mrb[0].mxu0
      %v4599 = vadd.f32 0.0, %v4598
      %v4600 = vpop.f32.mrb[0].mxu0
      %4601 = vdwg.mxu0
      %4602 = vmatprep.subr.bf16.mxu0 0
      %4603 = vmatpush1.bf16.msra.mxu0 %v4449
      %4604 = vmatprep.subr.bf16.mxu0 0
      %4605 = vmatpush1.bf16.msra.mxu0 %v4450
      %4606 = vmatprep.subr.bf16.mxu0 0
      %4607 = vmatpush1.bf16.msra.mxu0 %v4451
      %4608 = vmatprep.subr.bf16.mxu0 0
      %4609 = vmatpush1.bf16.msra.mxu0 %v4452
      %4610 = vmatprep.subr.bf16.mxu0 0
      %4611 = vmatpush1.bf16.msra.mxu0 %v4453
      %4612 = vmatprep.subr.bf16.mxu0 0
      %4613 = vmatpush1.bf16.msra.mxu0 %v4454
      %4614 = vmatprep.subr.bf16.mxu0 0
      %4615 = vmatpush1.bf16.msra.mxu0 %v4455
      %4616 = vmatprep.subr.bf16.mxu0 0
      %4617 = vmatpush1.bf16.msra.mxu0 %v4456
      %4618 = vmatprep.subr.bf16.mxu0 0
      %4619 = vmatpush1.bf16.msra.mxu0 %v4457
      %4620 = vmatprep.subr.bf16.mxu0 0
      %4621 = vmatpush1.bf16.msra.mxu0 %v4458
      %4622 = vmatprep.subr.bf16.mxu0 0
      %4623 = vmatpush1.bf16.msra.mxu0 %v4459
      %4624 = vmatprep.subr.bf16.mxu0 0
      %4625 = vmatpush1.bf16.msra.mxu0 %v4460
      %4626 = vmatprep.subr.bf16.mxu0 0
      %4627 = vmatpush1.bf16.msra.mxu0 %v4461
      %4628 = vmatprep.subr.bf16.mxu0 0
      %4629 = vmatpush1.bf16.msra.mxu0 %v4462
      %4630 = vmatprep.subr.bf16.mxu0 0
      %4631 = vmatpush1.bf16.msra.mxu0 %v4463
      %4632 = vmatprep.subr.bf16.mxu0 0
      %4633 = vmatpush1.bf16.msra.mxu0 %v4464
      %4634 = vmatprep.mubr.bf16.mxu0 %v4044
      %4635 = vmatmul.mubr.bf16.gmra.mrb[0].mxu0 %v4043
      %v4636 = vpop.f32.mrb[0].mxu0
      %v4637 = vadd.f32 %v4596, %v4636
      %v4638 = vpop.f32.mrb[0].mxu0
      %v4639 = vpop.f32.mrb[0].mxu0
      %v4640 = vadd.f32 %v4599, %v4639
      %v4641 = vpop.f32.mrb[0].mxu0
      %4642 = vdwg.mxu0
      %4643 = vmatprep.subr.bf16.mxu0 0
      %4644 = vmatpush1.bf16.msra.mxu0 %v4465
      %4645 = vmatprep.subr.bf16.mxu0 0
      %4646 = vmatpush1.bf16.msra.mxu0 %v4466
      %4647 = vmatprep.subr.bf16.mxu0 0
      %4648 = vmatpush1.bf16.msra.mxu0 %v4467
      %4649 = vmatprep.subr.bf16.mxu0 0
      %4650 = vmatpush1.bf16.msra.mxu0 %v4468
      %4651 = vmatprep.subr.bf16.mxu0 0
      %4652 = vmatpush1.bf16.msra.mxu0 %v4469
      %4653 = vmatprep.subr.bf16.mxu0 0
      %4654 = vmatpush1.bf16.msra.mxu0 %v4470
      %4655 = vmatprep.subr.bf16.mxu0 0
      %4656 = vmatpush1.bf16.msra.mxu0 %v4471
      %4657 = vmatprep.subr.bf16.mxu0 0
      %4658 = vmatpush1.bf16.msra.mxu0 %v4472
      %4659 = vmatprep.subr.bf16.mxu0 0
      %4660 = vmatpush1.bf16.msra.mxu0 %v4473
      %4661 = vmatprep.subr.bf16.mxu0 0
      %4662 = vmatpush1.bf16.msra.mxu0 %v4474
      %4663 = vmatprep.subr.bf16.mxu0 0
      %4664 = vmatpush1.bf16.msra.mxu0 %v4475
      %4665 = vmatprep.subr.bf16.mxu0 0
      %4666 = vmatpush1.bf16.msra.mxu0 %v4476
      %4667 = vmatprep.subr.bf16.mxu0 0
      %4668 = vmatpush1.bf16.msra.mxu0 %v4477
      %4669 = vmatprep.subr.bf16.mxu0 0
      %4670 = vmatpush1.bf16.msra.mxu0 %v4478
      %4671 = vmatprep.subr.bf16.mxu0 0
      %4672 = vmatpush1.bf16.msra.mxu0 %v4479
      %4673 = vmatprep.subr.bf16.mxu0 0
      %4674 = vmatpush1.bf16.msra.mxu0 %v4480
      %4675 = vmatprep.mubr.bf16.mxu0 %v4046
      %4676 = vmatmul.mubr.bf16.gmra.mrb[0].mxu0 %v4045
      %v4677 = vpop.f32.mrb[0].mxu0
      %v4678 = vadd.f32 %v4637, %v4677
      %v4679 = vpop.f32.mrb[0].mxu0
      %v4680 = vpop.f32.mrb[0].mxu0
      %v4681 = vadd.f32 %v4640, %v4680
      %v4682 = vpop.f32.mrb[0].mxu0
      %4683 = vdwg.mxu0
      %4684 = vmatprep.subr.bf16.mxu0 0
      %4685 = vmatpush1.bf16.msra.mxu0 %v4481
      %4686 = vmatprep.subr.bf16.mxu0 0
      %4687 = vmatpush1.bf16.msra.mxu0 %v4482
      %4688 = vmatprep.subr.bf16.mxu0 0
      %4689 = vmatpush1.bf16.msra.mxu0 %v4483
      %4690 = vmatprep.subr.bf16.mxu0 0
      %4691 = vmatpush1.bf16.msra.mxu0 %v4484
      %4692 = vmatprep.subr.bf16.mxu0 0
      %4693 = vmatpush1.bf16.msra.mxu0 %v4485
      %4694 = vmatprep.subr.bf16.mxu0 0
      %4695 = vmatpush1.bf16.msra.mxu0 %v4486
      %4696 = vmatprep.subr.bf16.mxu0 0
      %4697 = vmatpush1.bf16.msra.mxu0 %v4487
      %4698 = vmatprep.subr.bf16.mxu0 0
      %4699 = vmatpush1.bf16.msra.mxu0 %v4488
      %4700 = vmatprep.subr.bf16.mxu0 0
      %4701 = vmatpush1.bf16.msra.mxu0 %v4489
      %4702 = vmatprep.subr.bf16.mxu0 0
      %4703 = vmatpush1.bf16.msra.mxu0 %v4490
      %4704 = vmatprep.subr.bf16.mxu0 0
      %4705 = vmatpush1.bf16.msra.mxu0 %v4491
      %4706 = vmatprep.subr.bf16.mxu0 0
      %4707 = vmatpush1.bf16.msra.mxu0 %v4492
      %4708 = vmatprep.subr.bf16.mxu0 0
      %4709 = vmatpush1.bf16.msra.mxu0 %v4493
      %4710 = vmatprep.subr.bf16.mxu0 0
      %4711 = vmatpush1.bf16.msra.mxu0 %v4494
      %4712 = vmatprep.subr.bf16.mxu0 0
      %4713 = vmatpush1.bf16.msra.mxu0 %v4495
      %4714 = vmatprep.subr.bf16.mxu0 0
      %4715 = vmatpush1.bf16.msra.mxu0 %v4496
      %4716 = vmatprep.mubr.bf16.mxu0 %v4048
      %4717 = vmatmul.mubr.bf16.gmra.mrb[0].mxu0 %v4047
      %v4718 = vpop.f32.mrb[0].mxu0
      %v4719 = vadd.f32 %v4678, %v4718
      %v4720 = vpop.f32.mrb[0].mxu0
      %v4721 = vpop.f32.mrb[0].mxu0
      %v4722 = vadd.f32 %v4681, %v4721
      %v4723 = vpop.f32.mrb[0].mxu0
      %4724 = vdwg.mxu0
      %4725 = vst [vmem:[#allocation11] sm:$0xff] %v4719
      %4726 = vst [vmem:[#allocation11 + $0x8] sm:$0xff] %v4722
    $region41: #{tpu_custom_call.1} parent=1 // pred_fallthru
      _
    // Predicated region
    $region42: #{tpu_custom_call.1} parent=1 // pred_check
      _
    $region43: #{tpu_custom_call.1} parent=1 // pred_check_branch
      %4728 = sbr.rel (0) target = $region45
    $region44: #{tpu_custom_call.1} parent=1 // pred_region
      %s4730 = ssub.s32 256, 256
      %4731 = vsyncadd [#allocation5], %s4730
      %s4732 = sshll.u32 [#allocation11], 4
      %s4733 = int_to_ptr.vmem [resolvable:$true] %s4732
      %4738 = dma.vmem_to_hbm [thread:$0]  %s4733, 256, %s4, [#allocation5], 128, 128, 8
    $region45: #{tpu_custom_call.1} parent=1 // pred_fallthru
      _
    // Predicated region
    $region46: #{tpu_custom_call.1} parent=1 // pred_check
      _
    $region47: #{tpu_custom_call.1} parent=1 // pred_check_branch
      %4740 = sbr.rel (0) target = $region49
    $region48: #{tpu_custom_call.1} parent=1 // pred_region
      %4741 = dma.done [#allocation5], 256
    $region49: #{tpu_custom_call.1} parent=1 // pred_fallthru
      _
    %4742 = vsyncpa [#allocation4], 1
    %4743 = vsyncpa [#allocation7], 1
    %4744 = vsyncpa [#allocation10], 1
    %4745 = vsyncpa [#allocation5], 1

</llo_original>
